<compile_context>
chip_gen: v6e
topology: v6e:2x2x1
jax: 0.10.0
libtpu: 0.0.40
codegen_flags: <defaults>
</compile_context>

<pallas_src>
import functools

import jax
import jax.numpy as jnp
from jax.experimental import pallas as pl
from jax.experimental.pallas import tpu as pltpu

EPS = 1e-5                     # nn.GroupNorm default eps
MXU_DTYPE = jnp.bfloat16       # matmul operand dtype (f32 accumulation is kept)


# ---------------------------------------------------------------------------
# Fused kernel: ConvT(4x4) + GroupNorm + SiLU + Conv(3x3) + tanh, B samples per step.
# Layout: rows = (sample, H), columns = (W, C) with C fastest (lane-dense).
# ---------------------------------------------------------------------------
def _generator_kernel(z_ref, t1_ref, bgb_ref, m_ref, t2_ref, b2_ref, o_ref, *,
                      K1, K2, Hz, Wz, Ci, C0, G, Ho, Wo, B, OutPad):
    f32 = jnp.float32
    P1 = K1 - 1
    P2 = K2 // 2
    Cg = C0 // G
    WoC0 = Wo * C0

    bgb = bgb_ref[...]                                   # (3, Wo*C0): conv1 bias, gamma, beta
    m_c2g = m_ref[...]                                   # (Wo*C0, G) channel->group one-hot

    # ---------------- ConvTranspose2d(k=K1, s=1, p=0): one MXU matmul ----------------
    # Per-sample H zero padding only (W padding is folded away by the compact band).
    z = z_ref[...].astype(f32)                            # (B, Hz, Wz*Ci)
    zp = jnp.concatenate(
        [jnp.zeros((B, P1, Wz * Ci), f32), z, jnp.zeros((B, P1, Wz * Ci), f32)], axis=1)
    lhs1 = jnp.concatenate([zp[:, kh:kh + Ho, :] for kh in range(K1)], axis=2)
    lhs1 = lhs1.reshape(B * Ho, K1 * Wz * Ci)             # stacked over the batch
    h = jnp.dot(lhs1.astype(t1_ref.dtype), t1_ref[...],
                preferred_element_type=f32) + bgb[0:1, :]  # (B*Ho, Wo*C0)

    # ---------------- GroupNorm (strictly per sample) + SiLU ----------------
    h3 = h.reshape(B, Ho, WoC0)
    inv_cnt = 1.0 / float(Ho * Wo * Cg)
    nt = (((1,), (1,)), ((), ()))                         # contract minor dims (no transpose)
    s1 = jnp.sum(h3, axis=1)                              # (B, Wo*C0)  per-sample column sums
    mean_g = jnp.dot(s1, m_c2g, preferred_element_type=f32) * inv_cnt        # (B, G)
    mean_c = jax.lax.dot_general(mean_g, m_c2g, nt, preferred_element_type=f32)   # (B, Wo*C0)
    hc = h3 - mean_c[:, None, :]                          # two-pass (centered) variance
    s2 = jnp.sum(hc * hc, axis=1)                         # (B, Wo*C0)
    var_g = jnp.dot(s2, m_c2g, preferred_element_type=f32) * inv_cnt          # (B, G)
    inv_g = jax.lax.rsqrt(var_g + EPS)
    inv_c = jax.lax.dot_general(inv_g, m_c2g, nt, preferred_element_type=f32)     # (B, Wo*C0)
    yv = hc * (inv_c * bgb[1:2, :])[:, None, :] + bgb[2:3, :]
    act = yv * jax.nn.sigmoid(yv)                         # SiLU, (B, Ho, Wo*C0)

    # up_blocks == identity for the default single-entry block_out_channels (see header).

    # ---------------- Conv2d(k=K2, p=K2//2) + tanh: one MXU matmul ----------------
    ap = jnp.concatenate(
        [jnp.zeros((B, P2, WoC0), f32), act, jnp.zeros((B, P2, WoC0), f32)], axis=1)
    lhs2 = jnp.concatenate([ap[:, kh:kh + Ho, :] for kh in range(K2)], axis=2)
    lhs2 = lhs2.reshape(B * Ho, K2 * WoC0)
    out = jnp.dot(lhs2.astype(t2_ref.dtype), t2_ref[...],
                  preferred_element_type=f32) + b2_ref[...]   # (B*Ho, OutPad), lane-dense
    o_ref[...] = jnp.tanh(out).reshape(B, Ho, OutPad)


# ---------------------------------------------------------------------------
# Static weight preprocessing (runs once in make_generator, outside the jitted path)
# ---------------------------------------------------------------------------
def _band_weights(w, win, wo, pad):
    """Compact banded matrix for a correlation with symmetric W zero padding `pad`.

    w: correlation weights (K, K, Cin, Cout).  Returns (K*win*Cin, wo*Cout) such that
    the lane-concatenation of K row-shifted slabs of the H-padded-only activation
    [rows, win*Cin], multiplied by this matrix, yields the convolution [rows, wo*Cout].
    Rows that would multiply W-padding columns (structurally zero) are omitted."""
    K, _, Cin, Cout = w.shape
    t = jnp.zeros((K, win, Cin, wo, Cout), w.dtype)
    for x in range(wo):
        for kx in range(K):
            xi = x + kx - pad
            if 0 <= xi < win:
                t = t.at[:, xi, :, x, :].set(w[:, kx, :, :])
    return t.reshape(K * win * Cin, wo * Cout)


def make_generator(w_t, b_t, gamma, beta, w_o, b_o, *, groups, Hz, Wz, batch_block=32):
    """Return a jitted forward pass closed over the preprocessed weights.

    w_t: ConvTranspose2d weight (Ci, C0, K1, K1), b_t: (C0,)
    gamma, beta: GroupNorm affine (C0,)
    w_o: Conv2d weight (Cout, C0, K2, K2), b_o: (Cout,)
    Hz, Wz: latent spatial size; batch_block: max samples fused per grid step
    (32 ~ fills a 256-row MXU at Ho=7; ~18 is plenty on v5e's 128-row MXU).
    """
    Ci, C0, K1, _ = w_t.shape
    Cout, C0b, K2, _ = w_o.shape
    assert C0b == C0 and C0 % groups == 0, "channels must divide evenly into groups"
    Ho, Wo = Hz + K1 - 1, Wz + K1 - 1
    Cg = C0 // groups
    OutPad = ((Wo * Cout + 127) // 128) * 128            # lane-dense output columns

    # ConvTranspose2d(s=1, p=0) == correlation of the (K1-1)-padded input with the
    # spatially flipped kernel; Conv2d is already a correlation.
    w1 = jnp.transpose(jnp.flip(w_t, (2, 3)), (2, 3, 0, 1)).astype(jnp.float32)  # (K1,K1,Ci,C0)
    w2 = jnp.transpose(w_o, (2, 3, 1, 0)).astype(jnp.float32)                    # (K2,K2,C0,Cout)
    t1 = _band_weights(w1, Wz, Wo, K1 - 1).astype(MXU_DTYPE)     # (K1*Wz*Ci, Wo*C0)
    t2 = _band_weights(w2, Wo, Wo, K2 // 2).astype(MXU_DTYPE)    # (K2*Wo*C0, Wo*Cout)
    t2 = jnp.pad(t2, ((0, 0), (0, OutPad - Wo * Cout)))          # pad output columns to 128k

    # Packed per-column (x, c)-ordered operands: conv1 bias, gamma, beta.
    bgb = jnp.stack([jnp.tile(b_t.astype(jnp.float32), Wo),
                     jnp.tile(gamma.astype(jnp.float32), Wo),
                     jnp.tile(beta.astype(jnp.float32), Wo)], axis=0)     # (3, Wo*C0)
    b2 = jnp.pad(jnp.tile(b_o.astype(jnp.float32), Wo),
                 (0, OutPad - Wo * Cout))[None, :]                         # (1, OutPad)
    # Channel -> group one-hot map; rows ordered x-major / channel-fastest like h's columns.
    oh = (jnp.arange(C0)[:, None] // Cg == jnp.arange(groups)[None, :]).astype(jnp.float32)
    m_c2g = jnp.tile(oh, (Wo, 1))                                          # (Wo*C0, G)

    @jax.jit
    def forward(z_nchw):
        N = z_nchw.shape[0]
        # B samples per grid step: fill the MXU but keep >= 2 steps when N > 1 so both
        # v7x TensorCores are busy.  (All sizes here are static at trace time.)
        B = max(1, min(batch_block, (N + 1) // 2)) if N > 1 else 1
        steps = (N + B - 1) // B
        Npad = steps * B

        kernel = functools.partial(
            _generator_kernel, K1=K1, K2=K2, Hz=Hz, Wz=Wz, Ci=Ci, C0=C0,
            G=groups, Ho=Ho, Wo=Wo, B=B, OutPad=OutPad)

        # NCHW -> lane-dense (N, H, W*C) boundary glue (tiny); pad batch to a multiple of B.
        z2 = jnp.transpose(z_nchw, (0, 2, 3, 1)).reshape(N, Hz, Wz * Ci)
        if Npad != N:
            z2 = jnp.pad(z2, ((0, Npad - N), (0, 0), (0, 0)))

        y = pl.pallas_call(
            kernel,
            out_shape=jax.ShapeDtypeStruct((Npad, Ho, OutPad), jnp.float32),
            grid=(steps,),
            in_specs=[
                pl.BlockSpec((B, Hz, Wz * Ci), lambda n: (n, 0, 0)),
                pl.BlockSpec(t1.shape, lambda n: (0, 0)),
                pl.BlockSpec(bgb.shape, lambda n: (0, 0)),
                pl.BlockSpec(m_c2g.shape, lambda n: (0, 0)),
                pl.BlockSpec(t2.shape, lambda n: (0, 0)),
                pl.BlockSpec(b2.shape, lambda n: (0, 0)),
            ],
            out_specs=pl.BlockSpec((B, Ho, OutPad), lambda n: (n, 0, 0)),
            compiler_params=pltpu.CompilerParams(
                dimension_semantics=("parallel",)),
        )(z2, t1, bgb, m_c2g, t2, b2)

        # Drop batch padding and lane padding; columns (x, c) -> NCHW.
        y = y[:N, :, :Wo * Cout]
        return jnp.transpose(y.reshape(N, Ho, Wo, Cout), (0, 3, 1, 2))

    return forward


# ---------------------------------------------------------------------------
# Pure-JAX reference (for correctness)
# ---------------------------------------------------------------------------
def reference_forward(z, w_t, b_t, gamma, beta, w_o, b_o, G):
    dn = ("NCHW", "OIHW", "NCHW")
    K1 = w_t.shape[2]
    wf = jnp.transpose(jnp.flip(w_t, (2, 3)), (1, 0, 2, 3))
    h = jax.lax.conv_general_dilated(z, wf, (1, 1), [(K1 - 1, K1 - 1)] * 2,
                                     dimension_numbers=dn,
                                     precision=jax.lax.Precision.HIGHEST)
    h = h + b_t[None, :, None, None]
    N, C, Hh, Wh = h.shape
    hg = h.reshape(N, G, C // G, Hh, Wh)
    mean = hg.mean(axis=(2, 3, 4), keepdims=True)
    var = hg.var(axis=(2, 3, 4), keepdims=True)
    hn = ((hg - mean) * jax.lax.rsqrt(var + EPS)).reshape(N, C, Hh, Wh)
    hn = hn * gamma[None, :, None, None] + beta[None, :, None, None]
    h = hn * jax.nn.sigmoid(hn)
    K2 = w_o.shape[2]
    x = jax.lax.conv_general_dilated(h, w_o, (1, 1), [(K2 // 2, K2 // 2)] * 2,
                                     dimension_numbers=dn,
                                     precision=jax.lax.Precision.HIGHEST)
    x = x + b_o[None, :, None, None]
    return jnp.tanh(x)


if __name__ == "__main__":
    key = jax.random.PRNGKey(0)
    ks = jax.random.split(key, 8)

    # Small shapes consistent with the module:
    #   latent_channels=16, block_out_channels=(32,), out_channels=3, groups=8.
    # N=6 exercises the batched path: B=3 samples/step, 2 grid steps.
    N, Cz, Hz, Wz = 6, 16, 4, 4
    C0, GROUPS, COUT = 32, 8, 3

    z = jax.random.normal(ks[0], (N, Cz, Hz, Wz), jnp.float32)
    # ConvTranspose2d(latent -> C0, k=4): weight (Ci, Co, 4, 4)
    w_t = 0.1 * jax.random.normal(ks[1], (Cz, C0, 4, 4), jnp.float32)
    b_t = 0.1 * jax.random.normal(ks[2], (C0,), jnp.float32)
    # GroupNorm affine params
    gamma = 1.0 + 0.1 * jax.random.normal(ks[3], (C0,), jnp.float32)
    beta = 0.1 * jax.random.normal(ks[4], (C0,), jnp.float32)
    # Conv2d(C0 -> 3, k=3, pad=1): weight (Co, Ci, 3, 3)
    w_o = 0.1 * jax.random.normal(ks[5], (COUT, C0, 3, 3), jnp.float32)
    b_o = 0.1 * jax.random.normal(ks[6], (COUT,), jnp.float32)

    forward = make_generator(w_t, b_t, gamma, beta, w_o, b_o,
                             groups=GROUPS, Hz=Hz, Wz=Wz)
    out = jax.block_until_ready(forward(z))

    assert out.shape == (N, COUT, Hz + 3, Wz + 3), out.shape
    ref = reference_forward(z, w_t, b_t, gamma, beta, w_o, b_o, GROUPS)
    err = float(jnp.max(jnp.abs(out - ref)))
    # bf16 MXU operands (f32 accumulation) vs HIGHEST-precision f32 reference.
    assert jnp.allclose(out, ref, atol=3e-2, rtol=3e-2), f"max abs err {err}"

    print("KERNEL_OK")
</pallas_src>

<mosaic_0001>
module attributes {stable_mosaic.version = 11 : i64} {
  func.func @_generator_kernel(%arg0: i32, %arg1: memref<3x4x64xf32, #tpu.memory_space<vmem>>, %arg2: memref<256x224xbf16, #tpu.memory_space<vmem>>, %arg3: memref<3x224xf32, #tpu.memory_space<vmem>>, %arg4: memref<224x8xf32, #tpu.memory_space<vmem>>, %arg5: memref<672x128xbf16, #tpu.memory_space<vmem>>, %arg6: memref<1x128xf32, #tpu.memory_space<vmem>>, %arg7: memref<3x7x128xf32, #tpu.memory_space<vmem>>) attributes {dimension_semantics = [#tpu.dimension_semantics<parallel>], iteration_bounds = array<i64: 2>, scalar_prefetch = 0 : i64, scratch_operands = 0 : i64, tpu.core_type = #tpu.core_type<tc>, window_params = [{transform_indices = @transform_0, window_bounds = array<i64: 3, 4, 64>}, {pipeline_mode = #tpu.pipeline_mode<synchronous>, transform_indices = @transform_1, window_bounds = array<i64: 256, 224>}, {pipeline_mode = #tpu.pipeline_mode<synchronous>, transform_indices = @transform_2, window_bounds = array<i64: 3, 224>}, {pipeline_mode = #tpu.pipeline_mode<synchronous>, transform_indices = @transform_3, window_bounds = array<i64: 224, 8>}, {pipeline_mode = #tpu.pipeline_mode<synchronous>, transform_indices = @transform_4, window_bounds = array<i64: 672, 128>}, {pipeline_mode = #tpu.pipeline_mode<synchronous>, transform_indices = @transform_5, window_bounds = array<i64: 1, 128>}, {transform_indices = @transform_6, window_bounds = array<i64: 3, 7, 128>}]} {
    %c0 = arith.constant 0 : index
    %c0_0 = arith.constant 0 : index
    %0 = vector.load %arg3[%c0, %c0_0] : memref<3x224xf32, #tpu.memory_space<vmem>>, vector<3x224xf32>
    %c0_1 = arith.constant 0 : index
    %c0_2 = arith.constant 0 : index
    %1 = vector.load %arg4[%c0_1, %c0_2] : memref<224x8xf32, #tpu.memory_space<vmem>>, vector<224x8xf32>
    %c0_3 = arith.constant 0 : index
    %c0_4 = arith.constant 0 : index
    %c0_5 = arith.constant 0 : index
    %2 = vector.load %arg1[%c0_3, %c0_4, %c0_5] : memref<3x4x64xf32, #tpu.memory_space<vmem>>, vector<3x4x64xf32>
    %cst = arith.constant 0.000000e+00 : f32
    %3 = vector.broadcast %cst : f32 to vector<3x3x64xf32>
    %cst_6 = arith.constant 0.000000e+00 : f32
    %4 = vector.broadcast %cst_6 : f32 to vector<3x3x64xf32>
    %5 = tpu.concatenate %3, %2, %4 in 1 : vector<3x3x64xf32>, vector<3x4x64xf32>, vector<3x3x64xf32> -> vector<3x10x64xf32>
    %6 = vector.extract_strided_slice %5 {offsets = [0, 0, 0], sizes = [3, 7, 64], strides = [1, 1, 1]} : vector<3x10x64xf32> to vector<3x7x64xf32>
    %7 = vector.extract_strided_slice %5 {offsets = [0, 1, 0], sizes = [3, 7, 64], strides = [1, 1, 1]} : vector<3x10x64xf32> to vector<3x7x64xf32>
    %8 = vector.extract_strided_slice %5 {offsets = [0, 2, 0], sizes = [3, 7, 64], strides = [1, 1, 1]} : vector<3x10x64xf32> to vector<3x7x64xf32>
    %9 = vector.extract_strided_slice %5 {offsets = [0, 3, 0], sizes = [3, 7, 64], strides = [1, 1, 1]} : vector<3x10x64xf32> to vector<3x7x64xf32>
    %10 = tpu.concatenate %6, %7, %8, %9 in 2 : vector<3x7x64xf32>, vector<3x7x64xf32>, vector<3x7x64xf32>, vector<3x7x64xf32> -> vector<3x7x256xf32>
    %11 = vector.shape_cast %10 : vector<3x7x256xf32> to vector<21x256xf32>
    %12 = arith.truncf %11 : vector<21x256xf32> to vector<21x256xbf16>
    %c0_7 = arith.constant 0 : index
    %c0_8 = arith.constant 0 : index
    %13 = vector.load %arg2[%c0_7, %c0_8] : memref<256x224xbf16, #tpu.memory_space<vmem>>, vector<256x224xbf16>
    %cst_9 = arith.constant dense<0.000000e+00> : vector<21x224xf32>
    %14 = tpu.matmul %12, %13, %cst_9 {dimension_numbers = #tpu.dot_dimension_numbers<[1], [0], [0], [1], [0, 0, 1, 1], [], []>} : vector<21x256xbf16>, vector<256x224xbf16>, vector<21x224xf32> -> vector<21x224xf32>
    %15 = vector.extract_strided_slice %0 {offsets = [0, 0], sizes = [1, 224], strides = [1, 1]} : vector<3x224xf32> to vector<1x224xf32>
    %16 = vector.broadcast %15 : vector<1x224xf32> to vector<21x224xf32>
    %17 = arith.addf %14, %16 : vector<21x224xf32>
    %18 = vector.shape_cast %17 : vector<21x224xf32> to vector<3x7x224xf32>
    %cst_10 = arith.constant dense<0.000000e+00> : vector<3x224xf32>
    %19 = vector.multi_reduction <add>, %18, %cst_10 [1] : vector<3x7x224xf32> to vector<3x224xf32>
    %cst_11 = arith.constant dense<0.000000e+00> : vector<3x8xf32>
    %20 = tpu.matmul %19, %1, %cst_11 {dimension_numbers = #tpu.dot_dimension_numbers<[1], [0], [0], [1], [0, 0, 1, 1], [], []>} : vector<3x224xf32>, vector<224x8xf32>, vector<3x8xf32> -> vector<3x8xf32>
    %cst_12 = arith.constant 0.00510204071 : f32
    %21 = vector.broadcast %cst_12 : f32 to vector<3x8xf32>
    %22 = arith.mulf %20, %21 : vector<3x8xf32>
    %cst_13 = arith.constant dense<0.000000e+00> : vector<3x224xf32>
    %23 = tpu.matmul %22, %1, %cst_13 {dimension_numbers = #tpu.dot_dimension_numbers<[1], [1], [0], [0], [0, 0, 1, 0], [], []>} : vector<3x8xf32>, vector<224x8xf32>, vector<3x224xf32> -> vector<3x224xf32>
    %24 = vector.shape_cast %23 : vector<3x224xf32> to vector<3x1x224xf32>
    %25 = vector.broadcast %24 : vector<3x1x224xf32> to vector<3x7x224xf32>
    %26 = arith.subf %18, %25 : vector<3x7x224xf32>
    %27 = arith.mulf %26, %26 : vector<3x7x224xf32>
    %cst_14 = arith.constant dense<0.000000e+00> : vector<3x224xf32>
    %28 = vector.multi_reduction <add>, %27, %cst_14 [1] : vector<3x7x224xf32> to vector<3x224xf32>
    %cst_15 = arith.constant dense<0.000000e+00> : vector<3x8xf32>
    %29 = tpu.matmul %28, %1, %cst_15 {dimension_numbers = #tpu.dot_dimension_numbers<[1], [0], [0], [1], [0, 0, 1, 1], [], []>} : vector<3x224xf32>, vector<224x8xf32>, vector<3x8xf32> -> vector<3x8xf32>
    %cst_16 = arith.constant 0.00510204071 : f32
    %30 = vector.broadcast %cst_16 : f32 to vector<3x8xf32>
    %31 = arith.mulf %29, %30 : vector<3x8xf32>
    %cst_17 = arith.constant 9.99999974E-6 : f32
    %32 = vector.broadcast %cst_17 : f32 to vector<3x8xf32>
    %33 = arith.addf %31, %32 : vector<3x8xf32>
    %34 = math.rsqrt %33 : vector<3x8xf32>
    %cst_18 = arith.constant dense<0.000000e+00> : vector<3x224xf32>
    %35 = tpu.matmul %34, %1, %cst_18 {dimension_numbers = #tpu.dot_dimension_numbers<[1], [1], [0], [0], [0, 0, 1, 0], [], []>} : vector<3x8xf32>, vector<224x8xf32>, vector<3x224xf32> -> vector<3x224xf32>
    %36 = vector.extract_strided_slice %0 {offsets = [1, 0], sizes = [1, 224], strides = [1, 1]} : vector<3x224xf32> to vector<1x224xf32>
    %37 = vector.broadcast %36 : vector<1x224xf32> to vector<3x224xf32>
    %38 = arith.mulf %35, %37 : vector<3x224xf32>
    %39 = vector.shape_cast %38 : vector<3x224xf32> to vector<3x1x224xf32>
    %40 = vector.broadcast %39 : vector<3x1x224xf32> to vector<3x7x224xf32>
    %41 = arith.mulf %26, %40 : vector<3x7x224xf32>
    %42 = vector.extract_strided_slice %0 {offsets = [2, 0], sizes = [1, 224], strides = [1, 1]} : vector<3x224xf32> to vector<1x224xf32>
    %43 = vector.shape_cast %42 : vector<1x224xf32> to vector<1x1x224xf32>
    %44 = vector.broadcast %43 : vector<1x1x224xf32> to vector<3x7x224xf32>
    %45 = arith.addf %41, %44 : vector<3x7x224xf32>
    %46 = arith.negf %45 : vector<3x7x224xf32>
    %47 = math.exp %46 : vector<3x7x224xf32>
    %cst_19 = arith.constant 1.000000e+00 : f32
    %48 = vector.broadcast %cst_19 : f32 to vector<3x7x224xf32>
    %49 = arith.addf %48, %47 : vector<3x7x224xf32>
    %50 = arith.divf %48, %49 : vector<3x7x224xf32>
    %51 = arith.mulf %45, %50 : vector<3x7x224xf32>
    %cst_20 = arith.constant 0.000000e+00 : f32
    %52 = vector.broadcast %cst_20 : f32 to vector<3x1x224xf32>
    %cst_21 = arith.constant 0.000000e+00 : f32
    %53 = vector.broadcast %cst_21 : f32 to vector<3x1x224xf32>
    %54 = tpu.concatenate %52, %51, %53 in 1 : vector<3x1x224xf32>, vector<3x7x224xf32>, vector<3x1x224xf32> -> vector<3x9x224xf32>
    %55 = vector.extract_strided_slice %54 {offsets = [0, 0, 0], sizes = [3, 7, 224], strides = [1, 1, 1]} : vector<3x9x224xf32> to vector<3x7x224xf32>
    %56 = vector.extract_strided_slice %54 {offsets = [0, 1, 0], sizes = [3, 7, 224], strides = [1, 1, 1]} : vector<3x9x224xf32> to vector<3x7x224xf32>
    %57 = vector.extract_strided_slice %54 {offsets = [0, 2, 0], sizes = [3, 7, 224], strides = [1, 1, 1]} : vector<3x9x224xf32> to vector<3x7x224xf32>
    %58 = tpu.concatenate %55, %56, %57 in 2 : vector<3x7x224xf32>, vector<3x7x224xf32>, vector<3x7x224xf32> -> vector<3x7x672xf32>
    %59 = vector.shape_cast %58 : vector<3x7x672xf32> to vector<21x672xf32>
    %60 = arith.truncf %59 : vector<21x672xf32> to vector<21x672xbf16>
    %c0_22 = arith.constant 0 : index
    %c0_23 = arith.constant 0 : index
    %61 = vector.load %arg5[%c0_22, %c0_23] : memref<672x128xbf16, #tpu.memory_space<vmem>>, vector<672x128xbf16>
    %cst_24 = arith.constant dense<0.000000e+00> : vector<21x128xf32>
    %62 = tpu.matmul %60, %61, %cst_24 {dimension_numbers = #tpu.dot_dimension_numbers<[1], [0], [0], [1], [0, 0, 1, 1], [], []>} : vector<21x672xbf16>, vector<672x128xbf16>, vector<21x128xf32> -> vector<21x128xf32>
    %c0_25 = arith.constant 0 : index
    %c0_26 = arith.constant 0 : index
    %63 = vector.load %arg6[%c0_25, %c0_26] : memref<1x128xf32, #tpu.memory_space<vmem>>, vector<1x128xf32>
    %64 = vector.broadcast %63 : vector<1x128xf32> to vector<21x128xf32>
    %65 = arith.addf %62, %64 : vector<21x128xf32>
    %66 = math.tanh %65 : vector<21x128xf32>
    %67 = vector.shape_cast %66 : vector<21x128xf32> to vector<3x7x128xf32>
    %c0_27 = arith.constant 0 : index
    %c0_28 = arith.constant 0 : index
    %c0_29 = arith.constant 0 : index
    %68 = vector.load %arg7[%c0_27, %c0_28, %c0_29] : memref<3x7x128xf32, #tpu.memory_space<vmem>>, vector<3x7x128xf32>
    tpu.vector_store %arg7[%c0_27, %c0_28, %c0_29], %67 {strides = array<i32>} : memref<3x7x128xf32, #tpu.memory_space<vmem>>, vector<3x7x128xf32>,
    return
  }
  func.func @transform_0(%arg0: i32) -> (i32, i32, i32) {
    %c0_i32 = arith.constant 0 : i32
    %c0_i32_0 = arith.constant 0 : i32
    %c0_i32_1 = arith.constant 0 : i32
    return %arg0, %c0_i32, %c0_i32_0 : i32, i32, i32
  }
  func.func @transform_1(%arg0: i32) -> (i32, i32) {
    %c0_i32 = arith.constant 0 : i32
    %c0_i32_0 = arith.constant 0 : i32
    %c0_i32_1 = arith.constant 0 : i32
    return %c0_i32, %c0_i32_0 : i32, i32
  }
  func.func @transform_2(%arg0: i32) -> (i32, i32) {
    %c0_i32 = arith.constant 0 : i32
    %c0_i32_0 = arith.constant 0 : i32
    %c0_i32_1 = arith.constant 0 : i32
    return %c0_i32, %c0_i32_0 : i32, i32
  }
  func.func @transform_3(%arg0: i32) -> (i32, i32) {
    %c0_i32 = arith.constant 0 : i32
    %c0_i32_0 = arith.constant 0 : i32
    %c0_i32_1 = arith.constant 0 : i32
    return %c0_i32, %c0_i32_0 : i32, i32
  }
  func.func @transform_4(%arg0: i32) -> (i32, i32) {
    %c0_i32 = arith.constant 0 : i32
    %c0_i32_0 = arith.constant 0 : i32
    %c0_i32_1 = arith.constant 0 : i32
    return %c0_i32, %c0_i32_0 : i32, i32
  }
  func.func @transform_5(%arg0: i32) -> (i32, i32) {
    %c0_i32 = arith.constant 0 : i32
    %c0_i32_0 = arith.constant 0 : i32
    %c0_i32_1 = arith.constant 0 : i32
    return %c0_i32, %c0_i32_0 : i32, i32
  }
  func.func @transform_6(%arg0: i32) -> (i32, i32, i32) {
    %c0_i32 = arith.constant 0 : i32
    %c0_i32_0 = arith.constant 0 : i32
    %c0_i32_1 = arith.constant 0 : i32
    return %arg0, %c0_i32, %c0_i32_0 : i32, i32, i32
  }
}

</mosaic_0001>

<llo_original>
// kernel: forward.1
$region0: #{forward.1}
  #allocation0 [shape = 'u32[]', space=smem, size = 0x4, offset = 0x4, fixed_abs, tag = 'smem constant byte address 0x4 - core index']
  #allocation1 [shape = 'u32[144,128]{1,0:T(1,128)}', space=vmem, size = 0x12000, scoped, tag = 'internal scratch']
  %s0 = inlined_call_operand.vmem [shape: f32[6,4,64], index: 0, kind: input, shape index: {}]
  %s1 = inlined_call_operand.hbm [shape: bf16[256,224], index: 1, kind: input, shape index: {}]
  %s2 = inlined_call_operand.vmem [shape: f32[3,224], index: 2, kind: input, shape index: {}]
  %s3 = inlined_call_operand.hbm [shape: f32[224,8], index: 3, kind: input, shape index: {}]
  %s4 = inlined_call_operand.hbm [shape: bf16[672,128], index: 4, kind: input, shape index: {}]
  %s5 = inlined_call_operand.vmem [shape: f32[1,128], index: 5, kind: input, shape index: {}]
  %s6 = inlined_call_operand.vmem [shape: f32[6,7,128], index: 6, kind: output, shape index: {}]
  %s7 = sld [smem:[#allocation0]]
  $region69: #{forward.1} parent=0
    _
  %s9 = ssub.s32 1, %s7
  %s10 = scalar_select 0, %s9, %s7
  $region1: #{forward.1} parent=0
    #allocation2 [shape = 'u8[131072]{0}', space=vmem, size = 0x20000, scoped, tag = 'input window, operand 1, single buffered']
    #allocation3 [shape = 's32[2]{0}', space=sflag, size = 0x8, scoped, tag = 'scoped memory for forward.1']
    #allocation4 [shape = 'u8[114688]{0}', space=vmem, size = 0x1c000, scoped, tag = 'input window, operand 3, single buffered']
    #allocation5 [shape = 's32[1]{0}', space=sflag, size = 0x4, scoped, tag = 'scoped memory for forward.1']
    #allocation6 [shape = 'u8[172032]{0}', space=vmem, size = 0x2a000, scoped, tag = 'input window, operand 4, single buffered']
    %11 = vsyncpa [#allocation3], 0
    %12 = vsyncpa [#allocation5], 0
    loop: start=0, step=1, limit=4
    $region2: #{forward.1} parent=1 // loop_pre_header
      _
    $region3: #{forward.1} parent=1 // loop_header
      %s14 = sphi 0, %s18
      %p15 = scmp.ge.s32.totalorder %s14, 4
      %s24 = sphi 0, %s26
      %s27 = sphi 0, %s24
      %s28 = sphi 0, %s27
      %s44 = sphi 0, %s28
      %s48 = sphi 0, %s48
      %s50 = sphi 0, %s48
      %s51 = sphi 0, %s50
      %s65 = sphi 0, %s51
      %s69 = sphi 0, %s69
      %s71 = sphi 0, %s69
      %s72 = sphi 0, %s71
      %s86 = sphi 0, %s72
      %s90 = sphi 0, %s90
      %s92 = sphi 0, %s90
      %s93 = sphi 0, %s92
      %s107 = sphi 0, %s93
      %s111 = sphi 0, %s111
      %s113 = sphi 0, %s111
      %s114 = sphi 0, %s113
      %s128 = sphi 0, %s114
      %s132 = sphi 0, %s132
      %s134 = sphi 0, %s132
      %s135 = sphi 0, %s134
      %s149 = sphi 0, %s135
      %s155 = sphi 0, %s157
      %s158 = sphi 0, %s155
      %s159 = sphi 0, %s158
      %s175 = sphi 0, %s159
    $region4: #{forward.1} parent=1 // loop_header_branch
      %17 = sbr.rel (%p15) target = $region8
    $region5: #{forward.1} parent=1 // loop_body
      %s19 = ssub.s32 %s14, 1
      %s20 = ssub.s32 %s14, 2
      %s21 = sadd.s32 %s14, 1
      %s22 = ssub.s32 %s14, %s21
      %p23 = scmp.eq.s32.totalorder %s22, 0
      %s25 = sadd.s32 %s24, 1
      %s26 = scalar_select %p23, %s24, %s25
      %p29 = pneg %p23
      %p30 = scmp.eq.s32.totalorder %s14, 1
      %p31 = por %p29, %p30
      %p32 = scmp.ne.s32.totalorder %s24, %s27
      %p33 = scmp.eq.s32.totalorder %s14, 0
      %p34 = por %p32, %p33
      %p35 = scmp.ne.s32.totalorder %s24, %s27
      %p36 = scmp.eq.s32.totalorder %s19, 1
      %p37 = por %p35, %p36
      %p38 = scmp.ne.s32.totalorder %s27, %s28
      %p39 = scmp.eq.s32.totalorder %s19, 0
      %p40 = por %p38, %p39
      %p41 = scmp.ne.s32.totalorder %s27, %s28
      %p42 = scmp.eq.s32.totalorder %s20, 1
      %p43 = por %p41, %p42
      %p45 = scmp.ne.s32.totalorder %s28, %s44
      %p46 = scmp.eq.s32.totalorder %s20, 0
      %p47 = por %p45, %p46
      %s49 = sadd.s32 %s48, 1
      %p52 = scmp.eq.s32.totalorder %s14, 1
      %p53 = scmp.ne.s32.totalorder %s48, %s50
      %p54 = scmp.eq.s32.totalorder %s14, 0
      %p55 = por %p53, %p54
      %p56 = scmp.ne.s32.totalorder %s48, %s50
      %p57 = scmp.eq.s32.totalorder %s19, 1
      %p58 = por %p56, %p57
      %p59 = scmp.ne.s32.totalorder %s50, %s51
      %p60 = scmp.eq.s32.totalorder %s19, 0
      %p61 = por %p59, %p60
      %p62 = scmp.ne.s32.totalorder %s50, %s51
      %p63 = scmp.eq.s32.totalorder %s20, 1
      %p64 = por %p62, %p63
      %p66 = scmp.ne.s32.totalorder %s51, %s65
      %p67 = scmp.eq.s32.totalorder %s20, 0
      %p68 = por %p66, %p67
      %s70 = sadd.s32 %s69, 1
      %p73 = scmp.eq.s32.totalorder %s14, 1
      %p74 = scmp.ne.s32.totalorder %s69, %s71
      %p75 = scmp.eq.s32.totalorder %s14, 0
      %p76 = por %p74, %p75
      %p77 = scmp.ne.s32.totalorder %s69, %s71
      %p78 = scmp.eq.s32.totalorder %s19, 1
      %p79 = por %p77, %p78
      %p80 = scmp.ne.s32.totalorder %s71, %s72
      %p81 = scmp.eq.s32.totalorder %s19, 0
      %p82 = por %p80, %p81
      %p83 = scmp.ne.s32.totalorder %s71, %s72
      %p84 = scmp.eq.s32.totalorder %s20, 1
      %p85 = por %p83, %p84
      %p87 = scmp.ne.s32.totalorder %s72, %s86
      %p88 = scmp.eq.s32.totalorder %s20, 0
      %p89 = por %p87, %p88
      %s91 = sadd.s32 %s90, 1
      %p94 = scmp.eq.s32.totalorder %s14, 1
      %p95 = scmp.ne.s32.totalorder %s90, %s92
      %p96 = scmp.eq.s32.totalorder %s14, 0
      %p97 = por %p95, %p96
      %p98 = scmp.ne.s32.totalorder %s90, %s92
      %p99 = scmp.eq.s32.totalorder %s19, 1
      %p100 = por %p98, %p99
      %p101 = scmp.ne.s32.totalorder %s92, %s93
      %p102 = scmp.eq.s32.totalorder %s19, 0
      %p103 = por %p101, %p102
      %p104 = scmp.ne.s32.totalorder %s92, %s93
      %p105 = scmp.eq.s32.totalorder %s20, 1
      %p106 = por %p104, %p105
      %p108 = scmp.ne.s32.totalorder %s93, %s107
      %p109 = scmp.eq.s32.totalorder %s20, 0
      %p110 = por %p108, %p109
      %s112 = sadd.s32 %s111, 1
      %p115 = scmp.eq.s32.totalorder %s14, 1
      %p116 = scmp.ne.s32.totalorder %s111, %s113
      %p117 = scmp.eq.s32.totalorder %s14, 0
      %p118 = por %p116, %p117
      %p119 = scmp.ne.s32.totalorder %s111, %s113
      %p120 = scmp.eq.s32.totalorder %s19, 1
      %p121 = por %p119, %p120
      %p122 = scmp.ne.s32.totalorder %s113, %s114
      %p123 = scmp.eq.s32.totalorder %s19, 0
      %p124 = por %p122, %p123
      %p125 = scmp.ne.s32.totalorder %s113, %s114
      %p126 = scmp.eq.s32.totalorder %s20, 1
      %p127 = por %p125, %p126
      %p129 = scmp.ne.s32.totalorder %s114, %s128
      %p130 = scmp.eq.s32.totalorder %s20, 0
      %p131 = por %p129, %p130
      %s133 = sadd.s32 %s132, 1
      %p136 = scmp.eq.s32.totalorder %s14, 1
      %p137 = scmp.ne.s32.totalorder %s132, %s134
      %p138 = scmp.eq.s32.totalorder %s14, 0
      %p139 = por %p137, %p138
      %p140 = scmp.ne.s32.totalorder %s132, %s134
      %p141 = scmp.eq.s32.totalorder %s19, 1
      %p142 = por %p140, %p141
      %p143 = scmp.ne.s32.totalorder %s134, %s135
      %p144 = scmp.eq.s32.totalorder %s19, 0
      %p145 = por %p143, %p144
      %p146 = scmp.ne.s32.totalorder %s134, %s135
      %p147 = scmp.eq.s32.totalorder %s20, 1
      %p148 = por %p146, %p147
      %p150 = scmp.ne.s32.totalorder %s135, %s149
      %p151 = scmp.eq.s32.totalorder %s20, 0
      %p152 = por %p150, %p151
      %s153 = ssub.s32 %s14, %s21
      %p154 = scmp.eq.s32.totalorder %s153, 0
      %s156 = sadd.s32 %s155, 1
      %s157 = scalar_select %p154, %s155, %s156
      %p160 = pneg %p154
      %p161 = scmp.eq.s32.totalorder %s14, 1
      %p162 = por %p160, %p161
      %p163 = scmp.ne.s32.totalorder %s155, %s158
      %p164 = scmp.eq.s32.totalorder %s14, 0
      %p165 = por %p163, %p164
      %p166 = scmp.ne.s32.totalorder %s155, %s158
      %p167 = scmp.eq.s32.totalorder %s19, 1
      %p168 = por %p166, %p167
      %p169 = scmp.ne.s32.totalorder %s158, %s159
      %p170 = scmp.eq.s32.totalorder %s19, 0
      %p171 = por %p169, %p170
      %p172 = scmp.ne.s32.totalorder %s158, %s159
      %p173 = scmp.eq.s32.totalorder %s20, 1
      %p174 = por %p172, %p173
      %p176 = scmp.ne.s32.totalorder %s159, %s175
      %p177 = scmp.eq.s32.totalorder %s20, 0
      %p178 = por %p176, %p177
      %p179 = scmp.le.s32.totalorder 1, %s14
      %p180 = scmp.lt.s32.totalorder %s14, 3
      %p181 = pnand %p179, %p180
      %p182 = pneg %p181
      // Predicated region
      $region9: #{forward.1} parent=5 // pred_check
        _
      $region10: #{forward.1} parent=5 // pred_check_branch
        %184 = sbr.rel (%p181) target = $region12
      $region11: #{forward.1} parent=5 // pred_region
        %s185 = ssub.s32 %s14, 1
        // Predicated region
        $region13: #{forward.1} parent=11 // pred_check
          %p186 = pneg %p61
        $region14: #{forward.1} parent=11 // pred_check_branch
          %188 = sbr.rel (%p186) target = $region16
        $region15: #{forward.1} parent=11 // pred_region
          %s190 = ssub.s32 4096, 4096
          %191 = vsyncadd [#allocation3], %s190
          %s192 = sshll.u32 [#allocation2], 4
          %s193 = int_to_ptr.vmem [resolvable:$true] %s192
          %198 = dma.hbm_to_vmem [thread:$0]  %s1, 4096, %s193, [#allocation3], 128, 128, 8
        $region16: #{forward.1} parent=11 // pred_fallthru
          _
        // Predicated region
        $region17: #{forward.1} parent=11 // pred_check
          %p199 = pneg %p82
        $region18: #{forward.1} parent=11 // pred_check_branch
          %201 = sbr.rel (%p199) target = $region20
        $region19: #{forward.1} parent=11 // pred_region
          _
        $region20: #{forward.1} parent=11 // pred_fallthru
          _
        // Predicated region
        $region21: #{forward.1} parent=11 // pred_check
          %p202 = pneg %p103
        $region22: #{forward.1} parent=11 // pred_check_branch
          %204 = sbr.rel (%p202) target = $region24
        $region23: #{forward.1} parent=11 // pred_region
          %s206 = ssub.s32 3584, 3584
          %207 = vsyncadd [#allocation5], %s206
          %s208 = sshll.u32 [#allocation4], 4
          %s209 = int_to_ptr.vmem [resolvable:$true] %s208
          %214 = dma.hbm_to_vmem [thread:$0]  %s3, 3584, %s209, [#allocation5], 128, 128, 8
        $region24: #{forward.1} parent=11 // pred_fallthru
          _
        // Predicated region
        $region25: #{forward.1} parent=11 // pred_check
          %p215 = pneg %p124
        $region26: #{forward.1} parent=11 // pred_check_branch
          %217 = sbr.rel (%p215) target = $region28
        $region27: #{forward.1} parent=11 // pred_region
          %s219 = ssub.s32 5376, 5376
          %220 = vsyncadd [#allocation5], %s219
          %s221 = sshll.u32 [#allocation6], 4
          %s222 = int_to_ptr.vmem [resolvable:$true] %s221
          %227 = dma.hbm_to_vmem [thread:$0]  %s4, 5376, %s222, [#allocation5], 64, 64, 4
        $region28: #{forward.1} parent=11 // pred_fallthru
          _
        // Predicated region
        $region29: #{forward.1} parent=11 // pred_check
          %p228 = pneg %p145
        $region30: #{forward.1} parent=11 // pred_check_branch
          %230 = sbr.rel (%p228) target = $region32
        $region31: #{forward.1} parent=11 // pred_region
          _
        $region32: #{forward.1} parent=11 // pred_fallthru
          _
      $region12: #{forward.1} parent=5 // pred_fallthru
        _
      %p231 = scmp.lt.s32.totalorder %s14, 2
      // Predicated region
      $region33: #{forward.1} parent=5 // pred_check
        %p232 = pneg %p231
      $region34: #{forward.1} parent=5 // pred_check_branch
        %234 = sbr.rel (%p232) target = $region36
      $region35: #{forward.1} parent=5 // pred_region
        // Predicated region
        $region37: #{forward.1} parent=35 // pred_check
          %p235 = pneg %p34
        $region38: #{forward.1} parent=35 // pred_check_branch
          %237 = sbr.rel (%p235) target = $region40
        $region39: #{forward.1} parent=35 // pred_region
          %s238 = smul.u32 3, %s14
          %p239 = scmp.lt.s32.totalorder %s238, 5
          %s240 = scalar_select %p239, %s238, 5
          %s241 = smul.addr %s240, 4
          %s242 = scalar_lea.vmem %s0, %s241
          %s243 = smul.u32 3, %s14
        $region40: #{forward.1} parent=35 // pred_fallthru
          _
      $region36: #{forward.1} parent=5 // pred_fallthru
        _
      %p244 = scmp.le.s32.totalorder 1, %s14
      %p245 = scmp.lt.s32.totalorder %s14, 3
      %p246 = pnand %p244, %p245
      %p247 = pneg %p246
      // Predicated region
      $region41: #{forward.1} parent=5 // pred_check
        _
      $region42: #{forward.1} parent=5 // pred_check_branch
        %249 = sbr.rel (%p246) target = $region44
      $region43: #{forward.1} parent=5 // pred_region
        %s250 = ssub.s32 %s14, 1
        // Predicated region
        $region45: #{forward.1} parent=43 // pred_check
          %p251 = pneg %p61
        $region46: #{forward.1} parent=43 // pred_check_branch
          %253 = sbr.rel (%p251) target = $region48
        $region47: #{forward.1} parent=43 // pred_region
          %254 = dma.done [#allocation3], 4096
        $region48: #{forward.1} parent=43 // pred_fallthru
          _
        // Predicated region
        $region49: #{forward.1} parent=43 // pred_check
          %p255 = pneg %p103
        $region50: #{forward.1} parent=43 // pred_check_branch
          %257 = sbr.rel (%p255) target = $region52
        $region51: #{forward.1} parent=43 // pred_region
          %258 = dma.done [#allocation5], 3584
        $region52: #{forward.1} parent=43 // pred_fallthru
          _
        // Predicated region
        $region53: #{forward.1} parent=43 // pred_check
          %p259 = pneg %p124
        $region54: #{forward.1} parent=43 // pred_check_branch
          %261 = sbr.rel (%p259) target = $region56
        $region55: #{forward.1} parent=43 // pred_region
          %262 = dma.done [#allocation5], 5376
        $region56: #{forward.1} parent=43 // pred_fallthru
          _
        %s263 = smul.u32 3, %s19
        %p264 = scmp.lt.s32.totalorder %s263, 5
        %s265 = scalar_select %p264, %s263, 5
        %s266 = smul.addr %s265, 4
        %s267 = scalar_lea.vmem %s0, %s266
        %p268 = pneg %p40
        %p269 = pneg %p37
        %p270 = pneg %p61
        %p271 = pneg %p58
        %p272 = pneg %p82
        %p273 = pneg %p79
        %p274 = pneg %p103
        %p275 = pneg %p100
        %p276 = pneg %p124
        %p277 = pneg %p121
        %p278 = pneg %p145
        %p279 = pneg %p142
        %p280 = pneg %p171
        %p281 = pneg %p168
        %s282 = smul.u32 3, %s19
        %p283 = scmp.lt.s32.totalorder %s282, 5
        %s284 = scalar_select %p283, %s282, 5
        %s285 = smul.addr %s284, 8
        %s286 = scalar_lea.vmem %s6, %s285
        %s287 = smul.u32 3, %s19
        %p288 = scmp.lt.s32.totalorder %s287, 5
        %s289 = scalar_select %p288, %s287, 5
        %s290 = smul.addr %s289, 4
        %s291 = scalar_lea.vmem %s0, %s290
        %s292 = smul.u32 3, %s19
        %s293 = smul.u32 3, %s19
        %p294 = scmp.lt.s32.totalorder %s293, 5
        %s295 = scalar_select %p294, %s293, 5
        %s296 = smul.addr %s295, 8
        %s297 = scalar_lea.vmem %s6, %s296
        %s298 = smul.u32 3, %s19
        %v300 = vld [vmem:[%s2] sm:$0x77]
        %v301 = vld [vmem:[#allocation4] sm:$0xff]
        %v302 = vld [vmem:[#allocation4 + $0x8] sm:$0xff]
        %v303 = vld [vmem:[#allocation4 + $0x10] sm:$0xff]
        %v304 = vld [vmem:[#allocation4 + $0x18] sm:$0xff]
        %v305 = vld [vmem:[#allocation4 + $0x20] sm:$0xff]
        %v306 = vld [vmem:[#allocation4 + $0x28] sm:$0xff]
        %v307 = vld [vmem:[#allocation4 + $0x30] sm:$0xff]
        %v308 = vld [vmem:[#allocation4 + $0x38] sm:$0xff]
        %v309 = vld [vmem:[#allocation4 + $0x40] sm:$0xff]
        %v310 = vld [vmem:[#allocation4 + $0x48] sm:$0xff]
        %v311 = vld [vmem:[#allocation4 + $0x50] sm:$0xff]
        %v312 = vld [vmem:[#allocation4 + $0x58] sm:$0xff]
        %v313 = vld [vmem:[#allocation4 + $0x60] sm:$0xff]
        %v314 = vld [vmem:[#allocation4 + $0x68] sm:$0xff]
        %v315 = vld [vmem:[#allocation4 + $0x70] sm:$0xff]
        %v316 = vld [vmem:[#allocation4 + $0x78] sm:$0xff]
        %v317 = vld [vmem:[#allocation4 + $0x80] sm:$0xff]
        %v318 = vld [vmem:[#allocation4 + $0x88] sm:$0xff]
        %v319 = vld [vmem:[#allocation4 + $0x90] sm:$0xff]
        %v320 = vld [vmem:[#allocation4 + $0x98] sm:$0xff]
        %v321 = vld [vmem:[#allocation4 + $0xa0] sm:$0xff]
        %v322 = vld [vmem:[#allocation4 + $0xa8] sm:$0xff]
        %v323 = vld [vmem:[#allocation4 + $0xb0] sm:$0xff]
        %v324 = vld [vmem:[#allocation4 + $0xb8] sm:$0xff]
        %v325 = vld [vmem:[#allocation4 + $0xc0] sm:$0xff]
        %v326 = vld [vmem:[#allocation4 + $0xc8] sm:$0xff]
        %v327 = vld [vmem:[#allocation4 + $0xd0] sm:$0xff]
        %v328 = vld [vmem:[#allocation4 + $0xd8] sm:$0xff]
        %v329 = vld [vmem:[%s291] sm:$0xf]
        %v330 = vld [vmem:[%s291 + $0x4] sm:$0xf]
        %v331 = vld [vmem:[%s291 + $0x8] sm:$0xf]
        %v335 = vrot.slane %v329, 5
        %v336 = vrot.slane %v330, 5
        %v337 = vrot.slane %v331, 5
        %vm341 = vcmask 1042432
        %v342 = vsel %vm341, 0.0, %v335
        %v343 = vsel %vm341, 0.0, %v336
        %v344 = vsel %vm341, 0.0, %v337
        %vm345 = vcmask 1046528
        %v346 = vsel %vm345, %v342, 0.0
        %v347 = vsel %vm345, %v343, 0.0
        %v348 = vsel %vm345, %v344, 0.0
        %v352 = vrot.slane %v346, 1
        %v353 = vrot.slane %v347, 1
        %v354 = vrot.slane %v348, 1
        %355 = vrot.lane.b32.xlu0 %v352, 64
        %v356 = vpop.permute.xlu0 %355
        %357 = vrot.lane.b32.xlu0 %v353, 64
        %v358 = vpop.permute.xlu0 %357
        %359 = vrot.lane.b32.xlu0 %v354, 64
        %v360 = vpop.permute.xlu0 %359
        %vm365 = vcmask 1045504
        %v366 = vrot.slane %v346, 2
        %v367 = vrot.slane 0.0, 2
        %v368 = vsel %vm365, %v366, %v367
        %v369 = vrot.slane %v347, 2
        %v370 = vsel %vm365, %v369, %v367
        %v371 = vrot.slane %v348, 2
        %v372 = vsel %vm365, %v371, %v367
        %vm376 = vcmask 1044480
        %v377 = vrot.slane %v346, 3
        %v378 = vrot.slane 0.0, 3
        %v379 = vsel %vm376, %v377, %v378
        %v380 = vrot.slane %v347, 3
        %v381 = vsel %vm376, %v380, %v378
        %v382 = vrot.slane %v348, 3
        %v383 = vsel %vm376, %v382, %v378
        %384 = vrot.lane.b32.xlu0 %v379, 64
        %v385 = vpop.permute.xlu0 %384
        %386 = vrot.lane.b32.xlu0 %v381, 64
        %v387 = vpop.permute.xlu0 %386
        %388 = vrot.lane.b32.xlu0 %v383, 64
        %v389 = vpop.permute.xlu0 %388
        %vm393 = vcmask 523264
        %v394 = vsel %vm393, %v346, %v356
        %v395 = vsel %vm393, %v347, %v358
        %v396 = vsel %vm393, %v348, %v360
        %v397 = vsel %vm393, %v368, %v385
        %v398 = vsel %vm393, %v370, %v387
        %v399 = vsel %vm393, %v372, %v389
        %v406 = vcombine.low %v394, %v397
        %v407 = vcombine.high %v394, %v397
        %v409 = vunpack.c.l.s4 1966171168
        %v410 = vunpack.c.0.s8 %v409
        %v411 = vlaneseq
        %v412 = vshrl.u32 %v411, 7
        %v413 = vsub.s32 %v410, %v412
        %v414 = vrot.slane %v406, %v413
        %v416 = vunpack.c.l.s4 1966171168
        %v417 = vunpack.c.0.s8 %v416
        %v418 = vlaneseq
        %v419 = vshrl.u32 %v418, 7
        %v420 = vsub.s32 %v417, %v419
        %v421 = vrot.slane %v407, %v420
        %v422 = vcombine.high %v414, %v414
        %v423 = vcombine.high %v421, %v421
        %v425 = vunpack.c.l.s4 1966171168
        %v426 = vunpack.c.0.s8 %v425
        %v427 = vlaneseq
        %v428 = vshrl.u32 %v427, 7
        %v429 = vsub.s32 %v426, %v428
        %v430 = vrot.slane %v414, %v429
        %v432 = vunpack.c.l.s4 1966171168
        %v433 = vunpack.c.0.s8 %v432
        %v434 = vlaneseq
        %v435 = vshrl.u32 %v434, 7
        %v436 = vsub.s32 %v433, %v435
        %v437 = vrot.slane %v421, %v436
        %v439 = vunpack.c.l.s4 1966171168
        %v440 = vunpack.c.0.s8 %v439
        %v441 = vlaneseq
        %v442 = vshrl.u32 %v441, 7
        %v443 = vsub.s32 %v440, %v442
        %v444 = vrot.slane %v422, %v443
        %v446 = vunpack.c.l.s4 1966171168
        %v447 = vunpack.c.0.s8 %v446
        %v448 = vlaneseq
        %v449 = vshrl.u32 %v448, 7
        %v450 = vsub.s32 %v447, %v449
        %v451 = vrot.slane %v423, %v450
        %v452 = vcombine.high %v430, %v430
        %v453 = vcombine.high %v437, %v437
        %v454 = vcombine.high %v444, %v444
        %v455 = vcombine.low %v395, %v398
        %v456 = vcombine.high %v395, %v398
        %v458 = vunpack.c.l.s4 1966171168
        %v459 = vunpack.c.0.s8 %v458
        %v460 = vlaneseq
        %v461 = vshrl.u32 %v460, 7
        %v462 = vsub.s32 %v459, %v461
        %v463 = vrot.slane %v455, %v462
        %v465 = vunpack.c.l.s4 1966171168
        %v466 = vunpack.c.0.s8 %v465
        %v467 = vlaneseq
        %v468 = vshrl.u32 %v467, 7
        %v469 = vsub.s32 %v466, %v468
        %v470 = vrot.slane %v456, %v469
        %v471 = vcombine.high %v463, %v463
        %v472 = vcombine.high %v470, %v470
        %v474 = vunpack.c.l.s4 1966171168
        %v475 = vunpack.c.0.s8 %v474
        %v476 = vlaneseq
        %v477 = vshrl.u32 %v476, 7
        %v478 = vsub.s32 %v475, %v477
        %v479 = vrot.slane %v463, %v478
        %v481 = vunpack.c.l.s4 1966171168
        %v482 = vunpack.c.0.s8 %v481
        %v483 = vlaneseq
        %v484 = vshrl.u32 %v483, 7
        %v485 = vsub.s32 %v482, %v484
        %v486 = vrot.slane %v470, %v485
        %v488 = vunpack.c.l.s4 1966171168
        %v489 = vunpack.c.0.s8 %v488
        %v490 = vlaneseq
        %v491 = vshrl.u32 %v490, 7
        %v492 = vsub.s32 %v489, %v491
        %v493 = vrot.slane %v471, %v492
        %v495 = vunpack.c.l.s4 1966171168
        %v496 = vunpack.c.0.s8 %v495
        %v497 = vlaneseq
        %v498 = vshrl.u32 %v497, 7
        %v499 = vsub.s32 %v496, %v498
        %v500 = vrot.slane %v472, %v499
        %v501 = vcombine.high %v479, %v479
        %v502 = vcombine.high %v486, %v486
        %v503 = vcombine.high %v493, %v493
        %v504 = vcombine.low %v396, %v399
        %v505 = vcombine.high %v396, %v399
        %v507 = vunpack.c.l.s4 1966171168
        %v508 = vunpack.c.0.s8 %v507
        %v509 = vlaneseq
        %v510 = vshrl.u32 %v509, 7
        %v511 = vsub.s32 %v508, %v510
        %v512 = vrot.slane %v504, %v511
        %v514 = vunpack.c.l.s4 1966171168
        %v515 = vunpack.c.0.s8 %v514
        %v516 = vlaneseq
        %v517 = vshrl.u32 %v516, 7
        %v518 = vsub.s32 %v515, %v517
        %v519 = vrot.slane %v505, %v518
        %v520 = vcombine.high %v512, %v512
        %v521 = vcombine.high %v519, %v519
        %v523 = vunpack.c.l.s4 1966171168
        %v524 = vunpack.c.0.s8 %v523
        %v525 = vlaneseq
        %v526 = vshrl.u32 %v525, 7
        %v527 = vsub.s32 %v524, %v526
        %v528 = vrot.slane %v512, %v527
        %v530 = vunpack.c.l.s4 1966171168
        %v531 = vunpack.c.0.s8 %v530
        %v532 = vlaneseq
        %v533 = vshrl.u32 %v532, 7
        %v534 = vsub.s32 %v531, %v533
        %v535 = vrot.slane %v519, %v534
        %v537 = vunpack.c.l.s4 1966171168
        %v538 = vunpack.c.0.s8 %v537
        %v539 = vlaneseq
        %v540 = vshrl.u32 %v539, 7
        %v541 = vsub.s32 %v538, %v540
        %v542 = vrot.slane %v520, %v541
        %v544 = vunpack.c.l.s4 1966171168
        %v545 = vunpack.c.0.s8 %v544
        %v546 = vlaneseq
        %v547 = vshrl.u32 %v546, 7
        %v548 = vsub.s32 %v545, %v547
        %v549 = vrot.slane %v521, %v548
        %v550 = vcombine.high %v528, %v528
        %v551 = vcombine.high %v535, %v535
        %v552 = vcombine.high %v542, %v542
        %v553 = vcombine.low %v430, %v444
        %v554 = vcombine.low %v452, %v454
        %v555 = vcombine.low %v437, %v451
        %v556 = vcombine.low %v453, %v479
        %v558 = vunpack.c.l.s4 1966171168
        %v559 = vunpack.c.0.s8 %v558
        %v560 = vlaneseq
        %v561 = vshrl.u32 %v560, 7
        %v562 = vsub.s32 %v559, %v561
        %v563 = vrot.slane %v553, %v562
        %v565 = vunpack.c.l.s4 1966171168
        %v566 = vunpack.c.0.s8 %v565
        %v567 = vlaneseq
        %v568 = vshrl.u32 %v567, 7
        %v569 = vsub.s32 %v566, %v568
        %v570 = vrot.slane %v554, %v569
        %v572 = vunpack.c.l.s4 1966171168
        %v573 = vunpack.c.0.s8 %v572
        %v574 = vlaneseq
        %v575 = vshrl.u32 %v574, 7
        %v576 = vsub.s32 %v573, %v575
        %v577 = vrot.slane %v555, %v576
        %v579 = vunpack.c.l.s4 1966171168
        %v580 = vunpack.c.0.s8 %v579
        %v581 = vlaneseq
        %v582 = vshrl.u32 %v581, 7
        %v583 = vsub.s32 %v580, %v582
        %v584 = vrot.slane %v556, %v583
        %v585 = vcombine.low %v563, %v570
        %v586 = vcombine.high %v563, %v570
        %v587 = vcombine.low %v577, %v584
        %v588 = vcombine.high %v577, %v584
        %v590 = vunpack.c.l.s4 1966171168
        %v591 = vunpack.c.0.s8 %v590
        %v592 = vlaneseq
        %v593 = vshrl.u32 %v592, 7
        %v594 = vsub.s32 %v591, %v593
        %v595 = vrot.slane %v585, %v594
        %v597 = vunpack.c.l.s4 1966171168
        %v598 = vunpack.c.0.s8 %v597
        %v599 = vlaneseq
        %v600 = vshrl.u32 %v599, 7
        %v601 = vsub.s32 %v598, %v600
        %v602 = vrot.slane %v586, %v601
        %v604 = vunpack.c.l.s4 1966171168
        %v605 = vunpack.c.0.s8 %v604
        %v606 = vlaneseq
        %v607 = vshrl.u32 %v606, 7
        %v608 = vsub.s32 %v605, %v607
        %v609 = vrot.slane %v587, %v608
        %v611 = vunpack.c.l.s4 1966171168
        %v612 = vunpack.c.0.s8 %v611
        %v613 = vlaneseq
        %v614 = vshrl.u32 %v613, 7
        %v615 = vsub.s32 %v612, %v614
        %v616 = vrot.slane %v588, %v615
        %v617 = vcombine.low %v595, %v609
        %v618 = vcombine.low %v602, %v616
        %v619 = vcombine.low %v493, %v501
        %v620 = vcombine.low %v503, %v486
        %v621 = vcombine.low %v500, %v502
        %v622 = vcombine.low %v528, %v542
        %v624 = vunpack.c.l.s4 1966171168
        %v625 = vunpack.c.0.s8 %v624
        %v626 = vlaneseq
        %v627 = vshrl.u32 %v626, 7
        %v628 = vsub.s32 %v625, %v627
        %v629 = vrot.slane %v619, %v628
        %v631 = vunpack.c.l.s4 1966171168
        %v632 = vunpack.c.0.s8 %v631
        %v633 = vlaneseq
        %v634 = vshrl.u32 %v633, 7
        %v635 = vsub.s32 %v632, %v634
        %v636 = vrot.slane %v620, %v635
        %v638 = vunpack.c.l.s4 1966171168
        %v639 = vunpack.c.0.s8 %v638
        %v640 = vlaneseq
        %v641 = vshrl.u32 %v640, 7
        %v642 = vsub.s32 %v639, %v641
        %v643 = vrot.slane %v621, %v642
        %v645 = vunpack.c.l.s4 1966171168
        %v646 = vunpack.c.0.s8 %v645
        %v647 = vlaneseq
        %v648 = vshrl.u32 %v647, 7
        %v649 = vsub.s32 %v646, %v648
        %v650 = vrot.slane %v622, %v649
        %v651 = vcombine.low %v629, %v636
        %v652 = vcombine.high %v629, %v636
        %v653 = vcombine.low %v643, %v650
        %v654 = vcombine.high %v643, %v650
        %v656 = vunpack.c.l.s4 1966171168
        %v657 = vunpack.c.0.s8 %v656
        %v658 = vlaneseq
        %v659 = vshrl.u32 %v658, 7
        %v660 = vsub.s32 %v657, %v659
        %v661 = vrot.slane %v651, %v660
        %v663 = vunpack.c.l.s4 1966171168
        %v664 = vunpack.c.0.s8 %v663
        %v665 = vlaneseq
        %v666 = vshrl.u32 %v665, 7
        %v667 = vsub.s32 %v664, %v666
        %v668 = vrot.slane %v652, %v667
        %v670 = vunpack.c.l.s4 1966171168
        %v671 = vunpack.c.0.s8 %v670
        %v672 = vlaneseq
        %v673 = vshrl.u32 %v672, 7
        %v674 = vsub.s32 %v671, %v673
        %v675 = vrot.slane %v653, %v674
        %v677 = vunpack.c.l.s4 1966171168
        %v678 = vunpack.c.0.s8 %v677
        %v679 = vlaneseq
        %v680 = vshrl.u32 %v679, 7
        %v681 = vsub.s32 %v678, %v680
        %v682 = vrot.slane %v654, %v681
        %v683 = vcombine.low %v661, %v675
        %v684 = vcombine.low %v668, %v682
        %v685 = vcombine.low %v550, %v552
        %v686 = vcombine.low %v535, %v549
        %v688 = vunpack.c.l.s4 1966171168
        %v689 = vunpack.c.0.s8 %v688
        %v690 = vlaneseq
        %v691 = vshrl.u32 %v690, 7
        %v692 = vsub.s32 %v689, %v691
        %v693 = vrot.slane %v685, %v692
        %v695 = vunpack.c.l.s4 1966171168
        %v696 = vunpack.c.0.s8 %v695
        %v697 = vlaneseq
        %v698 = vshrl.u32 %v697, 7
        %v699 = vsub.s32 %v696, %v698
        %v700 = vrot.slane %v686, %v699
        %v702 = vunpack.c.l.s4 1966171168
        %v703 = vunpack.c.0.s8 %v702
        %v704 = vlaneseq
        %v705 = vshrl.u32 %v704, 7
        %v706 = vsub.s32 %v703, %v705
        %v707 = vrot.slane %v551, %v706
        %v708 = vcombine.low %v693, %v700
        %v709 = vcombine.high %v693, %v700
        %v710 = vcombine.high %v707, %v707
        %v712 = vunpack.c.l.s4 1966171168
        %v713 = vunpack.c.0.s8 %v712
        %v714 = vlaneseq
        %v715 = vshrl.u32 %v714, 7
        %v716 = vsub.s32 %v713, %v715
        %v717 = vrot.slane %v708, %v716
        %v719 = vunpack.c.l.s4 1966171168
        %v720 = vunpack.c.0.s8 %v719
        %v721 = vlaneseq
        %v722 = vshrl.u32 %v721, 7
        %v723 = vsub.s32 %v720, %v722
        %v724 = vrot.slane %v709, %v723
        %v726 = vunpack.c.l.s4 1966171168
        %v727 = vunpack.c.0.s8 %v726
        %v728 = vlaneseq
        %v729 = vshrl.u32 %v728, 7
        %v730 = vsub.s32 %v727, %v729
        %v731 = vrot.slane %v707, %v730
        %v733 = vunpack.c.l.s4 1966171168
        %v734 = vunpack.c.0.s8 %v733
        %v735 = vlaneseq
        %v736 = vshrl.u32 %v735, 7
        %v737 = vsub.s32 %v734, %v736
        %v738 = vrot.slane %v710, %v737
        %v739 = vcombine.low %v717, %v731
        %v740 = vcombine.low %v724, %v738
        %v747 = vpack.c.bf16 %v683, %v617
        %v748 = vpack.c.bf16 %v684, %v618
        %v749 = vpack.c.bf16 %v739, %v739
        %v750 = vpack.c.bf16 %v740, %v740
        %v751 = vld [vmem:[#allocation2] sm:$0xff]
        %v752 = vld [vmem:[#allocation2 + $0x8] sm:$0xff]
        %v753 = vld [vmem:[#allocation2 + $0x10] sm:$0xff]
        %v754 = vld [vmem:[#allocation2 + $0x18] sm:$0xff]
        %v755 = vld [vmem:[#allocation2 + $0x20] sm:$0xff]
        %v756 = vld [vmem:[#allocation2 + $0x28] sm:$0xff]
        %v757 = vld [vmem:[#allocation2 + $0x30] sm:$0xff]
        %v758 = vld [vmem:[#allocation2 + $0x38] sm:$0xff]
        %v759 = vld [vmem:[#allocation2 + $0x40] sm:$0xff]
        %v760 = vld [vmem:[#allocation2 + $0x48] sm:$0xff]
        %v761 = vld [vmem:[#allocation2 + $0x50] sm:$0xff]
        %v762 = vld [vmem:[#allocation2 + $0x58] sm:$0xff]
        %v763 = vld [vmem:[#allocation2 + $0x60] sm:$0xff]
        %v764 = vld [vmem:[#allocation2 + $0x68] sm:$0xff]
        %v765 = vld [vmem:[#allocation2 + $0x70] sm:$0xff]
        %v766 = vld [vmem:[#allocation2 + $0x78] sm:$0xff]
        %v767 = vld [vmem:[#allocation2 + $0x80] sm:$0xff]
        %v768 = vld [vmem:[#allocation2 + $0x88] sm:$0xff]
        %v769 = vld [vmem:[#allocation2 + $0x90] sm:$0xff]
        %v770 = vld [vmem:[#allocation2 + $0x98] sm:$0xff]
        %v771 = vld [vmem:[#allocation2 + $0xa0] sm:$0xff]
        %v772 = vld [vmem:[#allocation2 + $0xa8] sm:$0xff]
        %v773 = vld [vmem:[#allocation2 + $0xb0] sm:$0xff]
        %v774 = vld [vmem:[#allocation2 + $0xb8] sm:$0xff]
        %v775 = vld [vmem:[#allocation2 + $0xc0] sm:$0xff]
        %v776 = vld [vmem:[#allocation2 + $0xc8] sm:$0xff]
        %v777 = vld [vmem:[#allocation2 + $0xd0] sm:$0xff]
        %v778 = vld [vmem:[#allocation2 + $0xd8] sm:$0xff]
        %v779 = vld [vmem:[#allocation2 + $0xe0] sm:$0xff]
        %v780 = vld [vmem:[#allocation2 + $0xe8] sm:$0xff]
        %v781 = vld [vmem:[#allocation2 + $0xf0] sm:$0xff]
        %v782 = vld [vmem:[#allocation2 + $0xf8] sm:$0xff]
        %v784 = vlaneseq
        %v785 = vshrl.u32 %v784, 7
        %v786 = vsub.s32 0, %v785
        %v787 = vrot.slane %v300, %v786
        %v788 = vlaneseq
        %v789 = vshrl.u32 %v788, 7
        %v790 = vsub.s32 4, %v789
        %v791 = vrot.slane %v300, %v790
        %v794 = vlaneseq
        %v795 = vshrl.u32 %v794, 7
        %v796 = vsub.s32 0, %v795
        %v797 = vrot.slane %v787, %v796
        %v798 = vlaneseq
        %v799 = vshrl.u32 %v798, 7
        %v800 = vsub.s32 0, %v799
        %v801 = vrot.slane %v791, %v800
        %v834 = vunpack.c.l.b16 %v751
        %v835 = vunpack.c.h.b16 %v751
        %v836 = vunpack.c.l.b16 %v752
        %v837 = vunpack.c.h.b16 %v752
        %v838 = vunpack.c.l.b16 %v753
        %v839 = vunpack.c.h.b16 %v753
        %v840 = vunpack.c.l.b16 %v754
        %v841 = vunpack.c.h.b16 %v754
        %v842 = vunpack.c.l.b16 %v755
        %v843 = vunpack.c.h.b16 %v755
        %v844 = vunpack.c.l.b16 %v756
        %v845 = vunpack.c.h.b16 %v756
        %v846 = vunpack.c.l.b16 %v757
        %v847 = vunpack.c.h.b16 %v757
        %v848 = vunpack.c.l.b16 %v758
        %v849 = vunpack.c.h.b16 %v758
        %v850 = vunpack.c.l.b16 %v759
        %v851 = vunpack.c.h.b16 %v759
        %v852 = vunpack.c.l.b16 %v760
        %v853 = vunpack.c.h.b16 %v760
        %v854 = vunpack.c.l.b16 %v761
        %v855 = vunpack.c.h.b16 %v761
        %v856 = vunpack.c.l.b16 %v762
        %v857 = vunpack.c.h.b16 %v762
        %v858 = vunpack.c.l.b16 %v763
        %v859 = vunpack.c.h.b16 %v763
        %v860 = vunpack.c.l.b16 %v764
        %v861 = vunpack.c.h.b16 %v764
        %v862 = vunpack.c.l.b16 %v765
        %v863 = vunpack.c.h.b16 %v765
        %v864 = vunpack.c.l.b16 %v766
        %v865 = vunpack.c.h.b16 %v766
        %v866 = vunpack.c.l.b16 %v767
        %v867 = vunpack.c.h.b16 %v767
        %v868 = vunpack.c.l.b16 %v768
        %v869 = vunpack.c.h.b16 %v768
        %v870 = vunpack.c.l.b16 %v769
        %v871 = vunpack.c.h.b16 %v769
        %v872 = vunpack.c.l.b16 %v770
        %v873 = vunpack.c.h.b16 %v770
        %v874 = vunpack.c.l.b16 %v771
        %v875 = vunpack.c.h.b16 %v771
        %v876 = vunpack.c.l.b16 %v772
        %v877 = vunpack.c.h.b16 %v772
        %v878 = vunpack.c.l.b16 %v773
        %v879 = vunpack.c.h.b16 %v773
        %v880 = vunpack.c.l.b16 %v774
        %v881 = vunpack.c.h.b16 %v774
        %v882 = vunpack.c.l.b16 %v775
        %v883 = vunpack.c.h.b16 %v775
        %v884 = vunpack.c.l.b16 %v776
        %v885 = vunpack.c.h.b16 %v776
        %v886 = vunpack.c.l.b16 %v777
        %v887 = vunpack.c.h.b16 %v777
        %v888 = vunpack.c.l.b16 %v778
        %v889 = vunpack.c.h.b16 %v778
        %v890 = vunpack.c.l.b16 %v779
        %v891 = vunpack.c.h.b16 %v779
        %v892 = vunpack.c.l.b16 %v780
        %v893 = vunpack.c.h.b16 %v780
        %v894 = vunpack.c.l.b16 %v781
        %v895 = vunpack.c.h.b16 %v781
        %v896 = vunpack.c.l.b16 %v782
        %v897 = vunpack.c.h.b16 %v782
        %v898 = vpack.c.b16 %v836, %v834
        %v899 = vpack.c.b16 %v837, %v835
        %v900 = vpack.c.b16 %v840, %v838
        %v901 = vpack.c.b16 %v841, %v839
        %v902 = vpack.c.b16 %v844, %v842
        %v903 = vpack.c.b16 %v845, %v843
        %v904 = vpack.c.b16 %v848, %v846
        %v905 = vpack.c.b16 %v849, %v847
        %v906 = vpack.c.b16 %v852, %v850
        %v907 = vpack.c.b16 %v853, %v851
        %v908 = vpack.c.b16 %v856, %v854
        %v909 = vpack.c.b16 %v857, %v855
        %v910 = vpack.c.b16 %v860, %v858
        %v911 = vpack.c.b16 %v861, %v859
        %v912 = vpack.c.b16 %v864, %v862
        %v913 = vpack.c.b16 %v865, %v863
        %v914 = vpack.c.b16 %v868, %v866
        %v915 = vpack.c.b16 %v869, %v867
        %v916 = vpack.c.b16 %v872, %v870
        %v917 = vpack.c.b16 %v873, %v871
        %v918 = vpack.c.b16 %v876, %v874
        %v919 = vpack.c.b16 %v877, %v875
        %v920 = vpack.c.b16 %v880, %v878
        %v921 = vpack.c.b16 %v881, %v879
        %v922 = vpack.c.b16 %v884, %v882
        %v923 = vpack.c.b16 %v885, %v883
        %v924 = vpack.c.b16 %v888, %v886
        %v925 = vpack.c.b16 %v889, %v887
        %v926 = vpack.c.b16 %v892, %v890
        %v927 = vpack.c.b16 %v893, %v891
        %v928 = vpack.c.b16 %v896, %v894
        %v929 = vpack.c.b16 %v897, %v895
        %962 = vmatprep.subr.bf16.mxu0 %v913
        %963 = vmatpush1.bf16.msra.mxu0 %v912
        %964 = vmatprep.subr.bf16.mxu0 %v911
        %965 = vmatpush1.bf16.msra.mxu0 %v910
        %966 = vmatprep.subr.bf16.mxu0 %v909
        %967 = vmatpush1.bf16.msra.mxu0 %v908
        %968 = vmatprep.subr.bf16.mxu0 %v907
        %969 = vmatpush1.bf16.msra.mxu0 %v906
        %970 = vmatprep.subr.bf16.mxu0 %v905
        %971 = vmatpush1.bf16.msra.mxu0 %v904
        %972 = vmatprep.subr.bf16.mxu0 %v903
        %973 = vmatpush1.bf16.msra.mxu0 %v902
        %974 = vmatprep.subr.bf16.mxu0 %v901
        %975 = vmatpush1.bf16.msra.mxu0 %v900
        %976 = vmatprep.subr.bf16.mxu0 %v899
        %977 = vmatpush1.bf16.msra.mxu0 %v898
        %978 = vmatprep.subr.bf16.mxu0 %v929
        %979 = vmatpush2.bf16.msra.mxu0 %v928
        %980 = vmatprep.subr.bf16.mxu0 %v927
        %981 = vmatpush2.bf16.msra.mxu0 %v926
        %982 = vmatprep.subr.bf16.mxu0 %v925
        %983 = vmatpush2.bf16.msra.mxu0 %v924
        %984 = vmatprep.subr.bf16.mxu0 %v923
        %985 = vmatpush2.bf16.msra.mxu0 %v922
        %986 = vmatprep.subr.bf16.mxu0 %v921
        %987 = vmatpush2.bf16.msra.mxu0 %v920
        %988 = vmatprep.subr.bf16.mxu0 %v919
        %989 = vmatpush2.bf16.msra.mxu0 %v918
        %990 = vmatprep.subr.bf16.mxu0 %v917
        %991 = vmatpush2.bf16.msra.mxu0 %v916
        %992 = vmatprep.subr.bf16.mxu0 %v915
        %993 = vmatpush2.bf16.msra.mxu0 %v914
        %994 = vmatprep.mubr.bf16.mxu0 %v748
        %995 = vmatmul.mubr.bf16.gmra.mxu0 %v747
        %v996 = vpop.f32.mrf.mxu0
        %v997 = vadd.f32 %v797, %v996
        %v998 = vpop.f32.mrf.mxu0
        %v999 = vadd.f32 %v801, %v998
        %v1000 = vpop.f32.mrf.mxu0
        %v1001 = vadd.f32 %v797, %v1000
        %v1002 = vpop.f32.mrf.mxu0
        %v1003 = vadd.f32 %v801, %v1002
        %1004 = vmatprep.mubr.bf16.mxu0 %v750
        %1005 = vmatmul.mubr.bf16.gmra.mxu0 %v749
        %v1006 = vpop.f32.mrf.mxu0
        %v1007 = vadd.f32 %v797, %v1006
        %v1008 = vpop.f32.mrf.mxu0
        %v1009 = vadd.f32 %v801, %v1008
        %v1010 = vpop.f32.mrf.mxu0
        %v1011 = vpop.f32.mrf.mxu0
        %1012 = vdwg.mxu0
        %v1019 = vcombine.low %v997, %v999
        %v1020 = vcombine.high %v997, %v999
        %v1022 = vunpack.c.l.s4 1966171168
        %v1023 = vunpack.c.0.s8 %v1022
        %v1024 = vlaneseq
        %v1025 = vshrl.u32 %v1024, 7
        %v1026 = vsub.s32 %v1023, %v1025
        %v1027 = vrot.slane %v1019, %v1026
        %v1029 = vunpack.c.l.s4 1966171168
        %v1030 = vunpack.c.0.s8 %v1029
        %v1031 = vlaneseq
        %v1032 = vshrl.u32 %v1031, 7
        %v1033 = vsub.s32 %v1030, %v1032
        %v1034 = vrot.slane %v1020, %v1033
        %v1035 = vcombine.high %v1027, %v1027
        %v1036 = vcombine.high %v1034, %v1034
        %v1038 = vunpack.c.l.s4 1966171168
        %v1039 = vunpack.c.0.s8 %v1038
        %v1040 = vlaneseq
        %v1041 = vshrl.u32 %v1040, 7
        %v1042 = vsub.s32 %v1039, %v1041
        %v1043 = vrot.slane %v1027, %v1042
        %v1045 = vunpack.c.l.s4 1966171168
        %v1046 = vunpack.c.0.s8 %v1045
        %v1047 = vlaneseq
        %v1048 = vshrl.u32 %v1047, 7
        %v1049 = vsub.s32 %v1046, %v1048
        %v1050 = vrot.slane %v1034, %v1049
        %v1052 = vunpack.c.l.s4 1966171168
        %v1053 = vunpack.c.0.s8 %v1052
        %v1054 = vlaneseq
        %v1055 = vshrl.u32 %v1054, 7
        %v1056 = vsub.s32 %v1053, %v1055
        %v1057 = vrot.slane %v1035, %v1056
        %v1059 = vunpack.c.l.s4 1966171168
        %v1060 = vunpack.c.0.s8 %v1059
        %v1061 = vlaneseq
        %v1062 = vshrl.u32 %v1061, 7
        %v1063 = vsub.s32 %v1060, %v1062
        %v1064 = vrot.slane %v1036, %v1063
        %v1065 = vcombine.high %v1043, %v1043
        %v1066 = vcombine.high %v1050, %v1050
        %v1067 = vcombine.high %v1057, %v1057
        %v1068 = vcombine.high %v1064, %v1064
        %v1069 = vcombine.low %v1001, %v1003
        %v1070 = vcombine.high %v1001, %v1003
        %v1072 = vunpack.c.l.s4 1966171168
        %v1073 = vunpack.c.0.s8 %v1072
        %v1074 = vlaneseq
        %v1075 = vshrl.u32 %v1074, 7
        %v1076 = vsub.s32 %v1073, %v1075
        %v1077 = vrot.slane %v1069, %v1076
        %v1079 = vunpack.c.l.s4 1966171168
        %v1080 = vunpack.c.0.s8 %v1079
        %v1081 = vlaneseq
        %v1082 = vshrl.u32 %v1081, 7
        %v1083 = vsub.s32 %v1080, %v1082
        %v1084 = vrot.slane %v1070, %v1083
        %v1085 = vcombine.high %v1077, %v1077
        %v1086 = vcombine.high %v1084, %v1084
        %v1088 = vunpack.c.l.s4 1966171168
        %v1089 = vunpack.c.0.s8 %v1088
        %v1090 = vlaneseq
        %v1091 = vshrl.u32 %v1090, 7
        %v1092 = vsub.s32 %v1089, %v1091
        %v1093 = vrot.slane %v1077, %v1092
        %v1095 = vunpack.c.l.s4 1966171168
        %v1096 = vunpack.c.0.s8 %v1095
        %v1097 = vlaneseq
        %v1098 = vshrl.u32 %v1097, 7
        %v1099 = vsub.s32 %v1096, %v1098
        %v1100 = vrot.slane %v1084, %v1099
        %v1102 = vunpack.c.l.s4 1966171168
        %v1103 = vunpack.c.0.s8 %v1102
        %v1104 = vlaneseq
        %v1105 = vshrl.u32 %v1104, 7
        %v1106 = vsub.s32 %v1103, %v1105
        %v1107 = vrot.slane %v1085, %v1106
        %v1109 = vunpack.c.l.s4 1966171168
        %v1110 = vunpack.c.0.s8 %v1109
        %v1111 = vlaneseq
        %v1112 = vshrl.u32 %v1111, 7
        %v1113 = vsub.s32 %v1110, %v1112
        %v1114 = vrot.slane %v1086, %v1113
        %v1115 = vcombine.high %v1093, %v1093
        %v1116 = vcombine.high %v1100, %v1100
        %v1117 = vcombine.high %v1107, %v1107
        %v1118 = vcombine.high %v1114, %v1114
        %v1119 = vcombine.low %v1007, %v1009
        %v1120 = vcombine.high %v1007, %v1009
        %v1122 = vunpack.c.l.s4 1966171168
        %v1123 = vunpack.c.0.s8 %v1122
        %v1124 = vlaneseq
        %v1125 = vshrl.u32 %v1124, 7
        %v1126 = vsub.s32 %v1123, %v1125
        %v1127 = vrot.slane %v1119, %v1126
        %v1129 = vunpack.c.l.s4 1966171168
        %v1130 = vunpack.c.0.s8 %v1129
        %v1131 = vlaneseq
        %v1132 = vshrl.u32 %v1131, 7
        %v1133 = vsub.s32 %v1130, %v1132
        %v1134 = vrot.slane %v1120, %v1133
        %v1135 = vcombine.high %v1127, %v1127
        %v1137 = vunpack.c.l.s4 1966171168
        %v1138 = vunpack.c.0.s8 %v1137
        %v1139 = vlaneseq
        %v1140 = vshrl.u32 %v1139, 7
        %v1141 = vsub.s32 %v1138, %v1140
        %v1142 = vrot.slane %v1127, %v1141
        %v1144 = vunpack.c.l.s4 1966171168
        %v1145 = vunpack.c.0.s8 %v1144
        %v1146 = vlaneseq
        %v1147 = vshrl.u32 %v1146, 7
        %v1148 = vsub.s32 %v1145, %v1147
        %v1149 = vrot.slane %v1134, %v1148
        %v1151 = vunpack.c.l.s4 1966171168
        %v1152 = vunpack.c.0.s8 %v1151
        %v1153 = vlaneseq
        %v1154 = vshrl.u32 %v1153, 7
        %v1155 = vsub.s32 %v1152, %v1154
        %v1156 = vrot.slane %v1135, %v1155
        %v1157 = vcombine.high %v1142, %v1142
        %v1158 = vcombine.high %v1156, %v1156
        %v1180 = vcombine.low %v1043, %v1057
        %v1181 = vcombine.low %v1065, %v1067
        %v1182 = vcombine.low %v1050, %v1064
        %v1184 = vunpack.c.l.s4 1966171168
        %v1185 = vunpack.c.0.s8 %v1184
        %v1186 = vlaneseq
        %v1187 = vshrl.u32 %v1186, 7
        %v1188 = vsub.s32 %v1185, %v1187
        %v1189 = vrot.slane %v1180, %v1188
        %v1191 = vunpack.c.l.s4 1966171168
        %v1192 = vunpack.c.0.s8 %v1191
        %v1193 = vlaneseq
        %v1194 = vshrl.u32 %v1193, 7
        %v1195 = vsub.s32 %v1192, %v1194
        %v1196 = vrot.slane %v1181, %v1195
        %v1198 = vunpack.c.l.s4 1966171168
        %v1199 = vunpack.c.0.s8 %v1198
        %v1200 = vlaneseq
        %v1201 = vshrl.u32 %v1200, 7
        %v1202 = vsub.s32 %v1199, %v1201
        %v1203 = vrot.slane %v1182, %v1202
        %v1205 = vunpack.c.l.s4 1966171168
        %v1206 = vunpack.c.0.s8 %v1205
        %v1207 = vlaneseq
        %v1208 = vshrl.u32 %v1207, 7
        %v1209 = vsub.s32 %v1206, %v1208
        %v1210 = vrot.slane %v1066, %v1209
        %v1211 = vcombine.low %v1189, %v1196
        %v1212 = vcombine.high %v1189, %v1196
        %v1213 = vcombine.low %v1203, %v1210
        %v1214 = vcombine.high %v1203, %v1210
        %v1216 = vunpack.c.l.s4 1966171168
        %v1217 = vunpack.c.0.s8 %v1216
        %v1218 = vlaneseq
        %v1219 = vshrl.u32 %v1218, 7
        %v1220 = vsub.s32 %v1217, %v1219
        %v1221 = vrot.slane %v1211, %v1220
        %v1223 = vunpack.c.l.s4 1966171168
        %v1224 = vunpack.c.0.s8 %v1223
        %v1225 = vlaneseq
        %v1226 = vshrl.u32 %v1225, 7
        %v1227 = vsub.s32 %v1224, %v1226
        %v1228 = vrot.slane %v1212, %v1227
        %v1230 = vunpack.c.l.s4 1966171168
        %v1231 = vunpack.c.0.s8 %v1230
        %v1232 = vlaneseq
        %v1233 = vshrl.u32 %v1232, 7
        %v1234 = vsub.s32 %v1231, %v1233
        %v1235 = vrot.slane %v1213, %v1234
        %v1237 = vunpack.c.l.s4 1966171168
        %v1238 = vunpack.c.0.s8 %v1237
        %v1239 = vlaneseq
        %v1240 = vshrl.u32 %v1239, 7
        %v1241 = vsub.s32 %v1238, %v1240
        %v1242 = vrot.slane %v1214, %v1241
        %v1243 = vcombine.low %v1221, %v1235
        %v1244 = vcombine.low %v1228, %v1242
        %v1245 = vcombine.low %v1068, %v1093
        %v1246 = vcombine.low %v1107, %v1115
        %v1247 = vcombine.low %v1117, %v1100
        %v1249 = vunpack.c.l.s4 1966171168
        %v1250 = vunpack.c.0.s8 %v1249
        %v1251 = vlaneseq
        %v1252 = vshrl.u32 %v1251, 7
        %v1253 = vsub.s32 %v1250, %v1252
        %v1254 = vrot.slane %v1245, %v1253
        %v1256 = vunpack.c.l.s4 1966171168
        %v1257 = vunpack.c.0.s8 %v1256
        %v1258 = vlaneseq
        %v1259 = vshrl.u32 %v1258, 7
        %v1260 = vsub.s32 %v1257, %v1259
        %v1261 = vrot.slane %v1246, %v1260
        %v1263 = vunpack.c.l.s4 1966171168
        %v1264 = vunpack.c.0.s8 %v1263
        %v1265 = vlaneseq
        %v1266 = vshrl.u32 %v1265, 7
        %v1267 = vsub.s32 %v1264, %v1266
        %v1268 = vrot.slane %v1247, %v1267
        %v1270 = vunpack.c.l.s4 1966171168
        %v1271 = vunpack.c.0.s8 %v1270
        %v1272 = vlaneseq
        %v1273 = vshrl.u32 %v1272, 7
        %v1274 = vsub.s32 %v1271, %v1273
        %v1275 = vrot.slane %v1114, %v1274
        %v1276 = vcombine.low %v1254, %v1261
        %v1277 = vcombine.high %v1254, %v1261
        %v1278 = vcombine.low %v1268, %v1275
        %v1279 = vcombine.high %v1268, %v1275
        %v1281 = vunpack.c.l.s4 1966171168
        %v1282 = vunpack.c.0.s8 %v1281
        %v1283 = vlaneseq
        %v1284 = vshrl.u32 %v1283, 7
        %v1285 = vsub.s32 %v1282, %v1284
        %v1286 = vrot.slane %v1276, %v1285
        %v1288 = vunpack.c.l.s4 1966171168
        %v1289 = vunpack.c.0.s8 %v1288
        %v1290 = vlaneseq
        %v1291 = vshrl.u32 %v1290, 7
        %v1292 = vsub.s32 %v1289, %v1291
        %v1293 = vrot.slane %v1277, %v1292
        %v1295 = vunpack.c.l.s4 1966171168
        %v1296 = vunpack.c.0.s8 %v1295
        %v1297 = vlaneseq
        %v1298 = vshrl.u32 %v1297, 7
        %v1299 = vsub.s32 %v1296, %v1298
        %v1300 = vrot.slane %v1278, %v1299
        %v1302 = vunpack.c.l.s4 1966171168
        %v1303 = vunpack.c.0.s8 %v1302
        %v1304 = vlaneseq
        %v1305 = vshrl.u32 %v1304, 7
        %v1306 = vsub.s32 %v1303, %v1305
        %v1307 = vrot.slane %v1279, %v1306
        %v1308 = vcombine.low %v1286, %v1300
        %v1309 = vcombine.low %v1293, %v1307
        %v1310 = vcombine.low %v1116, %v1118
        %v1311 = vcombine.low %v1142, %v1156
        %v1312 = vcombine.low %v1157, %v1158
        %v1314 = vunpack.c.l.s4 1966171168
        %v1315 = vunpack.c.0.s8 %v1314
        %v1316 = vlaneseq
        %v1317 = vshrl.u32 %v1316, 7
        %v1318 = vsub.s32 %v1315, %v1317
        %v1319 = vrot.slane %v1310, %v1318
        %v1321 = vunpack.c.l.s4 1966171168
        %v1322 = vunpack.c.0.s8 %v1321
        %v1323 = vlaneseq
        %v1324 = vshrl.u32 %v1323, 7
        %v1325 = vsub.s32 %v1322, %v1324
        %v1326 = vrot.slane %v1311, %v1325
        %v1328 = vunpack.c.l.s4 1966171168
        %v1329 = vunpack.c.0.s8 %v1328
        %v1330 = vlaneseq
        %v1331 = vshrl.u32 %v1330, 7
        %v1332 = vsub.s32 %v1329, %v1331
        %v1333 = vrot.slane %v1312, %v1332
        %v1335 = vunpack.c.l.s4 1966171168
        %v1336 = vunpack.c.0.s8 %v1335
        %v1337 = vlaneseq
        %v1338 = vshrl.u32 %v1337, 7
        %v1339 = vsub.s32 %v1336, %v1338
        %v1340 = vrot.slane %v1149, %v1339
        %v1341 = vcombine.low %v1319, %v1326
        %v1342 = vcombine.high %v1319, %v1326
        %v1343 = vcombine.low %v1333, %v1340
        %v1344 = vcombine.high %v1333, %v1340
        %v1346 = vunpack.c.l.s4 1966171168
        %v1347 = vunpack.c.0.s8 %v1346
        %v1348 = vlaneseq
        %v1349 = vshrl.u32 %v1348, 7
        %v1350 = vsub.s32 %v1347, %v1349
        %v1351 = vrot.slane %v1341, %v1350
        %v1353 = vunpack.c.l.s4 1966171168
        %v1354 = vunpack.c.0.s8 %v1353
        %v1355 = vlaneseq
        %v1356 = vshrl.u32 %v1355, 7
        %v1357 = vsub.s32 %v1354, %v1356
        %v1358 = vrot.slane %v1342, %v1357
        %v1360 = vunpack.c.l.s4 1966171168
        %v1361 = vunpack.c.0.s8 %v1360
        %v1362 = vlaneseq
        %v1363 = vshrl.u32 %v1362, 7
        %v1364 = vsub.s32 %v1361, %v1363
        %v1365 = vrot.slane %v1343, %v1364
        %v1367 = vunpack.c.l.s4 1966171168
        %v1368 = vunpack.c.0.s8 %v1367
        %v1369 = vlaneseq
        %v1370 = vshrl.u32 %v1369, 7
        %v1371 = vsub.s32 %v1368, %v1370
        %v1372 = vrot.slane %v1344, %v1371
        %v1373 = vcombine.low %v1351, %v1365
        %v1374 = vcombine.low %v1358, %v1372
        %v1381 = vsel %vm345, %v1243, 0.0
        %v1382 = vrot.slane %v1381, 4
        %v1383 = vadd.f32 %v1381, %v1382
        %v1384 = vrot.slane %v1383, 2
        %v1385 = vadd.f32 %v1383, %v1384
        %v1386 = vrot.slane %v1385, 1
        %v1387 = vadd.f32 %v1385, %v1386
        %vm1388 = vcmask 784384
        %v1389 = vsel %vm1388, %v1244, 0.0
        %v1390 = vrot.slane %v1389, 4
        %v1391 = vadd.f32 %v1389, %v1390
        %v1392 = vrot.slane %v1391, 2
        %v1393 = vadd.f32 %v1391, %v1392
        %v1394 = vrot.slane %v1393, 1
        %v1395 = vadd.f32 %v1393, %v1394
        %v1396 = vsel %vm345, %v1308, 0.0
        %v1397 = vrot.slane %v1396, 4
        %v1398 = vadd.f32 %v1396, %v1397
        %v1399 = vrot.slane %v1398, 2
        %v1400 = vadd.f32 %v1398, %v1399
        %v1401 = vrot.slane %v1400, 1
        %v1402 = vadd.f32 %v1400, %v1401
        %v1403 = vsel %vm1388, %v1309, 0.0
        %v1404 = vrot.slane %v1403, 4
        %v1405 = vadd.f32 %v1403, %v1404
        %v1406 = vrot.slane %v1405, 2
        %v1407 = vadd.f32 %v1405, %v1406
        %v1408 = vrot.slane %v1407, 1
        %v1409 = vadd.f32 %v1407, %v1408
        %v1410 = vsel %vm345, %v1373, 0.0
        %v1411 = vrot.slane %v1410, 4
        %v1412 = vadd.f32 %v1410, %v1411
        %v1413 = vrot.slane %v1412, 2
        %v1414 = vadd.f32 %v1412, %v1413
        %v1415 = vrot.slane %v1414, 1
        %v1416 = vadd.f32 %v1414, %v1415
        %v1417 = vsel %vm1388, %v1374, 0.0
        %v1418 = vrot.slane %v1417, 4
        %v1419 = vadd.f32 %v1417, %v1418
        %v1420 = vrot.slane %v1419, 2
        %v1421 = vadd.f32 %v1419, %v1420
        %v1422 = vrot.slane %v1421, 1
        %v1423 = vadd.f32 %v1421, %v1422
        %vm1430 = vcmask 1041409
        %v1431 = vsel %vm1430, %v1402, %v1387
        %vm1432 = vcmask 1042434
        %v1433 = vsel %vm1432, %v1416, %v1431
        %v1434 = vsel %vm1430, %v1409, %v1395
        %v1435 = vsel %vm1432, %v1423, %v1434
        %vm1437 = vcmask 785408
        %v1438 = vsel %vm1437, %v1435, 0
        %1440 = vmatprep.subr.mxu0 0.0
        %1441 = vmatpush1.msra.mxu0 %v316
        %1442 = vmatprep.subr.mxu0 0.0
        %1443 = vmatpush1.msra.mxu0 %v315
        %1444 = vmatprep.subr.mxu0 0.0
        %1445 = vmatpush1.msra.mxu0 %v314
        %1446 = vmatprep.subr.mxu0 0.0
        %1447 = vmatpush1.msra.mxu0 %v313
        %1448 = vmatprep.subr.mxu0 0.0
        %1449 = vmatpush1.msra.mxu0 %v312
        %1450 = vmatprep.subr.mxu0 0.0
        %1451 = vmatpush1.msra.mxu0 %v311
        %1452 = vmatprep.subr.mxu0 0.0
        %1453 = vmatpush1.msra.mxu0 %v310
        %1454 = vmatprep.subr.mxu0 0.0
        %1455 = vmatpush1.msra.mxu0 %v309
        %1456 = vmatprep.subr.mxu0 0.0
        %1457 = vmatpush1.msra.mxu0 %v308
        %1458 = vmatprep.subr.mxu0 0.0
        %1459 = vmatpush1.msra.mxu0 %v307
        %1460 = vmatprep.subr.mxu0 0.0
        %1461 = vmatpush1.msra.mxu0 %v306
        %1462 = vmatprep.subr.mxu0 0.0
        %1463 = vmatpush1.msra.mxu0 %v305
        %1464 = vmatprep.subr.mxu0 0.0
        %1465 = vmatpush1.msra.mxu0 %v304
        %1466 = vmatprep.subr.mxu0 0.0
        %1467 = vmatpush1.msra.mxu0 %v303
        %1468 = vmatprep.subr.mxu0 0.0
        %1469 = vmatpush1.msra.mxu0 %v302
        %1470 = vmatprep.subr.mxu0 0.0
        %1471 = vmatpush1.msra.mxu0 %v301
        %1472 = vmatprep.subr.mxu0 0.0
        %1473 = vmatpush2.msra.mxu0 0.0
        %1474 = vmatprep.subr.mxu0 0.0
        %1475 = vmatpush2.msra.mxu0 0.0
        %1476 = vmatprep.subr.mxu0 0.0
        %1477 = vmatpush2.msra.mxu0 0.0
        %1478 = vmatprep.subr.mxu0 0.0
        %1479 = vmatpush2.msra.mxu0 0.0
        %1480 = vmatprep.subr.mxu0 0.0
        %1481 = vmatpush2.msra.mxu0 %v328
        %1482 = vmatprep.subr.mxu0 0.0
        %1483 = vmatpush2.msra.mxu0 %v327
        %1484 = vmatprep.subr.mxu0 0.0
        %1485 = vmatpush2.msra.mxu0 %v326
        %1486 = vmatprep.subr.mxu0 0.0
        %1487 = vmatpush2.msra.mxu0 %v325
        %1488 = vmatprep.subr.mxu0 0.0
        %1489 = vmatpush2.msra.mxu0 %v324
        %1490 = vmatprep.subr.mxu0 0.0
        %1491 = vmatpush2.msra.mxu0 %v323
        %1492 = vmatprep.subr.mxu0 0.0
        %1493 = vmatpush2.msra.mxu0 %v322
        %1494 = vmatprep.subr.mxu0 0.0
        %1495 = vmatpush2.msra.mxu0 %v321
        %1496 = vmatprep.subr.mxu0 0.0
        %1497 = vmatpush2.msra.mxu0 %v320
        %1498 = vmatprep.subr.mxu0 0.0
        %1499 = vmatpush2.msra.mxu0 %v319
        %1500 = vmatprep.subr.mxu0 0.0
        %1501 = vmatpush2.msra.mxu0 %v318
        %1502 = vmatprep.subr.mxu0 0.0
        %1503 = vmatpush2.msra.mxu0 %v317
        %1504 = vmatprep.mubr.f32.mxu0 %v1438
        %1505 = vmatmul.mubr.f32.gmra.mxu0 %v1433
        %v1506 = vpop.f32.mrf.mxu0
        %v1507 = vadd.f32 0.0, %v1506
        %v1508 = vpop.f32.mrf.mxu0
        %1509 = vdwg.mxu0
        %v1510 = vmul.f32 %v1507, 0.0051020407
        %vm1511 = vcmask 64512
        %v1513 = vsel %vm1511, %v1510, 0
        %v1516 = vsel %vm1511, %v301, 0
        %v1519 = vsel %vm1511, %v302, 0
        %v1522 = vsel %vm1511, %v303, 0
        %v1525 = vsel %vm1511, %v304, 0
        %v1528 = vsel %vm1511, %v305, 0
        %v1531 = vsel %vm1511, %v306, 0
        %v1534 = vsel %vm1511, %v307, 0
        %v1537 = vsel %vm1511, %v308, 0
        %v1540 = vsel %vm1511, %v309, 0
        %v1543 = vsel %vm1511, %v310, 0
        %v1546 = vsel %vm1511, %v311, 0
        %v1549 = vsel %vm1511, %v312, 0
        %v1552 = vsel %vm1511, %v313, 0
        %v1555 = vsel %vm1511, %v314, 0
        %v1558 = vsel %vm1511, %v315, 0
        %v1561 = vsel %vm1511, %v316, 0
        %v1564 = vsel %vm1511, %v317, 0
        %v1567 = vsel %vm1511, %v318, 0
        %v1570 = vsel %vm1511, %v319, 0
        %v1573 = vsel %vm1511, %v320, 0
        %v1576 = vsel %vm1511, %v321, 0
        %v1579 = vsel %vm1511, %v322, 0
        %v1582 = vsel %vm1511, %v323, 0
        %v1585 = vsel %vm1511, %v324, 0
        %v1588 = vsel %vm1511, %v325, 0
        %v1591 = vsel %vm1511, %v326, 0
        %v1594 = vsel %vm1511, %v327, 0
        %v1597 = vsel %vm1511, %v328, 0
        %1599 = vmatprep.subr.mxu0 0.0
        %1600 = vmatpush1.xpose.msra.mxu0 %v1561
        %1601 = vmatprep.subr.mxu0 0.0
        %1602 = vmatpush1.xpose.msra.mxu0 %v1558
        %1603 = vmatprep.subr.mxu0 0.0
        %1604 = vmatpush1.xpose.msra.mxu0 %v1555
        %1605 = vmatprep.subr.mxu0 0.0
        %1606 = vmatpush1.xpose.msra.mxu0 %v1552
        %1607 = vmatprep.subr.mxu0 0.0
        %1608 = vmatpush1.xpose.msra.mxu0 %v1549
        %1609 = vmatprep.subr.mxu0 0.0
        %1610 = vmatpush1.xpose.msra.mxu0 %v1546
        %1611 = vmatprep.subr.mxu0 0.0
        %1612 = vmatpush1.xpose.msra.mxu0 %v1543
        %1613 = vmatprep.subr.mxu0 0.0
        %1614 = vmatpush1.xpose.msra.mxu0 %v1540
        %1615 = vmatprep.subr.mxu0 0.0
        %1616 = vmatpush1.xpose.msra.mxu0 %v1537
        %1617 = vmatprep.subr.mxu0 0.0
        %1618 = vmatpush1.xpose.msra.mxu0 %v1534
        %1619 = vmatprep.subr.mxu0 0.0
        %1620 = vmatpush1.xpose.msra.mxu0 %v1531
        %1621 = vmatprep.subr.mxu0 0.0
        %1622 = vmatpush1.xpose.msra.mxu0 %v1528
        %1623 = vmatprep.subr.mxu0 0.0
        %1624 = vmatpush1.xpose.msra.mxu0 %v1525
        %1625 = vmatprep.subr.mxu0 0.0
        %1626 = vmatpush1.xpose.msra.mxu0 %v1522
        %1627 = vmatprep.subr.mxu0 0.0
        %1628 = vmatpush1.xpose.msra.mxu0 %v1519
        %1629 = vmatprep.subr.mxu0 0.0
        %1630 = vmatpush1.xpose.msra.mxu0 %v1516
        %1631 = vmatprep.subr.mxu0 0.0
        %1632 = vmatpush2.xpose.msra.mxu0 0.0
        %1633 = vmatprep.subr.mxu0 0.0
        %1634 = vmatpush2.xpose.msra.mxu0 0.0
        %1635 = vmatprep.subr.mxu0 0.0
        %1636 = vmatpush2.xpose.msra.mxu0 0.0
        %1637 = vmatprep.subr.mxu0 0.0
        %1638 = vmatpush2.xpose.msra.mxu0 0.0
        %1639 = vmatprep.subr.mxu0 0.0
        %1640 = vmatpush2.xpose.msra.mxu0 %v1597
        %1641 = vmatprep.subr.mxu0 0.0
        %1642 = vmatpush2.xpose.msra.mxu0 %v1594
        %1643 = vmatprep.subr.mxu0 0.0
        %1644 = vmatpush2.xpose.msra.mxu0 %v1591
        %1645 = vmatprep.subr.mxu0 0.0
        %1646 = vmatpush2.xpose.msra.mxu0 %v1588
        %1647 = vmatprep.subr.mxu0 0.0
        %1648 = vmatpush2.xpose.msra.mxu0 %v1585
        %1649 = vmatprep.subr.mxu0 0.0
        %1650 = vmatpush2.xpose.msra.mxu0 %v1582
        %1651 = vmatprep.subr.mxu0 0.0
        %1652 = vmatpush2.xpose.msra.mxu0 %v1579
        %1653 = vmatprep.subr.mxu0 0.0
        %1654 = vmatpush2.xpose.msra.mxu0 %v1576
        %1655 = vmatprep.subr.mxu0 0.0
        %1656 = vmatpush2.xpose.msra.mxu0 %v1573
        %1657 = vmatprep.subr.mxu0 0.0
        %1658 = vmatpush2.xpose.msra.mxu0 %v1570
        %1659 = vmatprep.subr.mxu0 0.0
        %1660 = vmatpush2.xpose.msra.mxu0 %v1567
        %1661 = vmatprep.subr.mxu0 0.0
        %1662 = vmatpush2.xpose.msra.mxu0 %v1564
        %1663 = vmatprep.mubr.f32.mxu0 0.0
        %1664 = vmatmul.mubr.f32.gmra.mxu0 %v1513
        %v1665 = vpop.f32.mrf.mxu0
        %v1666 = vadd.f32 0.0, %v1665
        %v1667 = vpop.f32.mrf.mxu0
        %v1668 = vadd.f32 0.0, %v1667
        %1669 = vdwg.mxu0
        %v1672 = vcombine.low %v1666, %v1668
        %v1674 = vunpack.c.l.s4 1966171168
        %v1675 = vunpack.c.0.s8 %v1674
        %v1676 = vlaneseq
        %v1677 = vshrl.u32 %v1676, 7
        %v1678 = vsub.s32 %v1675, %v1677
        %v1679 = vrot.slane %v1672, %v1678
        %v1680 = vcombine.high %v1679, %v1679
        %v1682 = vunpack.c.l.s4 1966171168
        %v1683 = vunpack.c.0.s8 %v1682
        %v1684 = vlaneseq
        %v1685 = vshrl.u32 %v1684, 7
        %v1686 = vsub.s32 %v1683, %v1685
        %v1687 = vrot.slane %v1679, %v1686
        %v1689 = vunpack.c.l.s4 1966171168
        %v1690 = vunpack.c.0.s8 %v1689
        %v1691 = vlaneseq
        %v1692 = vshrl.u32 %v1691, 7
        %v1693 = vsub.s32 %v1690, %v1692
        %v1694 = vrot.slane %v1680, %v1693
        %v1695 = vcombine.high %v1687, %v1687
        %v1696 = vlaneseq
        %v1697 = vshrl.u32 %v1696, 7
        %v1698 = vsub.s32 0, %v1697
        %v1699 = vrot.slane %v1687, %v1698
        %v1700 = vlaneseq
        %v1701 = vshrl.u32 %v1700, 7
        %v1702 = vsub.s32 1, %v1701
        %v1703 = vrot.slane %v1687, %v1702
        %v1704 = vlaneseq
        %v1705 = vshrl.u32 %v1704, 7
        %v1706 = vsub.s32 0, %v1705
        %v1707 = vrot.slane %v1694, %v1706
        %v1708 = vlaneseq
        %v1709 = vshrl.u32 %v1708, 7
        %v1710 = vsub.s32 1, %v1709
        %v1711 = vrot.slane %v1694, %v1710
        %v1712 = vlaneseq
        %v1713 = vshrl.u32 %v1712, 7
        %v1714 = vsub.s32 0, %v1713
        %v1715 = vrot.slane %v1695, %v1714
        %v1716 = vlaneseq
        %v1717 = vshrl.u32 %v1716, 7
        %v1718 = vsub.s32 1, %v1717
        %v1719 = vrot.slane %v1695, %v1718
        %v1720 = vcombine.low %v1699, %v1703
        %v1721 = vcombine.high %v1699, %v1703
        %v1723 = vunpack.c.l.s4 1966171168
        %v1724 = vunpack.c.0.s8 %v1723
        %v1725 = vlaneseq
        %v1726 = vshrl.u32 %v1725, 7
        %v1727 = vsub.s32 %v1724, %v1726
        %v1728 = vrot.slane %v1720, %v1727
        %v1730 = vunpack.c.l.s4 1966171168
        %v1731 = vunpack.c.0.s8 %v1730
        %v1732 = vlaneseq
        %v1733 = vshrl.u32 %v1732, 7
        %v1734 = vsub.s32 %v1731, %v1733
        %v1735 = vrot.slane %v1721, %v1734
        %v1736 = vcombine.high %v1728, %v1728
        %v1737 = vcombine.high %v1735, %v1735
        %v1739 = vunpack.c.l.s4 1966171168
        %v1740 = vunpack.c.0.s8 %v1739
        %v1741 = vlaneseq
        %v1742 = vshrl.u32 %v1741, 7
        %v1743 = vsub.s32 %v1740, %v1742
        %v1744 = vrot.slane %v1728, %v1743
        %v1746 = vunpack.c.l.s4 1966171168
        %v1747 = vunpack.c.0.s8 %v1746
        %v1748 = vlaneseq
        %v1749 = vshrl.u32 %v1748, 7
        %v1750 = vsub.s32 %v1747, %v1749
        %v1751 = vrot.slane %v1735, %v1750
        %v1753 = vunpack.c.l.s4 1966171168
        %v1754 = vunpack.c.0.s8 %v1753
        %v1755 = vlaneseq
        %v1756 = vshrl.u32 %v1755, 7
        %v1757 = vsub.s32 %v1754, %v1756
        %v1758 = vrot.slane %v1736, %v1757
        %v1760 = vunpack.c.l.s4 1966171168
        %v1761 = vunpack.c.0.s8 %v1760
        %v1762 = vlaneseq
        %v1763 = vshrl.u32 %v1762, 7
        %v1764 = vsub.s32 %v1761, %v1763
        %v1765 = vrot.slane %v1737, %v1764
        %v1766 = vcombine.high %v1744, %v1744
        %v1767 = vcombine.high %v1751, %v1751
        %v1768 = vcombine.high %v1758, %v1758
        %v1769 = vcombine.low %v1707, %v1711
        %v1770 = vcombine.high %v1707, %v1711
        %v1772 = vunpack.c.l.s4 1966171168
        %v1773 = vunpack.c.0.s8 %v1772
        %v1774 = vlaneseq
        %v1775 = vshrl.u32 %v1774, 7
        %v1776 = vsub.s32 %v1773, %v1775
        %v1777 = vrot.slane %v1769, %v1776
        %v1779 = vunpack.c.l.s4 1966171168
        %v1780 = vunpack.c.0.s8 %v1779
        %v1781 = vlaneseq
        %v1782 = vshrl.u32 %v1781, 7
        %v1783 = vsub.s32 %v1780, %v1782
        %v1784 = vrot.slane %v1770, %v1783
        %v1785 = vcombine.high %v1777, %v1777
        %v1786 = vcombine.high %v1784, %v1784
        %v1788 = vunpack.c.l.s4 1966171168
        %v1789 = vunpack.c.0.s8 %v1788
        %v1790 = vlaneseq
        %v1791 = vshrl.u32 %v1790, 7
        %v1792 = vsub.s32 %v1789, %v1791
        %v1793 = vrot.slane %v1777, %v1792
        %v1795 = vunpack.c.l.s4 1966171168
        %v1796 = vunpack.c.0.s8 %v1795
        %v1797 = vlaneseq
        %v1798 = vshrl.u32 %v1797, 7
        %v1799 = vsub.s32 %v1796, %v1798
        %v1800 = vrot.slane %v1784, %v1799
        %v1802 = vunpack.c.l.s4 1966171168
        %v1803 = vunpack.c.0.s8 %v1802
        %v1804 = vlaneseq
        %v1805 = vshrl.u32 %v1804, 7
        %v1806 = vsub.s32 %v1803, %v1805
        %v1807 = vrot.slane %v1785, %v1806
        %v1809 = vunpack.c.l.s4 1966171168
        %v1810 = vunpack.c.0.s8 %v1809
        %v1811 = vlaneseq
        %v1812 = vshrl.u32 %v1811, 7
        %v1813 = vsub.s32 %v1810, %v1812
        %v1814 = vrot.slane %v1786, %v1813
        %v1815 = vcombine.high %v1793, %v1793
        %v1816 = vcombine.high %v1800, %v1800
        %v1817 = vcombine.high %v1807, %v1807
        %v1818 = vcombine.low %v1715, %v1719
        %v1819 = vcombine.high %v1715, %v1719
        %v1821 = vunpack.c.l.s4 1966171168
        %v1822 = vunpack.c.0.s8 %v1821
        %v1823 = vlaneseq
        %v1824 = vshrl.u32 %v1823, 7
        %v1825 = vsub.s32 %v1822, %v1824
        %v1826 = vrot.slane %v1818, %v1825
        %v1828 = vunpack.c.l.s4 1966171168
        %v1829 = vunpack.c.0.s8 %v1828
        %v1830 = vlaneseq
        %v1831 = vshrl.u32 %v1830, 7
        %v1832 = vsub.s32 %v1829, %v1831
        %v1833 = vrot.slane %v1819, %v1832
        %v1834 = vcombine.high %v1826, %v1826
        %v1835 = vcombine.high %v1833, %v1833
        %v1837 = vunpack.c.l.s4 1966171168
        %v1838 = vunpack.c.0.s8 %v1837
        %v1839 = vlaneseq
        %v1840 = vshrl.u32 %v1839, 7
        %v1841 = vsub.s32 %v1838, %v1840
        %v1842 = vrot.slane %v1826, %v1841
        %v1844 = vunpack.c.l.s4 1966171168
        %v1845 = vunpack.c.0.s8 %v1844
        %v1846 = vlaneseq
        %v1847 = vshrl.u32 %v1846, 7
        %v1848 = vsub.s32 %v1845, %v1847
        %v1849 = vrot.slane %v1833, %v1848
        %v1851 = vunpack.c.l.s4 1966171168
        %v1852 = vunpack.c.0.s8 %v1851
        %v1853 = vlaneseq
        %v1854 = vshrl.u32 %v1853, 7
        %v1855 = vsub.s32 %v1852, %v1854
        %v1856 = vrot.slane %v1834, %v1855
        %v1858 = vunpack.c.l.s4 1966171168
        %v1859 = vunpack.c.0.s8 %v1858
        %v1860 = vlaneseq
        %v1861 = vshrl.u32 %v1860, 7
        %v1862 = vsub.s32 %v1859, %v1861
        %v1863 = vrot.slane %v1835, %v1862
        %v1864 = vcombine.high %v1842, %v1842
        %v1865 = vcombine.high %v1849, %v1849
        %v1866 = vcombine.high %v1856, %v1856
        %v1888 = vsub.f32 %v1043, %v1744
        %v1889 = vsub.f32 %v1057, %v1758
        %v1890 = vsub.f32 %v1065, %v1766
        %v1891 = vsub.f32 %v1067, %v1768
        %v1892 = vsub.f32 %v1050, %v1751
        %v1893 = vsub.f32 %v1064, %v1765
        %v1894 = vsub.f32 %v1066, %v1767
        %v1895 = vsub.f32 %v1068, %v1793
        %v1896 = vsub.f32 %v1093, %v1807
        %v1897 = vsub.f32 %v1107, %v1815
        %v1898 = vsub.f32 %v1115, %v1817
        %v1899 = vsub.f32 %v1117, %v1800
        %v1900 = vsub.f32 %v1100, %v1814
        %v1901 = vsub.f32 %v1114, %v1816
        %v1902 = vsub.f32 %v1116, %v1842
        %v1903 = vsub.f32 %v1118, %v1856
        %v1904 = vsub.f32 %v1142, %v1864
        %v1905 = vsub.f32 %v1156, %v1866
        %v1906 = vsub.f32 %v1157, %v1849
        %v1907 = vsub.f32 %v1158, %v1863
        %v1908 = vsub.f32 %v1149, %v1865
        %v1909 = vmul.f32 %v1888, %v1888
        %v1910 = vmul.f32 %v1889, %v1889
        %v1911 = vmul.f32 %v1890, %v1890
        %v1912 = vmul.f32 %v1891, %v1891
        %v1913 = vmul.f32 %v1892, %v1892
        %v1914 = vmul.f32 %v1893, %v1893
        %v1915 = vmul.f32 %v1894, %v1894
        %v1916 = vmul.f32 %v1895, %v1895
        %v1917 = vmul.f32 %v1896, %v1896
        %v1918 = vmul.f32 %v1897, %v1897
        %v1919 = vmul.f32 %v1898, %v1898
        %v1920 = vmul.f32 %v1899, %v1899
        %v1921 = vmul.f32 %v1900, %v1900
        %v1922 = vmul.f32 %v1901, %v1901
        %v1923 = vmul.f32 %v1902, %v1902
        %v1924 = vmul.f32 %v1903, %v1903
        %v1925 = vmul.f32 %v1904, %v1904
        %v1926 = vmul.f32 %v1905, %v1905
        %v1927 = vmul.f32 %v1906, %v1906
        %v1928 = vmul.f32 %v1907, %v1907
        %v1929 = vmul.f32 %v1908, %v1908
        %v1951 = vcombine.low %v1909, %v1910
        %v1952 = vcombine.low %v1911, %v1912
        %v1953 = vcombine.low %v1913, %v1914
        %v1955 = vunpack.c.l.s4 1966171168
        %v1956 = vunpack.c.0.s8 %v1955
        %v1957 = vlaneseq
        %v1958 = vshrl.u32 %v1957, 7
        %v1959 = vsub.s32 %v1956, %v1958
        %v1960 = vrot.slane %v1951, %v1959
        %v1962 = vunpack.c.l.s4 1966171168
        %v1963 = vunpack.c.0.s8 %v1962
        %v1964 = vlaneseq
        %v1965 = vshrl.u32 %v1964, 7
        %v1966 = vsub.s32 %v1963, %v1965
        %v1967 = vrot.slane %v1952, %v1966
        %v1969 = vunpack.c.l.s4 1966171168
        %v1970 = vunpack.c.0.s8 %v1969
        %v1971 = vlaneseq
        %v1972 = vshrl.u32 %v1971, 7
        %v1973 = vsub.s32 %v1970, %v1972
        %v1974 = vrot.slane %v1953, %v1973
        %v1976 = vunpack.c.l.s4 1966171168
        %v1977 = vunpack.c.0.s8 %v1976
        %v1978 = vlaneseq
        %v1979 = vshrl.u32 %v1978, 7
        %v1980 = vsub.s32 %v1977, %v1979
        %v1981 = vrot.slane %v1915, %v1980
        %v1982 = vcombine.low %v1960, %v1967
        %v1983 = vcombine.high %v1960, %v1967
        %v1984 = vcombine.low %v1974, %v1981
        %v1985 = vcombine.high %v1974, %v1981
        %v1987 = vunpack.c.l.s4 1966171168
        %v1988 = vunpack.c.0.s8 %v1987
        %v1989 = vlaneseq
        %v1990 = vshrl.u32 %v1989, 7
        %v1991 = vsub.s32 %v1988, %v1990
        %v1992 = vrot.slane %v1982, %v1991
        %v1994 = vunpack.c.l.s4 1966171168
        %v1995 = vunpack.c.0.s8 %v1994
        %v1996 = vlaneseq
        %v1997 = vshrl.u32 %v1996, 7
        %v1998 = vsub.s32 %v1995, %v1997
        %v1999 = vrot.slane %v1983, %v1998
        %v2001 = vunpack.c.l.s4 1966171168
        %v2002 = vunpack.c.0.s8 %v2001
        %v2003 = vlaneseq
        %v2004 = vshrl.u32 %v2003, 7
        %v2005 = vsub.s32 %v2002, %v2004
        %v2006 = vrot.slane %v1984, %v2005
        %v2008 = vunpack.c.l.s4 1966171168
        %v2009 = vunpack.c.0.s8 %v2008
        %v2010 = vlaneseq
        %v2011 = vshrl.u32 %v2010, 7
        %v2012 = vsub.s32 %v2009, %v2011
        %v2013 = vrot.slane %v1985, %v2012
        %v2014 = vcombine.low %v1992, %v2006
        %v2015 = vcombine.low %v1999, %v2013
        %v2016 = vcombine.low %v1916, %v1917
        %v2017 = vcombine.low %v1918, %v1919
        %v2018 = vcombine.low %v1920, %v1921
        %v2020 = vunpack.c.l.s4 1966171168
        %v2021 = vunpack.c.0.s8 %v2020
        %v2022 = vlaneseq
        %v2023 = vshrl.u32 %v2022, 7
        %v2024 = vsub.s32 %v2021, %v2023
        %v2025 = vrot.slane %v2016, %v2024
        %v2027 = vunpack.c.l.s4 1966171168
        %v2028 = vunpack.c.0.s8 %v2027
        %v2029 = vlaneseq
        %v2030 = vshrl.u32 %v2029, 7
        %v2031 = vsub.s32 %v2028, %v2030
        %v2032 = vrot.slane %v2017, %v2031
        %v2034 = vunpack.c.l.s4 1966171168
        %v2035 = vunpack.c.0.s8 %v2034
        %v2036 = vlaneseq
        %v2037 = vshrl.u32 %v2036, 7
        %v2038 = vsub.s32 %v2035, %v2037
        %v2039 = vrot.slane %v2018, %v2038
        %v2041 = vunpack.c.l.s4 1966171168
        %v2042 = vunpack.c.0.s8 %v2041
        %v2043 = vlaneseq
        %v2044 = vshrl.u32 %v2043, 7
        %v2045 = vsub.s32 %v2042, %v2044
        %v2046 = vrot.slane %v1922, %v2045
        %v2047 = vcombine.low %v2025, %v2032
        %v2048 = vcombine.high %v2025, %v2032
        %v2049 = vcombine.low %v2039, %v2046
        %v2050 = vcombine.high %v2039, %v2046
        %v2052 = vunpack.c.l.s4 1966171168
        %v2053 = vunpack.c.0.s8 %v2052
        %v2054 = vlaneseq
        %v2055 = vshrl.u32 %v2054, 7
        %v2056 = vsub.s32 %v2053, %v2055
        %v2057 = vrot.slane %v2047, %v2056
        %v2059 = vunpack.c.l.s4 1966171168
        %v2060 = vunpack.c.0.s8 %v2059
        %v2061 = vlaneseq
        %v2062 = vshrl.u32 %v2061, 7
        %v2063 = vsub.s32 %v2060, %v2062
        %v2064 = vrot.slane %v2048, %v2063
        %v2066 = vunpack.c.l.s4 1966171168
        %v2067 = vunpack.c.0.s8 %v2066
        %v2068 = vlaneseq
        %v2069 = vshrl.u32 %v2068, 7
        %v2070 = vsub.s32 %v2067, %v2069
        %v2071 = vrot.slane %v2049, %v2070
        %v2073 = vunpack.c.l.s4 1966171168
        %v2074 = vunpack.c.0.s8 %v2073
        %v2075 = vlaneseq
        %v2076 = vshrl.u32 %v2075, 7
        %v2077 = vsub.s32 %v2074, %v2076
        %v2078 = vrot.slane %v2050, %v2077
        %v2079 = vcombine.low %v2057, %v2071
        %v2080 = vcombine.low %v2064, %v2078
        %v2081 = vcombine.low %v1923, %v1924
        %v2082 = vcombine.low %v1925, %v1926
        %v2083 = vcombine.low %v1927, %v1928
        %v2085 = vunpack.c.l.s4 1966171168
        %v2086 = vunpack.c.0.s8 %v2085
        %v2087 = vlaneseq
        %v2088 = vshrl.u32 %v2087, 7
        %v2089 = vsub.s32 %v2086, %v2088
        %v2090 = vrot.slane %v2081, %v2089
        %v2092 = vunpack.c.l.s4 1966171168
        %v2093 = vunpack.c.0.s8 %v2092
        %v2094 = vlaneseq
        %v2095 = vshrl.u32 %v2094, 7
        %v2096 = vsub.s32 %v2093, %v2095
        %v2097 = vrot.slane %v2082, %v2096
        %v2099 = vunpack.c.l.s4 1966171168
        %v2100 = vunpack.c.0.s8 %v2099
        %v2101 = vlaneseq
        %v2102 = vshrl.u32 %v2101, 7
        %v2103 = vsub.s32 %v2100, %v2102
        %v2104 = vrot.slane %v2083, %v2103
        %v2106 = vunpack.c.l.s4 1966171168
        %v2107 = vunpack.c.0.s8 %v2106
        %v2108 = vlaneseq
        %v2109 = vshrl.u32 %v2108, 7
        %v2110 = vsub.s32 %v2107, %v2109
        %v2111 = vrot.slane %v1929, %v2110
        %v2112 = vcombine.low %v2090, %v2097
        %v2113 = vcombine.high %v2090, %v2097
        %v2114 = vcombine.low %v2104, %v2111
        %v2115 = vcombine.high %v2104, %v2111
        %v2117 = vunpack.c.l.s4 1966171168
        %v2118 = vunpack.c.0.s8 %v2117
        %v2119 = vlaneseq
        %v2120 = vshrl.u32 %v2119, 7
        %v2121 = vsub.s32 %v2118, %v2120
        %v2122 = vrot.slane %v2112, %v2121
        %v2124 = vunpack.c.l.s4 1966171168
        %v2125 = vunpack.c.0.s8 %v2124
        %v2126 = vlaneseq
        %v2127 = vshrl.u32 %v2126, 7
        %v2128 = vsub.s32 %v2125, %v2127
        %v2129 = vrot.slane %v2113, %v2128
        %v2131 = vunpack.c.l.s4 1966171168
        %v2132 = vunpack.c.0.s8 %v2131
        %v2133 = vlaneseq
        %v2134 = vshrl.u32 %v2133, 7
        %v2135 = vsub.s32 %v2132, %v2134
        %v2136 = vrot.slane %v2114, %v2135
        %v2138 = vunpack.c.l.s4 1966171168
        %v2139 = vunpack.c.0.s8 %v2138
        %v2140 = vlaneseq
        %v2141 = vshrl.u32 %v2140, 7
        %v2142 = vsub.s32 %v2139, %v2141
        %v2143 = vrot.slane %v2115, %v2142
        %v2144 = vcombine.low %v2122, %v2136
        %v2145 = vcombine.low %v2129, %v2143
        %v2152 = vsel %vm345, %v2014, 0.0
        %v2153 = vrot.slane %v2152, 4
        %v2154 = vadd.f32 %v2152, %v2153
        %v2155 = vrot.slane %v2154, 2
        %v2156 = vadd.f32 %v2154, %v2155
        %v2157 = vrot.slane %v2156, 1
        %v2158 = vadd.f32 %v2156, %v2157
        %v2159 = vsel %vm1388, %v2015, 0.0
        %v2160 = vrot.slane %v2159, 4
        %v2161 = vadd.f32 %v2159, %v2160
        %v2162 = vrot.slane %v2161, 2
        %v2163 = vadd.f32 %v2161, %v2162
        %v2164 = vrot.slane %v2163, 1
        %v2165 = vadd.f32 %v2163, %v2164
        %v2166 = vsel %vm345, %v2079, 0.0
        %v2167 = vrot.slane %v2166, 4
        %v2168 = vadd.f32 %v2166, %v2167
        %v2169 = vrot.slane %v2168, 2
        %v2170 = vadd.f32 %v2168, %v2169
        %v2171 = vrot.slane %v2170, 1
        %v2172 = vadd.f32 %v2170, %v2171
        %v2173 = vsel %vm1388, %v2080, 0.0
        %v2174 = vrot.slane %v2173, 4
        %v2175 = vadd.f32 %v2173, %v2174
        %v2176 = vrot.slane %v2175, 2
        %v2177 = vadd.f32 %v2175, %v2176
        %v2178 = vrot.slane %v2177, 1
        %v2179 = vadd.f32 %v2177, %v2178
        %v2180 = vsel %vm345, %v2144, 0.0
        %v2181 = vrot.slane %v2180, 4
        %v2182 = vadd.f32 %v2180, %v2181
        %v2183 = vrot.slane %v2182, 2
        %v2184 = vadd.f32 %v2182, %v2183
        %v2185 = vrot.slane %v2184, 1
        %v2186 = vadd.f32 %v2184, %v2185
        %v2187 = vsel %vm1388, %v2145, 0.0
        %v2188 = vrot.slane %v2187, 4
        %v2189 = vadd.f32 %v2187, %v2188
        %v2190 = vrot.slane %v2189, 2
        %v2191 = vadd.f32 %v2189, %v2190
        %v2192 = vrot.slane %v2191, 1
        %v2193 = vadd.f32 %v2191, %v2192
        %v2200 = vsel %vm1430, %v2172, %v2158
        %v2201 = vsel %vm1432, %v2186, %v2200
        %v2202 = vsel %vm1430, %v2179, %v2165
        %v2203 = vsel %vm1432, %v2193, %v2202
        %v2205 = vsel %vm1437, %v2203, 0
        %2207 = vmatprep.subr.mxu0 0.0
        %2208 = vmatpush1.msra.mxu0 %v316
        %2209 = vmatprep.subr.mxu0 0.0
        %2210 = vmatpush1.msra.mxu0 %v315
        %2211 = vmatprep.subr.mxu0 0.0
        %2212 = vmatpush1.msra.mxu0 %v314
        %2213 = vmatprep.subr.mxu0 0.0
        %2214 = vmatpush1.msra.mxu0 %v313
        %2215 = vmatprep.subr.mxu0 0.0
        %2216 = vmatpush1.msra.mxu0 %v312
        %2217 = vmatprep.subr.mxu0 0.0
        %2218 = vmatpush1.msra.mxu0 %v311
        %2219 = vmatprep.subr.mxu0 0.0
        %2220 = vmatpush1.msra.mxu0 %v310
        %2221 = vmatprep.subr.mxu0 0.0
        %2222 = vmatpush1.msra.mxu0 %v309
        %2223 = vmatprep.subr.mxu0 0.0
        %2224 = vmatpush1.msra.mxu0 %v308
        %2225 = vmatprep.subr.mxu0 0.0
        %2226 = vmatpush1.msra.mxu0 %v307
        %2227 = vmatprep.subr.mxu0 0.0
        %2228 = vmatpush1.msra.mxu0 %v306
        %2229 = vmatprep.subr.mxu0 0.0
        %2230 = vmatpush1.msra.mxu0 %v305
        %2231 = vmatprep.subr.mxu0 0.0
        %2232 = vmatpush1.msra.mxu0 %v304
        %2233 = vmatprep.subr.mxu0 0.0
        %2234 = vmatpush1.msra.mxu0 %v303
        %2235 = vmatprep.subr.mxu0 0.0
        %2236 = vmatpush1.msra.mxu0 %v302
        %2237 = vmatprep.subr.mxu0 0.0
        %2238 = vmatpush1.msra.mxu0 %v301
        %2239 = vmatprep.subr.mxu0 0.0
        %2240 = vmatpush2.msra.mxu0 0.0
        %2241 = vmatprep.subr.mxu0 0.0
        %2242 = vmatpush2.msra.mxu0 0.0
        %2243 = vmatprep.subr.mxu0 0.0
        %2244 = vmatpush2.msra.mxu0 0.0
        %2245 = vmatprep.subr.mxu0 0.0
        %2246 = vmatpush2.msra.mxu0 0.0
        %2247 = vmatprep.subr.mxu0 0.0
        %2248 = vmatpush2.msra.mxu0 %v328
        %2249 = vmatprep.subr.mxu0 0.0
        %2250 = vmatpush2.msra.mxu0 %v327
        %2251 = vmatprep.subr.mxu0 0.0
        %2252 = vmatpush2.msra.mxu0 %v326
        %2253 = vmatprep.subr.mxu0 0.0
        %2254 = vmatpush2.msra.mxu0 %v325
        %2255 = vmatprep.subr.mxu0 0.0
        %2256 = vmatpush2.msra.mxu0 %v324
        %2257 = vmatprep.subr.mxu0 0.0
        %2258 = vmatpush2.msra.mxu0 %v323
        %2259 = vmatprep.subr.mxu0 0.0
        %2260 = vmatpush2.msra.mxu0 %v322
        %2261 = vmatprep.subr.mxu0 0.0
        %2262 = vmatpush2.msra.mxu0 %v321
        %2263 = vmatprep.subr.mxu0 0.0
        %2264 = vmatpush2.msra.mxu0 %v320
        %2265 = vmatprep.subr.mxu0 0.0
        %2266 = vmatpush2.msra.mxu0 %v319
        %2267 = vmatprep.subr.mxu0 0.0
        %2268 = vmatpush2.msra.mxu0 %v318
        %2269 = vmatprep.subr.mxu0 0.0
        %2270 = vmatpush2.msra.mxu0 %v317
        %2271 = vmatprep.mubr.f32.mxu0 %v2205
        %2272 = vmatmul.mubr.f32.gmra.mxu0 %v2201
        %v2273 = vpop.f32.mrf.mxu0
        %v2274 = vadd.f32 0.0, %v2273
        %v2275 = vpop.f32.mrf.mxu0
        %2276 = vdwg.mxu0
        %v2277 = vmul.f32 %v2274, 0.0051020407
        %v2278 = vadd.f32 %v2277, 1e-05
        %v2279 = vrsqrt.pop %v2278
        %v2281 = vsel %vm1511, %v2279, 0
        %2283 = vmatprep.subr.mxu0 0.0
        %2284 = vmatpush1.xpose.msra.mxu0 %v1561
        %2285 = vmatprep.subr.mxu0 0.0
        %2286 = vmatpush1.xpose.msra.mxu0 %v1558
        %2287 = vmatprep.subr.mxu0 0.0
        %2288 = vmatpush1.xpose.msra.mxu0 %v1555
        %2289 = vmatprep.subr.mxu0 0.0
        %2290 = vmatpush1.xpose.msra.mxu0 %v1552
        %2291 = vmatprep.subr.mxu0 0.0
        %2292 = vmatpush1.xpose.msra.mxu0 %v1549
        %2293 = vmatprep.subr.mxu0 0.0
        %2294 = vmatpush1.xpose.msra.mxu0 %v1546
        %2295 = vmatprep.subr.mxu0 0.0
        %2296 = vmatpush1.xpose.msra.mxu0 %v1543
        %2297 = vmatprep.subr.mxu0 0.0
        %2298 = vmatpush1.xpose.msra.mxu0 %v1540
        %2299 = vmatprep.subr.mxu0 0.0
        %2300 = vmatpush1.xpose.msra.mxu0 %v1537
        %2301 = vmatprep.subr.mxu0 0.0
        %2302 = vmatpush1.xpose.msra.mxu0 %v1534
        %2303 = vmatprep.subr.mxu0 0.0
        %2304 = vmatpush1.xpose.msra.mxu0 %v1531
        %2305 = vmatprep.subr.mxu0 0.0
        %2306 = vmatpush1.xpose.msra.mxu0 %v1528
        %2307 = vmatprep.subr.mxu0 0.0
        %2308 = vmatpush1.xpose.msra.mxu0 %v1525
        %2309 = vmatprep.subr.mxu0 0.0
        %2310 = vmatpush1.xpose.msra.mxu0 %v1522
        %2311 = vmatprep.subr.mxu0 0.0
        %2312 = vmatpush1.xpose.msra.mxu0 %v1519
        %2313 = vmatprep.subr.mxu0 0.0
        %2314 = vmatpush1.xpose.msra.mxu0 %v1516
        %2315 = vmatprep.subr.mxu0 0.0
        %2316 = vmatpush2.xpose.msra.mxu0 0.0
        %2317 = vmatprep.subr.mxu0 0.0
        %2318 = vmatpush2.xpose.msra.mxu0 0.0
        %2319 = vmatprep.subr.mxu0 0.0
        %2320 = vmatpush2.xpose.msra.mxu0 0.0
        %2321 = vmatprep.subr.mxu0 0.0
        %2322 = vmatpush2.xpose.msra.mxu0 0.0
        %2323 = vmatprep.subr.mxu0 0.0
        %2324 = vmatpush2.xpose.msra.mxu0 %v1597
        %2325 = vmatprep.subr.mxu0 0.0
        %2326 = vmatpush2.xpose.msra.mxu0 %v1594
        %2327 = vmatprep.subr.mxu0 0.0
        %2328 = vmatpush2.xpose.msra.mxu0 %v1591
        %2329 = vmatprep.subr.mxu0 0.0
        %2330 = vmatpush2.xpose.msra.mxu0 %v1588
        %2331 = vmatprep.subr.mxu0 0.0
        %2332 = vmatpush2.xpose.msra.mxu0 %v1585
        %2333 = vmatprep.subr.mxu0 0.0
        %2334 = vmatpush2.xpose.msra.mxu0 %v1582
        %2335 = vmatprep.subr.mxu0 0.0
        %2336 = vmatpush2.xpose.msra.mxu0 %v1579
        %2337 = vmatprep.subr.mxu0 0.0
        %2338 = vmatpush2.xpose.msra.mxu0 %v1576
        %2339 = vmatprep.subr.mxu0 0.0
        %2340 = vmatpush2.xpose.msra.mxu0 %v1573
        %2341 = vmatprep.subr.mxu0 0.0
        %2342 = vmatpush2.xpose.msra.mxu0 %v1570
        %2343 = vmatprep.subr.mxu0 0.0
        %2344 = vmatpush2.xpose.msra.mxu0 %v1567
        %2345 = vmatprep.subr.mxu0 0.0
        %2346 = vmatpush2.xpose.msra.mxu0 %v1564
        %2347 = vmatprep.mubr.f32.mxu0 0.0
        %2348 = vmatmul.mubr.f32.gmra.mxu0 %v2281
        %v2349 = vpop.f32.mrf.mxu0
        %v2350 = vadd.f32 0.0, %v2349
        %v2351 = vpop.f32.mrf.mxu0
        %v2352 = vadd.f32 0.0, %v2351
        %2353 = vdwg.mxu0
        %v2354 = vlaneseq
        %v2355 = vshrl.u32 %v2354, 7
        %v2356 = vsub.s32 1, %v2355
        %v2357 = vrot.slane %v300, %v2356
        %v2358 = vlaneseq
        %v2359 = vshrl.u32 %v2358, 7
        %v2360 = vsub.s32 5, %v2359
        %v2361 = vrot.slane %v300, %v2360
        %v2364 = vlaneseq
        %v2365 = vshrl.u32 %v2364, 7
        %v2366 = vsub.s32 1, %v2365
        %v2367 = vrot.slane %v2357, %v2366
        %v2368 = vlaneseq
        %v2369 = vshrl.u32 %v2368, 7
        %v2370 = vsub.s32 1, %v2369
        %v2371 = vrot.slane %v2361, %v2370
        %v2372 = vmul.f32 %v2350, %v2367
        %v2373 = vmul.f32 %v2352, %v2371
        %v2376 = vcombine.low %v2372, %v2373
        %v2378 = vunpack.c.l.s4 1966171168
        %v2379 = vunpack.c.0.s8 %v2378
        %v2380 = vlaneseq
        %v2381 = vshrl.u32 %v2380, 7
        %v2382 = vsub.s32 %v2379, %v2381
        %v2383 = vrot.slane %v2376, %v2382
        %v2384 = vcombine.high %v2383, %v2383
        %v2386 = vunpack.c.l.s4 1966171168
        %v2387 = vunpack.c.0.s8 %v2386
        %v2388 = vlaneseq
        %v2389 = vshrl.u32 %v2388, 7
        %v2390 = vsub.s32 %v2387, %v2389
        %v2391 = vrot.slane %v2383, %v2390
        %v2393 = vunpack.c.l.s4 1966171168
        %v2394 = vunpack.c.0.s8 %v2393
        %v2395 = vlaneseq
        %v2396 = vshrl.u32 %v2395, 7
        %v2397 = vsub.s32 %v2394, %v2396
        %v2398 = vrot.slane %v2384, %v2397
        %v2399 = vcombine.high %v2391, %v2391
        %v2400 = vlaneseq
        %v2401 = vshrl.u32 %v2400, 7
        %v2402 = vsub.s32 0, %v2401
        %v2403 = vrot.slane %v2391, %v2402
        %v2404 = vlaneseq
        %v2405 = vshrl.u32 %v2404, 7
        %v2406 = vsub.s32 1, %v2405
        %v2407 = vrot.slane %v2391, %v2406
        %v2408 = vlaneseq
        %v2409 = vshrl.u32 %v2408, 7
        %v2410 = vsub.s32 0, %v2409
        %v2411 = vrot.slane %v2398, %v2410
        %v2412 = vlaneseq
        %v2413 = vshrl.u32 %v2412, 7
        %v2414 = vsub.s32 1, %v2413
        %v2415 = vrot.slane %v2398, %v2414
        %v2416 = vlaneseq
        %v2417 = vshrl.u32 %v2416, 7
        %v2418 = vsub.s32 0, %v2417
        %v2419 = vrot.slane %v2399, %v2418
        %v2420 = vlaneseq
        %v2421 = vshrl.u32 %v2420, 7
        %v2422 = vsub.s32 1, %v2421
        %v2423 = vrot.slane %v2399, %v2422
        %v2424 = vcombine.low %v2403, %v2407
        %v2425 = vcombine.high %v2403, %v2407
        %v2427 = vunpack.c.l.s4 1966171168
        %v2428 = vunpack.c.0.s8 %v2427
        %v2429 = vlaneseq
        %v2430 = vshrl.u32 %v2429, 7
        %v2431 = vsub.s32 %v2428, %v2430
        %v2432 = vrot.slane %v2424, %v2431
        %v2434 = vunpack.c.l.s4 1966171168
        %v2435 = vunpack.c.0.s8 %v2434
        %v2436 = vlaneseq
        %v2437 = vshrl.u32 %v2436, 7
        %v2438 = vsub.s32 %v2435, %v2437
        %v2439 = vrot.slane %v2425, %v2438
        %v2440 = vcombine.high %v2432, %v2432
        %v2441 = vcombine.high %v2439, %v2439
        %v2443 = vunpack.c.l.s4 1966171168
        %v2444 = vunpack.c.0.s8 %v2443
        %v2445 = vlaneseq
        %v2446 = vshrl.u32 %v2445, 7
        %v2447 = vsub.s32 %v2444, %v2446
        %v2448 = vrot.slane %v2432, %v2447
        %v2450 = vunpack.c.l.s4 1966171168
        %v2451 = vunpack.c.0.s8 %v2450
        %v2452 = vlaneseq
        %v2453 = vshrl.u32 %v2452, 7
        %v2454 = vsub.s32 %v2451, %v2453
        %v2455 = vrot.slane %v2439, %v2454
        %v2457 = vunpack.c.l.s4 1966171168
        %v2458 = vunpack.c.0.s8 %v2457
        %v2459 = vlaneseq
        %v2460 = vshrl.u32 %v2459, 7
        %v2461 = vsub.s32 %v2458, %v2460
        %v2462 = vrot.slane %v2440, %v2461
        %v2464 = vunpack.c.l.s4 1966171168
        %v2465 = vunpack.c.0.s8 %v2464
        %v2466 = vlaneseq
        %v2467 = vshrl.u32 %v2466, 7
        %v2468 = vsub.s32 %v2465, %v2467
        %v2469 = vrot.slane %v2441, %v2468
        %v2470 = vcombine.high %v2448, %v2448
        %v2471 = vcombine.high %v2455, %v2455
        %v2472 = vcombine.high %v2462, %v2462
        %v2473 = vcombine.low %v2411, %v2415
        %v2474 = vcombine.high %v2411, %v2415
        %v2476 = vunpack.c.l.s4 1966171168
        %v2477 = vunpack.c.0.s8 %v2476
        %v2478 = vlaneseq
        %v2479 = vshrl.u32 %v2478, 7
        %v2480 = vsub.s32 %v2477, %v2479
        %v2481 = vrot.slane %v2473, %v2480
        %v2483 = vunpack.c.l.s4 1966171168
        %v2484 = vunpack.c.0.s8 %v2483
        %v2485 = vlaneseq
        %v2486 = vshrl.u32 %v2485, 7
        %v2487 = vsub.s32 %v2484, %v2486
        %v2488 = vrot.slane %v2474, %v2487
        %v2489 = vcombine.high %v2481, %v2481
        %v2490 = vcombine.high %v2488, %v2488
        %v2492 = vunpack.c.l.s4 1966171168
        %v2493 = vunpack.c.0.s8 %v2492
        %v2494 = vlaneseq
        %v2495 = vshrl.u32 %v2494, 7
        %v2496 = vsub.s32 %v2493, %v2495
        %v2497 = vrot.slane %v2481, %v2496
        %v2499 = vunpack.c.l.s4 1966171168
        %v2500 = vunpack.c.0.s8 %v2499
        %v2501 = vlaneseq
        %v2502 = vshrl.u32 %v2501, 7
        %v2503 = vsub.s32 %v2500, %v2502
        %v2504 = vrot.slane %v2488, %v2503
        %v2506 = vunpack.c.l.s4 1966171168
        %v2507 = vunpack.c.0.s8 %v2506
        %v2508 = vlaneseq
        %v2509 = vshrl.u32 %v2508, 7
        %v2510 = vsub.s32 %v2507, %v2509
        %v2511 = vrot.slane %v2489, %v2510
        %v2513 = vunpack.c.l.s4 1966171168
        %v2514 = vunpack.c.0.s8 %v2513
        %v2515 = vlaneseq
        %v2516 = vshrl.u32 %v2515, 7
        %v2517 = vsub.s32 %v2514, %v2516
        %v2518 = vrot.slane %v2490, %v2517
        %v2519 = vcombine.high %v2497, %v2497
        %v2520 = vcombine.high %v2504, %v2504
        %v2521 = vcombine.high %v2511, %v2511
        %v2522 = vcombine.low %v2419, %v2423
        %v2523 = vcombine.high %v2419, %v2423
        %v2525 = vunpack.c.l.s4 1966171168
        %v2526 = vunpack.c.0.s8 %v2525
        %v2527 = vlaneseq
        %v2528 = vshrl.u32 %v2527, 7
        %v2529 = vsub.s32 %v2526, %v2528
        %v2530 = vrot.slane %v2522, %v2529
        %v2532 = vunpack.c.l.s4 1966171168
        %v2533 = vunpack.c.0.s8 %v2532
        %v2534 = vlaneseq
        %v2535 = vshrl.u32 %v2534, 7
        %v2536 = vsub.s32 %v2533, %v2535
        %v2537 = vrot.slane %v2523, %v2536
        %v2538 = vcombine.high %v2530, %v2530
        %v2539 = vcombine.high %v2537, %v2537
        %v2541 = vunpack.c.l.s4 1966171168
        %v2542 = vunpack.c.0.s8 %v2541
        %v2543 = vlaneseq
        %v2544 = vshrl.u32 %v2543, 7
        %v2545 = vsub.s32 %v2542, %v2544
        %v2546 = vrot.slane %v2530, %v2545
        %v2548 = vunpack.c.l.s4 1966171168
        %v2549 = vunpack.c.0.s8 %v2548
        %v2550 = vlaneseq
        %v2551 = vshrl.u32 %v2550, 7
        %v2552 = vsub.s32 %v2549, %v2551
        %v2553 = vrot.slane %v2537, %v2552
        %v2555 = vunpack.c.l.s4 1966171168
        %v2556 = vunpack.c.0.s8 %v2555
        %v2557 = vlaneseq
        %v2558 = vshrl.u32 %v2557, 7
        %v2559 = vsub.s32 %v2556, %v2558
        %v2560 = vrot.slane %v2538, %v2559
        %v2562 = vunpack.c.l.s4 1966171168
        %v2563 = vunpack.c.0.s8 %v2562
        %v2564 = vlaneseq
        %v2565 = vshrl.u32 %v2564, 7
        %v2566 = vsub.s32 %v2563, %v2565
        %v2567 = vrot.slane %v2539, %v2566
        %v2568 = vcombine.high %v2546, %v2546
        %v2569 = vcombine.high %v2553, %v2553
        %v2570 = vcombine.high %v2560, %v2560
        %v2592 = vmul.f32 %v1888, %v2448
        %v2593 = vmul.f32 %v1889, %v2462
        %v2594 = vmul.f32 %v1890, %v2470
        %v2595 = vmul.f32 %v1891, %v2472
        %v2596 = vmul.f32 %v1892, %v2455
        %v2597 = vmul.f32 %v1893, %v2469
        %v2598 = vmul.f32 %v1894, %v2471
        %v2599 = vmul.f32 %v1895, %v2497
        %v2600 = vmul.f32 %v1896, %v2511
        %v2601 = vmul.f32 %v1897, %v2519
        %v2602 = vmul.f32 %v1898, %v2521
        %v2603 = vmul.f32 %v1899, %v2504
        %v2604 = vmul.f32 %v1900, %v2518
        %v2605 = vmul.f32 %v1901, %v2520
        %v2606 = vmul.f32 %v1902, %v2546
        %v2607 = vmul.f32 %v1903, %v2560
        %v2608 = vmul.f32 %v1904, %v2568
        %v2609 = vmul.f32 %v1905, %v2570
        %v2610 = vmul.f32 %v1906, %v2553
        %v2611 = vmul.f32 %v1907, %v2567
        %v2612 = vmul.f32 %v1908, %v2569
        %v2613 = vlaneseq
        %v2614 = vshrl.u32 %v2613, 7
        %v2615 = vsub.s32 2, %v2614
        %v2616 = vrot.slane %v300, %v2615
        %v2617 = vlaneseq
        %v2618 = vshrl.u32 %v2617, 7
        %v2619 = vsub.s32 6, %v2618
        %v2620 = vrot.slane %v300, %v2619
        %v2623 = vlaneseq
        %v2624 = vshrl.u32 %v2623, 7
        %v2625 = vsub.s32 2, %v2624
        %v2626 = vrot.slane %v2616, %v2625
        %v2627 = vlaneseq
        %v2628 = vshrl.u32 %v2627, 7
        %v2629 = vsub.s32 2, %v2628
        %v2630 = vrot.slane %v2620, %v2629
        %v2633 = vcombine.low %v2626, %v2630
        %v2634 = vcombine.high %v2626, %v2630
        %v2636 = vunpack.c.l.s4 1966171168
        %v2637 = vunpack.c.0.s8 %v2636
        %v2638 = vlaneseq
        %v2639 = vshrl.u32 %v2638, 7
        %v2640 = vsub.s32 %v2637, %v2639
        %v2641 = vrot.slane %v2633, %v2640
        %v2643 = vunpack.c.l.s4 1966171168
        %v2644 = vunpack.c.0.s8 %v2643
        %v2645 = vlaneseq
        %v2646 = vshrl.u32 %v2645, 7
        %v2647 = vsub.s32 %v2644, %v2646
        %v2648 = vrot.slane %v2634, %v2647
        %v2649 = vcombine.high %v2641, %v2641
        %v2650 = vcombine.high %v2648, %v2648
        %v2652 = vunpack.c.l.s4 1966171168
        %v2653 = vunpack.c.0.s8 %v2652
        %v2654 = vlaneseq
        %v2655 = vshrl.u32 %v2654, 7
        %v2656 = vsub.s32 %v2653, %v2655
        %v2657 = vrot.slane %v2641, %v2656
        %v2659 = vunpack.c.l.s4 1966171168
        %v2660 = vunpack.c.0.s8 %v2659
        %v2661 = vlaneseq
        %v2662 = vshrl.u32 %v2661, 7
        %v2663 = vsub.s32 %v2660, %v2662
        %v2664 = vrot.slane %v2648, %v2663
        %v2666 = vunpack.c.l.s4 1966171168
        %v2667 = vunpack.c.0.s8 %v2666
        %v2668 = vlaneseq
        %v2669 = vshrl.u32 %v2668, 7
        %v2670 = vsub.s32 %v2667, %v2669
        %v2671 = vrot.slane %v2649, %v2670
        %v2673 = vunpack.c.l.s4 1966171168
        %v2674 = vunpack.c.0.s8 %v2673
        %v2675 = vlaneseq
        %v2676 = vshrl.u32 %v2675, 7
        %v2677 = vsub.s32 %v2674, %v2676
        %v2678 = vrot.slane %v2650, %v2677
        %v2679 = vcombine.high %v2657, %v2657
        %v2680 = vcombine.high %v2664, %v2664
        %v2681 = vcombine.high %v2671, %v2671
        %v2689 = vadd.f32 %v2592, %v2657
        %v2690 = vadd.f32 %v2593, %v2671
        %v2691 = vadd.f32 %v2594, %v2679
        %v2692 = vadd.f32 %v2595, %v2681
        %v2693 = vadd.f32 %v2596, %v2664
        %v2694 = vadd.f32 %v2597, %v2678
        %v2695 = vadd.f32 %v2598, %v2680
        %v2696 = vadd.f32 %v2599, %v2657
        %v2697 = vadd.f32 %v2600, %v2671
        %v2698 = vadd.f32 %v2601, %v2679
        %v2699 = vadd.f32 %v2602, %v2681
        %v2700 = vadd.f32 %v2603, %v2664
        %v2701 = vadd.f32 %v2604, %v2678
        %v2702 = vadd.f32 %v2605, %v2680
        %v2703 = vadd.f32 %v2606, %v2657
        %v2704 = vadd.f32 %v2607, %v2671
        %v2705 = vadd.f32 %v2608, %v2679
        %v2706 = vadd.f32 %v2609, %v2681
        %v2707 = vadd.f32 %v2610, %v2664
        %v2708 = vadd.f32 %v2611, %v2678
        %v2709 = vadd.f32 %v2612, %v2680
        %v2710 = vxor.u32 %v2689, 2147483648
        %v2711 = vxor.u32 %v2690, 2147483648
        %v2712 = vxor.u32 %v2691, 2147483648
        %v2713 = vxor.u32 %v2692, 2147483648
        %v2714 = vxor.u32 %v2693, 2147483648
        %v2715 = vxor.u32 %v2694, 2147483648
        %v2716 = vxor.u32 %v2695, 2147483648
        %v2717 = vxor.u32 %v2696, 2147483648
        %v2718 = vxor.u32 %v2697, 2147483648
        %v2719 = vxor.u32 %v2698, 2147483648
        %v2720 = vxor.u32 %v2699, 2147483648
        %v2721 = vxor.u32 %v2700, 2147483648
        %v2722 = vxor.u32 %v2701, 2147483648
        %v2723 = vxor.u32 %v2702, 2147483648
        %v2724 = vxor.u32 %v2703, 2147483648
        %v2725 = vxor.u32 %v2704, 2147483648
        %v2726 = vxor.u32 %v2705, 2147483648
        %v2727 = vxor.u32 %v2706, 2147483648
        %v2728 = vxor.u32 %v2707, 2147483648
        %v2729 = vxor.u32 %v2708, 2147483648
        %v2730 = vxor.u32 %v2709, 2147483648
        %v2731 = vmul.f32 %v2710, 1.442695
        %v2732 = vpow.pop %v2731
        %v2733 = vmul.f32 %v2711, 1.442695
        %v2734 = vpow.pop %v2733
        %v2735 = vmul.f32 %v2712, 1.442695
        %v2736 = vpow.pop %v2735
        %v2737 = vmul.f32 %v2713, 1.442695
        %v2738 = vpow.pop %v2737
        %v2739 = vmul.f32 %v2714, 1.442695
        %v2740 = vpow.pop %v2739
        %v2741 = vmul.f32 %v2715, 1.442695
        %v2742 = vpow.pop %v2741
        %v2743 = vmul.f32 %v2716, 1.442695
        %v2744 = vpow.pop %v2743
        %v2745 = vmul.f32 %v2717, 1.442695
        %v2746 = vpow.pop %v2745
        %v2747 = vmul.f32 %v2718, 1.442695
        %v2748 = vpow.pop %v2747
        %v2749 = vmul.f32 %v2719, 1.442695
        %v2750 = vpow.pop %v2749
        %v2751 = vmul.f32 %v2720, 1.442695
        %v2752 = vpow.pop %v2751
        %v2753 = vmul.f32 %v2721, 1.442695
        %v2754 = vpow.pop %v2753
        %v2755 = vmul.f32 %v2722, 1.442695
        %v2756 = vpow.pop %v2755
        %v2757 = vmul.f32 %v2723, 1.442695
        %v2758 = vpow.pop %v2757
        %v2759 = vmul.f32 %v2724, 1.442695
        %v2760 = vpow.pop %v2759
        %v2761 = vmul.f32 %v2725, 1.442695
        %v2762 = vpow.pop %v2761
        %v2763 = vmul.f32 %v2726, 1.442695
        %v2764 = vpow.pop %v2763
        %v2765 = vmul.f32 %v2727, 1.442695
        %v2766 = vpow.pop %v2765
        %v2767 = vmul.f32 %v2728, 1.442695
        %v2768 = vpow.pop %v2767
        %v2769 = vmul.f32 %v2729, 1.442695
        %v2770 = vpow.pop %v2769
        %v2771 = vmul.f32 %v2730, 1.442695
        %v2772 = vpow.pop %v2771
        %v2773 = vadd.f32 %v2732, 1.0
        %v2774 = vadd.f32 %v2734, 1.0
        %v2775 = vadd.f32 %v2736, 1.0
        %v2776 = vadd.f32 %v2738, 1.0
        %v2777 = vadd.f32 %v2740, 1.0
        %v2778 = vadd.f32 %v2742, 1.0
        %v2779 = vadd.f32 %v2744, 1.0
        %v2780 = vadd.f32 %v2746, 1.0
        %v2781 = vadd.f32 %v2748, 1.0
        %v2782 = vadd.f32 %v2750, 1.0
        %v2783 = vadd.f32 %v2752, 1.0
        %v2784 = vadd.f32 %v2754, 1.0
        %v2785 = vadd.f32 %v2756, 1.0
        %v2786 = vadd.f32 %v2758, 1.0
        %v2787 = vadd.f32 %v2760, 1.0
        %v2788 = vadd.f32 %v2762, 1.0
        %v2789 = vadd.f32 %v2764, 1.0
        %v2790 = vadd.f32 %v2766, 1.0
        %v2791 = vadd.f32 %v2768, 1.0
        %v2792 = vadd.f32 %v2770, 1.0
        %v2793 = vadd.f32 %v2772, 1.0
        %v2794 = vrcp.pop %v2773
        %v2795 = vmul.f32 1.0, %v2794
        %v2796 = vrcp.pop %v2774
        %v2797 = vmul.f32 1.0, %v2796
        %v2798 = vrcp.pop %v2775
        %v2799 = vmul.f32 1.0, %v2798
        %v2800 = vrcp.pop %v2776
        %v2801 = vmul.f32 1.0, %v2800
        %v2802 = vrcp.pop %v2777
        %v2803 = vmul.f32 1.0, %v2802
        %v2804 = vrcp.pop %v2778
        %v2805 = vmul.f32 1.0, %v2804
        %v2806 = vrcp.pop %v2779
        %v2807 = vmul.f32 1.0, %v2806
        %v2808 = vrcp.pop %v2780
        %v2809 = vmul.f32 1.0, %v2808
        %v2810 = vrcp.pop %v2781
        %v2811 = vmul.f32 1.0, %v2810
        %v2812 = vrcp.pop %v2782
        %v2813 = vmul.f32 1.0, %v2812
        %v2814 = vrcp.pop %v2783
        %v2815 = vmul.f32 1.0, %v2814
        %v2816 = vrcp.pop %v2784
        %v2817 = vmul.f32 1.0, %v2816
        %v2818 = vrcp.pop %v2785
        %v2819 = vmul.f32 1.0, %v2818
        %v2820 = vrcp.pop %v2786
        %v2821 = vmul.f32 1.0, %v2820
        %v2822 = vrcp.pop %v2787
        %v2823 = vmul.f32 1.0, %v2822
        %v2824 = vrcp.pop %v2788
        %v2825 = vmul.f32 1.0, %v2824
        %v2826 = vrcp.pop %v2789
        %v2827 = vmul.f32 1.0, %v2826
        %v2828 = vrcp.pop %v2790
        %v2829 = vmul.f32 1.0, %v2828
        %v2830 = vrcp.pop %v2791
        %v2831 = vmul.f32 1.0, %v2830
        %v2832 = vrcp.pop %v2792
        %v2833 = vmul.f32 1.0, %v2832
        %v2834 = vrcp.pop %v2793
        %v2835 = vmul.f32 1.0, %v2834
        %v2836 = vmul.f32 %v2689, %v2795
        %v2837 = vmul.f32 %v2690, %v2797
        %v2838 = vmul.f32 %v2691, %v2799
        %v2839 = vmul.f32 %v2692, %v2801
        %v2840 = vmul.f32 %v2693, %v2803
        %v2841 = vmul.f32 %v2694, %v2805
        %v2842 = vmul.f32 %v2695, %v2807
        %v2843 = vmul.f32 %v2696, %v2809
        %v2844 = vmul.f32 %v2697, %v2811
        %v2845 = vmul.f32 %v2698, %v2813
        %v2846 = vmul.f32 %v2699, %v2815
        %v2847 = vmul.f32 %v2700, %v2817
        %v2848 = vmul.f32 %v2701, %v2819
        %v2849 = vmul.f32 %v2702, %v2821
        %v2850 = vmul.f32 %v2703, %v2823
        %v2851 = vmul.f32 %v2704, %v2825
        %v2852 = vmul.f32 %v2705, %v2827
        %v2853 = vmul.f32 %v2706, %v2829
        %v2854 = vmul.f32 %v2707, %v2831
        %v2855 = vmul.f32 %v2708, %v2833
        %v2856 = vmul.f32 %v2709, %v2835
        %v2878 = vcombine.low %v2836, %v2836
        %v2879 = vcombine.low %v2837, %v2838
        %v2880 = vcombine.low %v2839, %v2840
        %v2881 = vcombine.low %v2841, %v2842
        %v2883 = vunpack.c.l.s4 1966171168
        %v2884 = vunpack.c.0.s8 %v2883
        %v2885 = vlaneseq
        %v2886 = vshrl.u32 %v2885, 7
        %v2887 = vsub.s32 %v2884, %v2886
        %v2888 = vrot.slane %v2878, %v2887
        %v2890 = vunpack.c.l.s4 1966171168
        %v2891 = vunpack.c.0.s8 %v2890
        %v2892 = vlaneseq
        %v2893 = vshrl.u32 %v2892, 7
        %v2894 = vsub.s32 %v2891, %v2893
        %v2895 = vrot.slane %v2879, %v2894
        %v2897 = vunpack.c.l.s4 1966171168
        %v2898 = vunpack.c.0.s8 %v2897
        %v2899 = vlaneseq
        %v2900 = vshrl.u32 %v2899, 7
        %v2901 = vsub.s32 %v2898, %v2900
        %v2902 = vrot.slane %v2880, %v2901
        %v2904 = vunpack.c.l.s4 1966171168
        %v2905 = vunpack.c.0.s8 %v2904
        %v2906 = vlaneseq
        %v2907 = vshrl.u32 %v2906, 7
        %v2908 = vsub.s32 %v2905, %v2907
        %v2909 = vrot.slane %v2881, %v2908
        %v2910 = vcombine.low %v2888, %v2895
        %v2911 = vcombine.high %v2888, %v2895
        %v2912 = vcombine.low %v2902, %v2909
        %v2913 = vcombine.high %v2902, %v2909
        %v2915 = vunpack.c.l.s4 1966171168
        %v2916 = vunpack.c.0.s8 %v2915
        %v2917 = vlaneseq
        %v2918 = vshrl.u32 %v2917, 7
        %v2919 = vsub.s32 %v2916, %v2918
        %v2920 = vrot.slane %v2910, %v2919
        %v2922 = vunpack.c.l.s4 1966171168
        %v2923 = vunpack.c.0.s8 %v2922
        %v2924 = vlaneseq
        %v2925 = vshrl.u32 %v2924, 7
        %v2926 = vsub.s32 %v2923, %v2925
        %v2927 = vrot.slane %v2911, %v2926
        %v2929 = vunpack.c.l.s4 1966171168
        %v2930 = vunpack.c.0.s8 %v2929
        %v2931 = vlaneseq
        %v2932 = vshrl.u32 %v2931, 7
        %v2933 = vsub.s32 %v2930, %v2932
        %v2934 = vrot.slane %v2912, %v2933
        %v2936 = vunpack.c.l.s4 1966171168
        %v2937 = vunpack.c.0.s8 %v2936
        %v2938 = vlaneseq
        %v2939 = vshrl.u32 %v2938, 7
        %v2940 = vsub.s32 %v2937, %v2939
        %v2941 = vrot.slane %v2913, %v2940
        %v2942 = vcombine.low %v2920, %v2934
        %v2943 = vcombine.low %v2927, %v2941
        %v2944 = vcombine.low %v2843, %v2843
        %v2945 = vcombine.low %v2844, %v2845
        %v2946 = vcombine.low %v2846, %v2847
        %v2947 = vcombine.low %v2848, %v2849
        %v2949 = vunpack.c.l.s4 1966171168
        %v2950 = vunpack.c.0.s8 %v2949
        %v2951 = vlaneseq
        %v2952 = vshrl.u32 %v2951, 7
        %v2953 = vsub.s32 %v2950, %v2952
        %v2954 = vrot.slane %v2944, %v2953
        %v2956 = vunpack.c.l.s4 1966171168
        %v2957 = vunpack.c.0.s8 %v2956
        %v2958 = vlaneseq
        %v2959 = vshrl.u32 %v2958, 7
        %v2960 = vsub.s32 %v2957, %v2959
        %v2961 = vrot.slane %v2945, %v2960
        %v2963 = vunpack.c.l.s4 1966171168
        %v2964 = vunpack.c.0.s8 %v2963
        %v2965 = vlaneseq
        %v2966 = vshrl.u32 %v2965, 7
        %v2967 = vsub.s32 %v2964, %v2966
        %v2968 = vrot.slane %v2946, %v2967
        %v2970 = vunpack.c.l.s4 1966171168
        %v2971 = vunpack.c.0.s8 %v2970
        %v2972 = vlaneseq
        %v2973 = vshrl.u32 %v2972, 7
        %v2974 = vsub.s32 %v2971, %v2973
        %v2975 = vrot.slane %v2947, %v2974
        %v2976 = vcombine.low %v2954, %v2961
        %v2977 = vcombine.high %v2954, %v2961
        %v2978 = vcombine.low %v2968, %v2975
        %v2979 = vcombine.high %v2968, %v2975
        %v2981 = vunpack.c.l.s4 1966171168
        %v2982 = vunpack.c.0.s8 %v2981
        %v2983 = vlaneseq
        %v2984 = vshrl.u32 %v2983, 7
        %v2985 = vsub.s32 %v2982, %v2984
        %v2986 = vrot.slane %v2976, %v2985
        %v2988 = vunpack.c.l.s4 1966171168
        %v2989 = vunpack.c.0.s8 %v2988
        %v2990 = vlaneseq
        %v2991 = vshrl.u32 %v2990, 7
        %v2992 = vsub.s32 %v2989, %v2991
        %v2993 = vrot.slane %v2977, %v2992
        %v2995 = vunpack.c.l.s4 1966171168
        %v2996 = vunpack.c.0.s8 %v2995
        %v2997 = vlaneseq
        %v2998 = vshrl.u32 %v2997, 7
        %v2999 = vsub.s32 %v2996, %v2998
        %v3000 = vrot.slane %v2978, %v2999
        %v3002 = vunpack.c.l.s4 1966171168
        %v3003 = vunpack.c.0.s8 %v3002
        %v3004 = vlaneseq
        %v3005 = vshrl.u32 %v3004, 7
        %v3006 = vsub.s32 %v3003, %v3005
        %v3007 = vrot.slane %v2979, %v3006
        %v3008 = vcombine.low %v2986, %v3000
        %v3009 = vcombine.low %v2993, %v3007
        %v3010 = vcombine.low %v2850, %v2850
        %v3011 = vcombine.low %v2851, %v2852
        %v3012 = vcombine.low %v2853, %v2854
        %v3013 = vcombine.low %v2855, %v2856
        %v3015 = vunpack.c.l.s4 1966171168
        %v3016 = vunpack.c.0.s8 %v3015
        %v3017 = vlaneseq
        %v3018 = vshrl.u32 %v3017, 7
        %v3019 = vsub.s32 %v3016, %v3018
        %v3020 = vrot.slane %v3010, %v3019
        %v3022 = vunpack.c.l.s4 1966171168
        %v3023 = vunpack.c.0.s8 %v3022
        %v3024 = vlaneseq
        %v3025 = vshrl.u32 %v3024, 7
        %v3026 = vsub.s32 %v3023, %v3025
        %v3027 = vrot.slane %v3011, %v3026
        %v3029 = vunpack.c.l.s4 1966171168
        %v3030 = vunpack.c.0.s8 %v3029
        %v3031 = vlaneseq
        %v3032 = vshrl.u32 %v3031, 7
        %v3033 = vsub.s32 %v3030, %v3032
        %v3034 = vrot.slane %v3012, %v3033
        %v3036 = vunpack.c.l.s4 1966171168
        %v3037 = vunpack.c.0.s8 %v3036
        %v3038 = vlaneseq
        %v3039 = vshrl.u32 %v3038, 7
        %v3040 = vsub.s32 %v3037, %v3039
        %v3041 = vrot.slane %v3013, %v3040
        %v3042 = vcombine.low %v3020, %v3027
        %v3043 = vcombine.high %v3020, %v3027
        %v3044 = vcombine.low %v3034, %v3041
        %v3045 = vcombine.high %v3034, %v3041
        %v3047 = vunpack.c.l.s4 1966171168
        %v3048 = vunpack.c.0.s8 %v3047
        %v3049 = vlaneseq
        %v3050 = vshrl.u32 %v3049, 7
        %v3051 = vsub.s32 %v3048, %v3050
        %v3052 = vrot.slane %v3042, %v3051
        %v3054 = vunpack.c.l.s4 1966171168
        %v3055 = vunpack.c.0.s8 %v3054
        %v3056 = vlaneseq
        %v3057 = vshrl.u32 %v3056, 7
        %v3058 = vsub.s32 %v3055, %v3057
        %v3059 = vrot.slane %v3043, %v3058
        %v3061 = vunpack.c.l.s4 1966171168
        %v3062 = vunpack.c.0.s8 %v3061
        %v3063 = vlaneseq
        %v3064 = vshrl.u32 %v3063, 7
        %v3065 = vsub.s32 %v3062, %v3064
        %v3066 = vrot.slane %v3044, %v3065
        %v3068 = vunpack.c.l.s4 1966171168
        %v3069 = vunpack.c.0.s8 %v3068
        %v3070 = vlaneseq
        %v3071 = vshrl.u32 %v3070, 7
        %v3072 = vsub.s32 %v3069, %v3071
        %v3073 = vrot.slane %v3045, %v3072
        %v3074 = vcombine.low %v3052, %v3066
        %v3075 = vcombine.low %v3059, %v3073
        %vm3082 = vcmask 1040384
        %v3083 = vsel %vm3082, 0.0, %v2942
        %v3084 = vsel %vm3082, 0.0, %v2943
        %v3085 = vsel %vm3082, 0.0, %v3008
        %v3086 = vsel %vm3082, 0.0, %v3009
        %v3087 = vsel %vm3082, 0.0, %v3074
        %v3088 = vsel %vm3082, 0.0, %v3075
        %v3095 = vrot.slane %v3083, 1
        %v3096 = vrot.slane %v3084, 1
        %v3097 = vrot.slane %v3085, 1
        %v3098 = vrot.slane %v3086, 1
        %v3099 = vrot.slane %v3087, 1
        %v3100 = vrot.slane %v3088, 1
        %3101 = vrot.lane.b32.xlu0 %v3095, 96
        %v3102 = vpop.permute.xlu0 %3101
        %3103 = vrot.lane.b32.xlu0 %v3096, 96
        %v3104 = vpop.permute.xlu0 %3103
        %3105 = vrot.lane.b32.xlu0 %v3097, 96
        %v3106 = vpop.permute.xlu0 %3105
        %3107 = vrot.lane.b32.xlu0 %v3098, 96
        %v3108 = vpop.permute.xlu0 %3107
        %3109 = vrot.lane.b32.xlu0 %v3099, 96
        %v3110 = vpop.permute.xlu0 %3109
        %3111 = vrot.lane.b32.xlu0 %v3100, 96
        %v3112 = vpop.permute.xlu0 %3111
        %v3113 = vsel %vm1437, %v3102, %v3104
        %v3114 = vsel %vm1437, %v3106, %v3108
        %v3115 = vsel %vm1437, %v3110, %v3112
        %v3122 = vrot.slane %v3083, 2
        %v3123 = vsel %vm365, %v3122, %v367
        %v3124 = vrot.slane %v3084, 2
        %v3125 = vsel %vm365, %v3124, %v367
        %v3126 = vrot.slane %v3085, 2
        %v3127 = vsel %vm365, %v3126, %v367
        %v3128 = vrot.slane %v3086, 2
        %v3129 = vsel %vm365, %v3128, %v367
        %v3130 = vrot.slane %v3087, 2
        %v3131 = vsel %vm365, %v3130, %v367
        %v3132 = vrot.slane %v3088, 2
        %v3133 = vsel %vm365, %v3132, %v367
        %3134 = vrot.lane.b32.xlu0 %v3123, 64
        %v3135 = vpop.permute.xlu0 %3134
        %3136 = vrot.lane.b32.xlu0 %v3125, 64
        %v3137 = vpop.permute.xlu0 %3136
        %3138 = vrot.lane.b32.xlu0 %v3127, 64
        %v3139 = vpop.permute.xlu0 %3138
        %3140 = vrot.lane.b32.xlu0 %v3129, 64
        %v3141 = vpop.permute.xlu0 %3140
        %3142 = vrot.lane.b32.xlu0 %v3131, 64
        %v3143 = vpop.permute.xlu0 %3142
        %3144 = vrot.lane.b32.xlu0 %v3133, 64
        %v3145 = vpop.permute.xlu0 %3144
        %v3146 = vsel %vm393, %v3135, %v3137
        %v3147 = vsel %vm393, %v3139, %v3141
        %v3148 = vsel %vm393, %v3143, %v3145
        %v3152 = vsel %vm1437, %v3084, %v3102
        %v3153 = vsel %vm1437, %v3086, %v3106
        %v3154 = vsel %vm1437, %v3088, %v3110
        %v3155 = vsel %vm393, %v3104, %v3135
        %v3156 = vsel %vm393, %v3108, %v3139
        %v3157 = vsel %vm393, %v3112, %v3143
        %v3164 = vcombine.low %v3083, %v3152
        %v3165 = vcombine.high %v3083, %v3152
        %v3166 = vcombine.low %v3113, %v3155
        %v3167 = vcombine.high %v3113, %v3155
        %v3168 = vcombine.low %v3146, %v3137
        %v3169 = vcombine.high %v3146, %v3137
        %v3171 = vunpack.c.l.s4 1966171168
        %v3172 = vunpack.c.0.s8 %v3171
        %v3173 = vlaneseq
        %v3174 = vshrl.u32 %v3173, 7
        %v3175 = vsub.s32 %v3172, %v3174
        %v3176 = vrot.slane %v3164, %v3175
        %v3178 = vunpack.c.l.s4 1966171168
        %v3179 = vunpack.c.0.s8 %v3178
        %v3180 = vlaneseq
        %v3181 = vshrl.u32 %v3180, 7
        %v3182 = vsub.s32 %v3179, %v3181
        %v3183 = vrot.slane %v3165, %v3182
        %v3185 = vunpack.c.l.s4 1966171168
        %v3186 = vunpack.c.0.s8 %v3185
        %v3187 = vlaneseq
        %v3188 = vshrl.u32 %v3187, 7
        %v3189 = vsub.s32 %v3186, %v3188
        %v3190 = vrot.slane %v3166, %v3189
        %v3192 = vunpack.c.l.s4 1966171168
        %v3193 = vunpack.c.0.s8 %v3192
        %v3194 = vlaneseq
        %v3195 = vshrl.u32 %v3194, 7
        %v3196 = vsub.s32 %v3193, %v3195
        %v3197 = vrot.slane %v3167, %v3196
        %v3199 = vunpack.c.l.s4 1966171168
        %v3200 = vunpack.c.0.s8 %v3199
        %v3201 = vlaneseq
        %v3202 = vshrl.u32 %v3201, 7
        %v3203 = vsub.s32 %v3200, %v3202
        %v3204 = vrot.slane %v3168, %v3203
        %v3206 = vunpack.c.l.s4 1966171168
        %v3207 = vunpack.c.0.s8 %v3206
        %v3208 = vlaneseq
        %v3209 = vshrl.u32 %v3208, 7
        %v3210 = vsub.s32 %v3207, %v3209
        %v3211 = vrot.slane %v3169, %v3210
        %v3212 = vcombine.low %v3176, %v3190
        %v3213 = vcombine.high %v3176, %v3190
        %v3214 = vcombine.low %v3183, %v3197
        %v3215 = vcombine.high %v3183, %v3197
        %v3216 = vcombine.high %v3204, %v3204
        %v3217 = vcombine.high %v3211, %v3211
        %v3219 = vunpack.c.l.s4 1966171168
        %v3220 = vunpack.c.0.s8 %v3219
        %v3221 = vlaneseq
        %v3222 = vshrl.u32 %v3221, 7
        %v3223 = vsub.s32 %v3220, %v3222
        %v3224 = vrot.slane %v3212, %v3223
        %v3226 = vunpack.c.l.s4 1966171168
        %v3227 = vunpack.c.0.s8 %v3226
        %v3228 = vlaneseq
        %v3229 = vshrl.u32 %v3228, 7
        %v3230 = vsub.s32 %v3227, %v3229
        %v3231 = vrot.slane %v3214, %v3230
        %v3233 = vunpack.c.l.s4 1966171168
        %v3234 = vunpack.c.0.s8 %v3233
        %v3235 = vlaneseq
        %v3236 = vshrl.u32 %v3235, 7
        %v3237 = vsub.s32 %v3234, %v3236
        %v3238 = vrot.slane %v3213, %v3237
        %v3240 = vunpack.c.l.s4 1966171168
        %v3241 = vunpack.c.0.s8 %v3240
        %v3242 = vlaneseq
        %v3243 = vshrl.u32 %v3242, 7
        %v3244 = vsub.s32 %v3241, %v3243
        %v3245 = vrot.slane %v3215, %v3244
        %v3247 = vunpack.c.l.s4 1966171168
        %v3248 = vunpack.c.0.s8 %v3247
        %v3249 = vlaneseq
        %v3250 = vshrl.u32 %v3249, 7
        %v3251 = vsub.s32 %v3248, %v3250
        %v3252 = vrot.slane %v3204, %v3251
        %v3254 = vunpack.c.l.s4 1966171168
        %v3255 = vunpack.c.0.s8 %v3254
        %v3256 = vlaneseq
        %v3257 = vshrl.u32 %v3256, 7
        %v3258 = vsub.s32 %v3255, %v3257
        %v3259 = vrot.slane %v3211, %v3258
        %v3261 = vunpack.c.l.s4 1966171168
        %v3262 = vunpack.c.0.s8 %v3261
        %v3263 = vlaneseq
        %v3264 = vshrl.u32 %v3263, 7
        %v3265 = vsub.s32 %v3262, %v3264
        %v3266 = vrot.slane %v3216, %v3265
        %v3268 = vunpack.c.l.s4 1966171168
        %v3269 = vunpack.c.0.s8 %v3268
        %v3270 = vlaneseq
        %v3271 = vshrl.u32 %v3270, 7
        %v3272 = vsub.s32 %v3269, %v3271
        %v3273 = vrot.slane %v3217, %v3272
        %v3274 = vcombine.low %v3224, %v3252
        %v3275 = vcombine.high %v3224, %v3252
        %v3276 = vcombine.low %v3231, %v3259
        %v3277 = vcombine.high %v3231, %v3259
        %v3278 = vcombine.low %v3238, %v3266
        %v3279 = vcombine.high %v3238, %v3266
        %v3280 = vcombine.low %v3245, %v3273
        %v3281 = vcombine.low %v3085, %v3153
        %v3282 = vcombine.high %v3085, %v3153
        %v3283 = vcombine.low %v3114, %v3156
        %v3284 = vcombine.high %v3114, %v3156
        %v3285 = vcombine.low %v3147, %v3141
        %v3286 = vcombine.high %v3147, %v3141
        %v3288 = vunpack.c.l.s4 1966171168
        %v3289 = vunpack.c.0.s8 %v3288
        %v3290 = vlaneseq
        %v3291 = vshrl.u32 %v3290, 7
        %v3292 = vsub.s32 %v3289, %v3291
        %v3293 = vrot.slane %v3281, %v3292
        %v3295 = vunpack.c.l.s4 1966171168
        %v3296 = vunpack.c.0.s8 %v3295
        %v3297 = vlaneseq
        %v3298 = vshrl.u32 %v3297, 7
        %v3299 = vsub.s32 %v3296, %v3298
        %v3300 = vrot.slane %v3282, %v3299
        %v3302 = vunpack.c.l.s4 1966171168
        %v3303 = vunpack.c.0.s8 %v3302
        %v3304 = vlaneseq
        %v3305 = vshrl.u32 %v3304, 7
        %v3306 = vsub.s32 %v3303, %v3305
        %v3307 = vrot.slane %v3283, %v3306
        %v3309 = vunpack.c.l.s4 1966171168
        %v3310 = vunpack.c.0.s8 %v3309
        %v3311 = vlaneseq
        %v3312 = vshrl.u32 %v3311, 7
        %v3313 = vsub.s32 %v3310, %v3312
        %v3314 = vrot.slane %v3284, %v3313
        %v3316 = vunpack.c.l.s4 1966171168
        %v3317 = vunpack.c.0.s8 %v3316
        %v3318 = vlaneseq
        %v3319 = vshrl.u32 %v3318, 7
        %v3320 = vsub.s32 %v3317, %v3319
        %v3321 = vrot.slane %v3285, %v3320
        %v3323 = vunpack.c.l.s4 1966171168
        %v3324 = vunpack.c.0.s8 %v3323
        %v3325 = vlaneseq
        %v3326 = vshrl.u32 %v3325, 7
        %v3327 = vsub.s32 %v3324, %v3326
        %v3328 = vrot.slane %v3286, %v3327
        %v3329 = vcombine.low %v3293, %v3307
        %v3330 = vcombine.high %v3293, %v3307
        %v3331 = vcombine.low %v3300, %v3314
        %v3332 = vcombine.high %v3300, %v3314
        %v3333 = vcombine.high %v3321, %v3321
        %v3334 = vcombine.high %v3328, %v3328
        %v3336 = vunpack.c.l.s4 1966171168
        %v3337 = vunpack.c.0.s8 %v3336
        %v3338 = vlaneseq
        %v3339 = vshrl.u32 %v3338, 7
        %v3340 = vsub.s32 %v3337, %v3339
        %v3341 = vrot.slane %v3329, %v3340
        %v3343 = vunpack.c.l.s4 1966171168
        %v3344 = vunpack.c.0.s8 %v3343
        %v3345 = vlaneseq
        %v3346 = vshrl.u32 %v3345, 7
        %v3347 = vsub.s32 %v3344, %v3346
        %v3348 = vrot.slane %v3331, %v3347
        %v3350 = vunpack.c.l.s4 1966171168
        %v3351 = vunpack.c.0.s8 %v3350
        %v3352 = vlaneseq
        %v3353 = vshrl.u32 %v3352, 7
        %v3354 = vsub.s32 %v3351, %v3353
        %v3355 = vrot.slane %v3330, %v3354
        %v3357 = vunpack.c.l.s4 1966171168
        %v3358 = vunpack.c.0.s8 %v3357
        %v3359 = vlaneseq
        %v3360 = vshrl.u32 %v3359, 7
        %v3361 = vsub.s32 %v3358, %v3360
        %v3362 = vrot.slane %v3332, %v3361
        %v3364 = vunpack.c.l.s4 1966171168
        %v3365 = vunpack.c.0.s8 %v3364
        %v3366 = vlaneseq
        %v3367 = vshrl.u32 %v3366, 7
        %v3368 = vsub.s32 %v3365, %v3367
        %v3369 = vrot.slane %v3321, %v3368
        %v3371 = vunpack.c.l.s4 1966171168
        %v3372 = vunpack.c.0.s8 %v3371
        %v3373 = vlaneseq
        %v3374 = vshrl.u32 %v3373, 7
        %v3375 = vsub.s32 %v3372, %v3374
        %v3376 = vrot.slane %v3328, %v3375
        %v3378 = vunpack.c.l.s4 1966171168
        %v3379 = vunpack.c.0.s8 %v3378
        %v3380 = vlaneseq
        %v3381 = vshrl.u32 %v3380, 7
        %v3382 = vsub.s32 %v3379, %v3381
        %v3383 = vrot.slane %v3333, %v3382
        %v3385 = vunpack.c.l.s4 1966171168
        %v3386 = vunpack.c.0.s8 %v3385
        %v3387 = vlaneseq
        %v3388 = vshrl.u32 %v3387, 7
        %v3389 = vsub.s32 %v3386, %v3388
        %v3390 = vrot.slane %v3334, %v3389
        %v3391 = vcombine.low %v3341, %v3369
        %v3392 = vcombine.high %v3341, %v3369
        %v3393 = vcombine.low %v3348, %v3376
        %v3394 = vcombine.high %v3348, %v3376
        %v3395 = vcombine.low %v3355, %v3383
        %v3396 = vcombine.high %v3355, %v3383
        %v3397 = vcombine.low %v3362, %v3390
        %v3398 = vcombine.low %v3087, %v3154
        %v3399 = vcombine.high %v3087, %v3154
        %v3400 = vcombine.low %v3115, %v3157
        %v3401 = vcombine.high %v3115, %v3157
        %v3402 = vcombine.low %v3148, %v3145
        %v3403 = vcombine.high %v3148, %v3145
        %v3405 = vunpack.c.l.s4 1966171168
        %v3406 = vunpack.c.0.s8 %v3405
        %v3407 = vlaneseq
        %v3408 = vshrl.u32 %v3407, 7
        %v3409 = vsub.s32 %v3406, %v3408
        %v3410 = vrot.slane %v3398, %v3409
        %v3412 = vunpack.c.l.s4 1966171168
        %v3413 = vunpack.c.0.s8 %v3412
        %v3414 = vlaneseq
        %v3415 = vshrl.u32 %v3414, 7
        %v3416 = vsub.s32 %v3413, %v3415
        %v3417 = vrot.slane %v3399, %v3416
        %v3419 = vunpack.c.l.s4 1966171168
        %v3420 = vunpack.c.0.s8 %v3419
        %v3421 = vlaneseq
        %v3422 = vshrl.u32 %v3421, 7
        %v3423 = vsub.s32 %v3420, %v3422
        %v3424 = vrot.slane %v3400, %v3423
        %v3426 = vunpack.c.l.s4 1966171168
        %v3427 = vunpack.c.0.s8 %v3426
        %v3428 = vlaneseq
        %v3429 = vshrl.u32 %v3428, 7
        %v3430 = vsub.s32 %v3427, %v3429
        %v3431 = vrot.slane %v3401, %v3430
        %v3433 = vunpack.c.l.s4 1966171168
        %v3434 = vunpack.c.0.s8 %v3433
        %v3435 = vlaneseq
        %v3436 = vshrl.u32 %v3435, 7
        %v3437 = vsub.s32 %v3434, %v3436
        %v3438 = vrot.slane %v3402, %v3437
        %v3440 = vunpack.c.l.s4 1966171168
        %v3441 = vunpack.c.0.s8 %v3440
        %v3442 = vlaneseq
        %v3443 = vshrl.u32 %v3442, 7
        %v3444 = vsub.s32 %v3441, %v3443
        %v3445 = vrot.slane %v3403, %v3444
        %v3446 = vcombine.low %v3410, %v3424
        %v3447 = vcombine.high %v3410, %v3424
        %v3448 = vcombine.low %v3417, %v3431
        %v3449 = vcombine.high %v3417, %v3431
        %v3450 = vcombine.high %v3438, %v3438
        %v3451 = vcombine.high %v3445, %v3445
        %v3453 = vunpack.c.l.s4 1966171168
        %v3454 = vunpack.c.0.s8 %v3453
        %v3455 = vlaneseq
        %v3456 = vshrl.u32 %v3455, 7
        %v3457 = vsub.s32 %v3454, %v3456
        %v3458 = vrot.slane %v3446, %v3457
        %v3460 = vunpack.c.l.s4 1966171168
        %v3461 = vunpack.c.0.s8 %v3460
        %v3462 = vlaneseq
        %v3463 = vshrl.u32 %v3462, 7
        %v3464 = vsub.s32 %v3461, %v3463
        %v3465 = vrot.slane %v3448, %v3464
        %v3467 = vunpack.c.l.s4 1966171168
        %v3468 = vunpack.c.0.s8 %v3467
        %v3469 = vlaneseq
        %v3470 = vshrl.u32 %v3469, 7
        %v3471 = vsub.s32 %v3468, %v3470
        %v3472 = vrot.slane %v3447, %v3471
        %v3474 = vunpack.c.l.s4 1966171168
        %v3475 = vunpack.c.0.s8 %v3474
        %v3476 = vlaneseq
        %v3477 = vshrl.u32 %v3476, 7
        %v3478 = vsub.s32 %v3475, %v3477
        %v3479 = vrot.slane %v3449, %v3478
        %v3481 = vunpack.c.l.s4 1966171168
        %v3482 = vunpack.c.0.s8 %v3481
        %v3483 = vlaneseq
        %v3484 = vshrl.u32 %v3483, 7
        %v3485 = vsub.s32 %v3482, %v3484
        %v3486 = vrot.slane %v3438, %v3485
        %v3488 = vunpack.c.l.s4 1966171168
        %v3489 = vunpack.c.0.s8 %v3488
        %v3490 = vlaneseq
        %v3491 = vshrl.u32 %v3490, 7
        %v3492 = vsub.s32 %v3489, %v3491
        %v3493 = vrot.slane %v3445, %v3492
        %v3495 = vunpack.c.l.s4 1966171168
        %v3496 = vunpack.c.0.s8 %v3495
        %v3497 = vlaneseq
        %v3498 = vshrl.u32 %v3497, 7
        %v3499 = vsub.s32 %v3496, %v3498
        %v3500 = vrot.slane %v3450, %v3499
        %v3502 = vunpack.c.l.s4 1966171168
        %v3503 = vunpack.c.0.s8 %v3502
        %v3504 = vlaneseq
        %v3505 = vshrl.u32 %v3504, 7
        %v3506 = vsub.s32 %v3503, %v3505
        %v3507 = vrot.slane %v3451, %v3506
        %v3508 = vcombine.low %v3458, %v3486
        %v3509 = vcombine.high %v3458, %v3486
        %v3510 = vcombine.low %v3465, %v3493
        %v3511 = vcombine.high %v3465, %v3493
        %v3512 = vcombine.low %v3472, %v3500
        %v3513 = vcombine.high %v3472, %v3500
        %v3514 = vcombine.low %v3479, %v3507
        %v3515 = vcombine.low %v3274, %v3278
        %v3516 = vcombine.high %v3274, %v3278
        %v3517 = vcombine.low %v3275, %v3279
        %v3518 = vcombine.high %v3275, %v3279
        %v3519 = vcombine.low %v3276, %v3280
        %v3520 = vcombine.high %v3276, %v3280
        %v3521 = vcombine.low %v3277, %v3391
        %v3522 = vcombine.high %v3277, %v3391
        %v3524 = vunpack.c.l.s4 1966171168
        %v3525 = vunpack.c.0.s8 %v3524
        %v3526 = vlaneseq
        %v3527 = vshrl.u32 %v3526, 7
        %v3528 = vsub.s32 %v3525, %v3527
        %v3529 = vrot.slane %v3515, %v3528
        %v3531 = vunpack.c.l.s4 1966171168
        %v3532 = vunpack.c.0.s8 %v3531
        %v3533 = vlaneseq
        %v3534 = vshrl.u32 %v3533, 7
        %v3535 = vsub.s32 %v3532, %v3534
        %v3536 = vrot.slane %v3516, %v3535
        %v3538 = vunpack.c.l.s4 1966171168
        %v3539 = vunpack.c.0.s8 %v3538
        %v3540 = vlaneseq
        %v3541 = vshrl.u32 %v3540, 7
        %v3542 = vsub.s32 %v3539, %v3541
        %v3543 = vrot.slane %v3517, %v3542
        %v3545 = vunpack.c.l.s4 1966171168
        %v3546 = vunpack.c.0.s8 %v3545
        %v3547 = vlaneseq
        %v3548 = vshrl.u32 %v3547, 7
        %v3549 = vsub.s32 %v3546, %v3548
        %v3550 = vrot.slane %v3518, %v3549
        %v3552 = vunpack.c.l.s4 1966171168
        %v3553 = vunpack.c.0.s8 %v3552
        %v3554 = vlaneseq
        %v3555 = vshrl.u32 %v3554, 7
        %v3556 = vsub.s32 %v3553, %v3555
        %v3557 = vrot.slane %v3519, %v3556
        %v3559 = vunpack.c.l.s4 1966171168
        %v3560 = vunpack.c.0.s8 %v3559
        %v3561 = vlaneseq
        %v3562 = vshrl.u32 %v3561, 7
        %v3563 = vsub.s32 %v3560, %v3562
        %v3564 = vrot.slane %v3520, %v3563
        %v3566 = vunpack.c.l.s4 1966171168
        %v3567 = vunpack.c.0.s8 %v3566
        %v3568 = vlaneseq
        %v3569 = vshrl.u32 %v3568, 7
        %v3570 = vsub.s32 %v3567, %v3569
        %v3571 = vrot.slane %v3521, %v3570
        %v3573 = vunpack.c.l.s4 1966171168
        %v3574 = vunpack.c.0.s8 %v3573
        %v3575 = vlaneseq
        %v3576 = vshrl.u32 %v3575, 7
        %v3577 = vsub.s32 %v3574, %v3576
        %v3578 = vrot.slane %v3522, %v3577
        %v3579 = vcombine.low %v3529, %v3543
        %v3580 = vcombine.high %v3529, %v3543
        %v3581 = vcombine.low %v3536, %v3550
        %v3582 = vcombine.high %v3536, %v3550
        %v3583 = vcombine.low %v3557, %v3571
        %v3584 = vcombine.high %v3557, %v3571
        %v3585 = vcombine.low %v3564, %v3578
        %v3586 = vcombine.high %v3564, %v3578
        %v3588 = vunpack.c.l.s4 1966171168
        %v3589 = vunpack.c.0.s8 %v3588
        %v3590 = vlaneseq
        %v3591 = vshrl.u32 %v3590, 7
        %v3592 = vsub.s32 %v3589, %v3591
        %v3593 = vrot.slane %v3579, %v3592
        %v3595 = vunpack.c.l.s4 1966171168
        %v3596 = vunpack.c.0.s8 %v3595
        %v3597 = vlaneseq
        %v3598 = vshrl.u32 %v3597, 7
        %v3599 = vsub.s32 %v3596, %v3598
        %v3600 = vrot.slane %v3581, %v3599
        %v3602 = vunpack.c.l.s4 1966171168
        %v3603 = vunpack.c.0.s8 %v3602
        %v3604 = vlaneseq
        %v3605 = vshrl.u32 %v3604, 7
        %v3606 = vsub.s32 %v3603, %v3605
        %v3607 = vrot.slane %v3580, %v3606
        %v3609 = vunpack.c.l.s4 1966171168
        %v3610 = vunpack.c.0.s8 %v3609
        %v3611 = vlaneseq
        %v3612 = vshrl.u32 %v3611, 7
        %v3613 = vsub.s32 %v3610, %v3612
        %v3614 = vrot.slane %v3582, %v3613
        %v3616 = vunpack.c.l.s4 1966171168
        %v3617 = vunpack.c.0.s8 %v3616
        %v3618 = vlaneseq
        %v3619 = vshrl.u32 %v3618, 7
        %v3620 = vsub.s32 %v3617, %v3619
        %v3621 = vrot.slane %v3583, %v3620
        %v3623 = vunpack.c.l.s4 1966171168
        %v3624 = vunpack.c.0.s8 %v3623
        %v3625 = vlaneseq
        %v3626 = vshrl.u32 %v3625, 7
        %v3627 = vsub.s32 %v3624, %v3626
        %v3628 = vrot.slane %v3585, %v3627
        %v3630 = vunpack.c.l.s4 1966171168
        %v3631 = vunpack.c.0.s8 %v3630
        %v3632 = vlaneseq
        %v3633 = vshrl.u32 %v3632, 7
        %v3634 = vsub.s32 %v3631, %v3633
        %v3635 = vrot.slane %v3584, %v3634
        %v3637 = vunpack.c.l.s4 1966171168
        %v3638 = vunpack.c.0.s8 %v3637
        %v3639 = vlaneseq
        %v3640 = vshrl.u32 %v3639, 7
        %v3641 = vsub.s32 %v3638, %v3640
        %v3642 = vrot.slane %v3586, %v3641
        %v3643 = vcombine.low %v3593, %v3621
        %v3644 = vcombine.high %v3593, %v3621
        %v3645 = vcombine.low %v3600, %v3628
        %v3646 = vcombine.low %v3607, %v3635
        %v3647 = vcombine.high %v3607, %v3635
        %v3648 = vcombine.low %v3614, %v3642
        %v3649 = vcombine.low %v3395, %v3392
        %v3650 = vcombine.high %v3395, %v3392
        %v3651 = vcombine.low %v3396, %v3393
        %v3652 = vcombine.high %v3396, %v3393
        %v3653 = vcombine.low %v3397, %v3394
        %v3654 = vcombine.high %v3397, %v3394
        %v3655 = vcombine.low %v3508, %v3512
        %v3656 = vcombine.high %v3508, %v3512
        %v3658 = vunpack.c.l.s4 1966171168
        %v3659 = vunpack.c.0.s8 %v3658
        %v3660 = vlaneseq
        %v3661 = vshrl.u32 %v3660, 7
        %v3662 = vsub.s32 %v3659, %v3661
        %v3663 = vrot.slane %v3649, %v3662
        %v3665 = vunpack.c.l.s4 1966171168
        %v3666 = vunpack.c.0.s8 %v3665
        %v3667 = vlaneseq
        %v3668 = vshrl.u32 %v3667, 7
        %v3669 = vsub.s32 %v3666, %v3668
        %v3670 = vrot.slane %v3650, %v3669
        %v3672 = vunpack.c.l.s4 1966171168
        %v3673 = vunpack.c.0.s8 %v3672
        %v3674 = vlaneseq
        %v3675 = vshrl.u32 %v3674, 7
        %v3676 = vsub.s32 %v3673, %v3675
        %v3677 = vrot.slane %v3651, %v3676
        %v3679 = vunpack.c.l.s4 1966171168
        %v3680 = vunpack.c.0.s8 %v3679
        %v3681 = vlaneseq
        %v3682 = vshrl.u32 %v3681, 7
        %v3683 = vsub.s32 %v3680, %v3682
        %v3684 = vrot.slane %v3652, %v3683
        %v3686 = vunpack.c.l.s4 1966171168
        %v3687 = vunpack.c.0.s8 %v3686
        %v3688 = vlaneseq
        %v3689 = vshrl.u32 %v3688, 7
        %v3690 = vsub.s32 %v3687, %v3689
        %v3691 = vrot.slane %v3653, %v3690
        %v3693 = vunpack.c.l.s4 1966171168
        %v3694 = vunpack.c.0.s8 %v3693
        %v3695 = vlaneseq
        %v3696 = vshrl.u32 %v3695, 7
        %v3697 = vsub.s32 %v3694, %v3696
        %v3698 = vrot.slane %v3654, %v3697
        %v3700 = vunpack.c.l.s4 1966171168
        %v3701 = vunpack.c.0.s8 %v3700
        %v3702 = vlaneseq
        %v3703 = vshrl.u32 %v3702, 7
        %v3704 = vsub.s32 %v3701, %v3703
        %v3705 = vrot.slane %v3655, %v3704
        %v3707 = vunpack.c.l.s4 1966171168
        %v3708 = vunpack.c.0.s8 %v3707
        %v3709 = vlaneseq
        %v3710 = vshrl.u32 %v3709, 7
        %v3711 = vsub.s32 %v3708, %v3710
        %v3712 = vrot.slane %v3656, %v3711
        %v3713 = vcombine.low %v3663, %v3677
        %v3714 = vcombine.high %v3663, %v3677
        %v3715 = vcombine.low %v3670, %v3684
        %v3716 = vcombine.high %v3670, %v3684
        %v3717 = vcombine.low %v3691, %v3705
        %v3718 = vcombine.high %v3691, %v3705
        %v3719 = vcombine.low %v3698, %v3712
        %v3720 = vcombine.high %v3698, %v3712
        %v3722 = vunpack.c.l.s4 1966171168
        %v3723 = vunpack.c.0.s8 %v3722
        %v3724 = vlaneseq
        %v3725 = vshrl.u32 %v3724, 7
        %v3726 = vsub.s32 %v3723, %v3725
        %v3727 = vrot.slane %v3713, %v3726
        %v3729 = vunpack.c.l.s4 1966171168
        %v3730 = vunpack.c.0.s8 %v3729
        %v3731 = vlaneseq
        %v3732 = vshrl.u32 %v3731, 7
        %v3733 = vsub.s32 %v3730, %v3732
        %v3734 = vrot.slane %v3715, %v3733
        %v3736 = vunpack.c.l.s4 1966171168
        %v3737 = vunpack.c.0.s8 %v3736
        %v3738 = vlaneseq
        %v3739 = vshrl.u32 %v3738, 7
        %v3740 = vsub.s32 %v3737, %v3739
        %v3741 = vrot.slane %v3714, %v3740
        %v3743 = vunpack.c.l.s4 1966171168
        %v3744 = vunpack.c.0.s8 %v3743
        %v3745 = vlaneseq
        %v3746 = vshrl.u32 %v3745, 7
        %v3747 = vsub.s32 %v3744, %v3746
        %v3748 = vrot.slane %v3716, %v3747
        %v3750 = vunpack.c.l.s4 1966171168
        %v3751 = vunpack.c.0.s8 %v3750
        %v3752 = vlaneseq
        %v3753 = vshrl.u32 %v3752, 7
        %v3754 = vsub.s32 %v3751, %v3753
        %v3755 = vrot.slane %v3717, %v3754
        %v3757 = vunpack.c.l.s4 1966171168
        %v3758 = vunpack.c.0.s8 %v3757
        %v3759 = vlaneseq
        %v3760 = vshrl.u32 %v3759, 7
        %v3761 = vsub.s32 %v3758, %v3760
        %v3762 = vrot.slane %v3719, %v3761
        %v3764 = vunpack.c.l.s4 1966171168
        %v3765 = vunpack.c.0.s8 %v3764
        %v3766 = vlaneseq
        %v3767 = vshrl.u32 %v3766, 7
        %v3768 = vsub.s32 %v3765, %v3767
        %v3769 = vrot.slane %v3718, %v3768
        %v3771 = vunpack.c.l.s4 1966171168
        %v3772 = vunpack.c.0.s8 %v3771
        %v3773 = vlaneseq
        %v3774 = vshrl.u32 %v3773, 7
        %v3775 = vsub.s32 %v3772, %v3774
        %v3776 = vrot.slane %v3720, %v3775
        %v3777 = vcombine.low %v3727, %v3755
        %v3778 = vcombine.high %v3727, %v3755
        %v3779 = vcombine.low %v3734, %v3762
        %v3780 = vcombine.low %v3741, %v3769
        %v3781 = vcombine.high %v3741, %v3769
        %v3782 = vcombine.low %v3748, %v3776
        %v3783 = vcombine.low %v3509, %v3513
        %v3784 = vcombine.high %v3509, %v3513
        %v3785 = vcombine.low %v3510, %v3514
        %v3786 = vcombine.high %v3510, %v3514
        %v3787 = vcombine.high %v3511, %v3511
        %v3789 = vunpack.c.l.s4 1966171168
        %v3790 = vunpack.c.0.s8 %v3789
        %v3791 = vlaneseq
        %v3792 = vshrl.u32 %v3791, 7
        %v3793 = vsub.s32 %v3790, %v3792
        %v3794 = vrot.slane %v3783, %v3793
        %v3796 = vunpack.c.l.s4 1966171168
        %v3797 = vunpack.c.0.s8 %v3796
        %v3798 = vlaneseq
        %v3799 = vshrl.u32 %v3798, 7
        %v3800 = vsub.s32 %v3797, %v3799
        %v3801 = vrot.slane %v3784, %v3800
        %v3803 = vunpack.c.l.s4 1966171168
        %v3804 = vunpack.c.0.s8 %v3803
        %v3805 = vlaneseq
        %v3806 = vshrl.u32 %v3805, 7
        %v3807 = vsub.s32 %v3804, %v3806
        %v3808 = vrot.slane %v3785, %v3807
        %v3810 = vunpack.c.l.s4 1966171168
        %v3811 = vunpack.c.0.s8 %v3810
        %v3812 = vlaneseq
        %v3813 = vshrl.u32 %v3812, 7
        %v3814 = vsub.s32 %v3811, %v3813
        %v3815 = vrot.slane %v3786, %v3814
        %v3817 = vunpack.c.l.s4 1966171168
        %v3818 = vunpack.c.0.s8 %v3817
        %v3819 = vlaneseq
        %v3820 = vshrl.u32 %v3819, 7
        %v3821 = vsub.s32 %v3818, %v3820
        %v3822 = vrot.slane %v3511, %v3821
        %v3824 = vunpack.c.l.s4 1966171168
        %v3825 = vunpack.c.0.s8 %v3824
        %v3826 = vlaneseq
        %v3827 = vshrl.u32 %v3826, 7
        %v3828 = vsub.s32 %v3825, %v3827
        %v3829 = vrot.slane %v3787, %v3828
        %v3830 = vcombine.low %v3794, %v3808
        %v3831 = vcombine.high %v3794, %v3808
        %v3832 = vcombine.low %v3801, %v3815
        %v3833 = vcombine.high %v3801, %v3815
        %v3834 = vcombine.high %v3822, %v3822
        %v3835 = vcombine.high %v3829, %v3829
        %v3837 = vunpack.c.l.s4 1966171168
        %v3838 = vunpack.c.0.s8 %v3837
        %v3839 = vlaneseq
        %v3840 = vshrl.u32 %v3839, 7
        %v3841 = vsub.s32 %v3838, %v3840
        %v3842 = vrot.slane %v3830, %v3841
        %v3844 = vunpack.c.l.s4 1966171168
        %v3845 = vunpack.c.0.s8 %v3844
        %v3846 = vlaneseq
        %v3847 = vshrl.u32 %v3846, 7
        %v3848 = vsub.s32 %v3845, %v3847
        %v3849 = vrot.slane %v3832, %v3848
        %v3851 = vunpack.c.l.s4 1966171168
        %v3852 = vunpack.c.0.s8 %v3851
        %v3853 = vlaneseq
        %v3854 = vshrl.u32 %v3853, 7
        %v3855 = vsub.s32 %v3852, %v3854
        %v3856 = vrot.slane %v3831, %v3855
        %v3858 = vunpack.c.l.s4 1966171168
        %v3859 = vunpack.c.0.s8 %v3858
        %v3860 = vlaneseq
        %v3861 = vshrl.u32 %v3860, 7
        %v3862 = vsub.s32 %v3859, %v3861
        %v3863 = vrot.slane %v3833, %v3862
        %v3865 = vunpack.c.l.s4 1966171168
        %v3866 = vunpack.c.0.s8 %v3865
        %v3867 = vlaneseq
        %v3868 = vshrl.u32 %v3867, 7
        %v3869 = vsub.s32 %v3866, %v3868
        %v3870 = vrot.slane %v3822, %v3869
        %v3872 = vunpack.c.l.s4 1966171168
        %v3873 = vunpack.c.0.s8 %v3872
        %v3874 = vlaneseq
        %v3875 = vshrl.u32 %v3874, 7
        %v3876 = vsub.s32 %v3873, %v3875
        %v3877 = vrot.slane %v3829, %v3876
        %v3879 = vunpack.c.l.s4 1966171168
        %v3880 = vunpack.c.0.s8 %v3879
        %v3881 = vlaneseq
        %v3882 = vshrl.u32 %v3881, 7
        %v3883 = vsub.s32 %v3880, %v3882
        %v3884 = vrot.slane %v3834, %v3883
        %v3886 = vunpack.c.l.s4 1966171168
        %v3887 = vunpack.c.0.s8 %v3886
        %v3888 = vlaneseq
        %v3889 = vshrl.u32 %v3888, 7
        %v3890 = vsub.s32 %v3887, %v3889
        %v3891 = vrot.slane %v3835, %v3890
        %v3892 = vcombine.low %v3842, %v3870
        %v3893 = vcombine.high %v3842, %v3870
        %v3894 = vcombine.low %v3849, %v3877
        %v3895 = vcombine.low %v3856, %v3884
        %v3896 = vcombine.high %v3856, %v3884
        %v3897 = vcombine.low %v3863, %v3891
        %v3916 = vpack.c.bf16 %v3777, %v3643
        %v3917 = vpack.c.bf16 %v3780, %v3646
        %v3918 = vpack.c.bf16 %v3778, %v3644
        %v3919 = vpack.c.bf16 %v3781, %v3647
        %v3920 = vpack.c.bf16 %v3779, %v3645
        %v3921 = vpack.c.bf16 %v3782, %v3648
        %v3922 = vpack.c.bf16 %v3892, %v3892
        %v3923 = vpack.c.bf16 %v3895, %v3895
        %v3924 = vpack.c.bf16 %v3893, %v3893
        %v3925 = vpack.c.bf16 %v3896, %v3896
        %v3926 = vpack.c.bf16 %v3894, %v3894
        %v3927 = vpack.c.bf16 %v3897, %v3897
        %v3928 = vld [vmem:[#allocation6] sm:$0xf]
        %v3929 = vld [vmem:[#allocation6 + $0x4] sm:$0xf]
        %v3930 = vld [vmem:[#allocation6 + $0x8] sm:$0xf]
        %v3931 = vld [vmem:[#allocation6 + $0xc] sm:$0xf]
        %v3932 = vld [vmem:[#allocation6 + $0x10] sm:$0xf]
        %v3933 = vld [vmem:[#allocation6 + $0x14] sm:$0xf]
        %v3934 = vld [vmem:[#allocation6 + $0x18] sm:$0xf]
        %v3935 = vld [vmem:[#allocation6 + $0x1c] sm:$0xf]
        %v3936 = vld [vmem:[#allocation6 + $0x20] sm:$0xf]
        %v3937 = vld [vmem:[#allocation6 + $0x24] sm:$0xf]
        %v3938 = vld [vmem:[#allocation6 + $0x28] sm:$0xf]
        %v3939 = vld [vmem:[#allocation6 + $0x2c] sm:$0xf]
        %v3940 = vld [vmem:[#allocation6 + $0x30] sm:$0xf]
        %v3941 = vld [vmem:[#allocation6 + $0x34] sm:$0xf]
        %v3942 = vld [vmem:[#allocation6 + $0x38] sm:$0xf]
        %v3943 = vld [vmem:[#allocation6 + $0x3c] sm:$0xf]
        %v3944 = vld [vmem:[#allocation6 + $0x40] sm:$0xf]
        %v3945 = vld [vmem:[#allocation6 + $0x44] sm:$0xf]
        %v3946 = vld [vmem:[#allocation6 + $0x48] sm:$0xf]
        %v3947 = vld [vmem:[#allocation6 + $0x4c] sm:$0xf]
        %v3948 = vld [vmem:[#allocation6 + $0x50] sm:$0xf]
        %v3949 = vld [vmem:[#allocation6 + $0x54] sm:$0xf]
        %v3950 = vld [vmem:[#allocation6 + $0x58] sm:$0xf]
        %v3951 = vld [vmem:[#allocation6 + $0x5c] sm:$0xf]
        %v3952 = vld [vmem:[#allocation6 + $0x60] sm:$0xf]
        %v3953 = vld [vmem:[#allocation6 + $0x64] sm:$0xf]
        %v3954 = vld [vmem:[#allocation6 + $0x68] sm:$0xf]
        %v3955 = vld [vmem:[#allocation6 + $0x6c] sm:$0xf]
        %v3956 = vld [vmem:[#allocation6 + $0x70] sm:$0xf]
        %v3957 = vld [vmem:[#allocation6 + $0x74] sm:$0xf]
        %v3958 = vld [vmem:[#allocation6 + $0x78] sm:$0xf]
        %v3959 = vld [vmem:[#allocation6 + $0x7c] sm:$0xf]
        %v3960 = vld [vmem:[#allocation6 + $0x80] sm:$0xf]
        %v3961 = vld [vmem:[#allocation6 + $0x84] sm:$0xf]
        %v3962 = vld [vmem:[#allocation6 + $0x88] sm:$0xf]
        %v3963 = vld [vmem:[#allocation6 + $0x8c] sm:$0xf]
        %v3964 = vld [vmem:[#allocation6 + $0x90] sm:$0xf]
        %v3965 = vld [vmem:[#allocation6 + $0x94] sm:$0xf]
        %v3966 = vld [vmem:[#allocation6 + $0x98] sm:$0xf]
        %v3967 = vld [vmem:[#allocation6 + $0x9c] sm:$0xf]
        %v3968 = vld [vmem:[#allocation6 + $0xa0] sm:$0xf]
        %v3969 = vld [vmem:[#allocation6 + $0xa4] sm:$0xf]
        %v3970 = vld [vmem:[#allocation6 + $0xa8] sm:$0xf]
        %v3971 = vld [vmem:[#allocation6 + $0xac] sm:$0xf]
        %v3972 = vld [vmem:[#allocation6 + $0xb0] sm:$0xf]
        %v3973 = vld [vmem:[#allocation6 + $0xb4] sm:$0xf]
        %v3974 = vld [vmem:[#allocation6 + $0xb8] sm:$0xf]
        %v3975 = vld [vmem:[#allocation6 + $0xbc] sm:$0xf]
        %v3976 = vld [vmem:[#allocation6 + $0xc0] sm:$0xf]
        %v3977 = vld [vmem:[#allocation6 + $0xc4] sm:$0xf]
        %v3978 = vld [vmem:[#allocation6 + $0xc8] sm:$0xf]
        %v3979 = vld [vmem:[#allocation6 + $0xcc] sm:$0xf]
        %v3980 = vld [vmem:[#allocation6 + $0xd0] sm:$0xf]
        %v3981 = vld [vmem:[#allocation6 + $0xd4] sm:$0xf]
        %v3982 = vld [vmem:[#allocation6 + $0xd8] sm:$0xf]
        %v3983 = vld [vmem:[#allocation6 + $0xdc] sm:$0xf]
        %v3984 = vld [vmem:[#allocation6 + $0xe0] sm:$0xf]
        %v3985 = vld [vmem:[#allocation6 + $0xe4] sm:$0xf]
        %v3986 = vld [vmem:[#allocation6 + $0xe8] sm:$0xf]
        %v3987 = vld [vmem:[#allocation6 + $0xec] sm:$0xf]
        %v3988 = vld [vmem:[#allocation6 + $0xf0] sm:$0xf]
        %v3989 = vld [vmem:[#allocation6 + $0xf4] sm:$0xf]
        %v3990 = vld [vmem:[#allocation6 + $0xf8] sm:$0xf]
        %v3991 = vld [vmem:[#allocation6 + $0xfc] sm:$0xf]
        %v3992 = vld [vmem:[#allocation6 + $0x100] sm:$0xf]
        %v3993 = vld [vmem:[#allocation6 + $0x104] sm:$0xf]
        %v3994 = vld [vmem:[#allocation6 + $0x108] sm:$0xf]
        %v3995 = vld [vmem:[#allocation6 + $0x10c] sm:$0xf]
        %v3996 = vld [vmem:[#allocation6 + $0x110] sm:$0xf]
        %v3997 = vld [vmem:[#allocation6 + $0x114] sm:$0xf]
        %v3998 = vld [vmem:[#allocation6 + $0x118] sm:$0xf]
        %v3999 = vld [vmem:[#allocation6 + $0x11c] sm:$0xf]
        %v4000 = vld [vmem:[#allocation6 + $0x120] sm:$0xf]
        %v4001 = vld [vmem:[#allocation6 + $0x124] sm:$0xf]
        %v4002 = vld [vmem:[#allocation6 + $0x128] sm:$0xf]
        %v4003 = vld [vmem:[#allocation6 + $0x12c] sm:$0xf]
        %v4004 = vld [vmem:[#allocation6 + $0x130] sm:$0xf]
        %v4005 = vld [vmem:[#allocation6 + $0x134] sm:$0xf]
        %v4006 = vld [vmem:[#allocation6 + $0x138] sm:$0xf]
        %v4007 = vld [vmem:[#allocation6 + $0x13c] sm:$0xf]
        %v4008 = vld [vmem:[#allocation6 + $0x140] sm:$0xf]
        %v4009 = vld [vmem:[#allocation6 + $0x144] sm:$0xf]
        %v4010 = vld [vmem:[#allocation6 + $0x148] sm:$0xf]
        %v4011 = vld [vmem:[#allocation6 + $0x14c] sm:$0xf]
        %v4012 = vld [vmem:[%s5] sm:$0x1]
        %v4014 = vlaneseq
        %v4015 = vshrl.u32 %v4014, 7
        %v4016 = vsub.s32 0, %v4015
        %v4017 = vrot.slane %v4012, %v4016
        %v4103 = vunpack.c.l.b16 %v3928
        %v4104 = vunpack.c.l.b16 %v3929
        %v4105 = vunpack.c.l.b16 %v3930
        %v4106 = vunpack.c.l.b16 %v3931
        %v4107 = vunpack.c.l.b16 %v3932
        %v4108 = vunpack.c.l.b16 %v3933
        %v4109 = vunpack.c.l.b16 %v3934
        %v4110 = vunpack.c.l.b16 %v3935
        %v4111 = vunpack.c.l.b16 %v3936
        %v4112 = vunpack.c.l.b16 %v3937
        %v4113 = vunpack.c.l.b16 %v3938
        %v4114 = vunpack.c.l.b16 %v3939
        %v4115 = vunpack.c.l.b16 %v3940
        %v4116 = vunpack.c.l.b16 %v3941
        %v4117 = vunpack.c.l.b16 %v3942
        %v4118 = vunpack.c.l.b16 %v3943
        %v4119 = vunpack.c.l.b16 %v3944
        %v4120 = vunpack.c.l.b16 %v3945
        %v4121 = vunpack.c.l.b16 %v3946
        %v4122 = vunpack.c.l.b16 %v3947
        %v4123 = vunpack.c.l.b16 %v3948
        %v4124 = vunpack.c.l.b16 %v3949
        %v4125 = vunpack.c.l.b16 %v3950
        %v4126 = vunpack.c.l.b16 %v3951
        %v4127 = vunpack.c.l.b16 %v3952
        %v4128 = vunpack.c.l.b16 %v3953
        %v4129 = vunpack.c.l.b16 %v3954
        %v4130 = vunpack.c.l.b16 %v3955
        %v4131 = vunpack.c.l.b16 %v3956
        %v4132 = vunpack.c.l.b16 %v3957
        %v4133 = vunpack.c.l.b16 %v3958
        %v4134 = vunpack.c.l.b16 %v3959
        %v4135 = vunpack.c.l.b16 %v3960
        %v4136 = vunpack.c.l.b16 %v3961
        %v4137 = vunpack.c.l.b16 %v3962
        %v4138 = vunpack.c.l.b16 %v3963
        %v4139 = vunpack.c.l.b16 %v3964
        %v4140 = vunpack.c.l.b16 %v3965
        %v4141 = vunpack.c.l.b16 %v3966
        %v4142 = vunpack.c.l.b16 %v3967
        %v4143 = vunpack.c.l.b16 %v3968
        %v4144 = vunpack.c.l.b16 %v3969
        %v4145 = vunpack.c.l.b16 %v3970
        %v4146 = vunpack.c.l.b16 %v3971
        %v4147 = vunpack.c.l.b16 %v3972
        %v4148 = vunpack.c.l.b16 %v3973
        %v4149 = vunpack.c.l.b16 %v3974
        %v4150 = vunpack.c.l.b16 %v3975
        %v4151 = vunpack.c.l.b16 %v3976
        %v4152 = vunpack.c.l.b16 %v3977
        %v4153 = vunpack.c.l.b16 %v3978
        %v4154 = vunpack.c.l.b16 %v3979
        %v4155 = vunpack.c.l.b16 %v3980
        %v4156 = vunpack.c.l.b16 %v3981
        %v4157 = vunpack.c.l.b16 %v3982
        %v4158 = vunpack.c.l.b16 %v3983
        %v4159 = vunpack.c.l.b16 %v3984
        %v4160 = vunpack.c.l.b16 %v3985
        %v4161 = vunpack.c.l.b16 %v3986
        %v4162 = vunpack.c.l.b16 %v3987
        %v4163 = vunpack.c.l.b16 %v3988
        %v4164 = vunpack.c.l.b16 %v3989
        %v4165 = vunpack.c.l.b16 %v3990
        %v4166 = vunpack.c.l.b16 %v3991
        %v4167 = vunpack.c.l.b16 %v3992
        %v4168 = vunpack.c.l.b16 %v3993
        %v4169 = vunpack.c.l.b16 %v3994
        %v4170 = vunpack.c.l.b16 %v3995
        %v4171 = vunpack.c.l.b16 %v3996
        %v4172 = vunpack.c.l.b16 %v3997
        %v4173 = vunpack.c.l.b16 %v3998
        %v4174 = vunpack.c.l.b16 %v3999
        %v4175 = vunpack.c.l.b16 %v4000
        %v4176 = vunpack.c.l.b16 %v4001
        %v4177 = vunpack.c.l.b16 %v4002
        %v4178 = vunpack.c.l.b16 %v4003
        %v4179 = vunpack.c.l.b16 %v4004
        %v4180 = vunpack.c.l.b16 %v4005
        %v4181 = vunpack.c.l.b16 %v4006
        %v4182 = vunpack.c.l.b16 %v4007
        %v4183 = vunpack.c.l.b16 %v4008
        %v4184 = vunpack.c.l.b16 %v4009
        %v4185 = vunpack.c.l.b16 %v4010
        %v4186 = vunpack.c.l.b16 %v4011
        %v4187 = vpack.c.b16 %v4104, %v4103
        %v4188 = vpack.c.b16 %v4106, %v4105
        %v4189 = vpack.c.b16 %v4108, %v4107
        %v4190 = vpack.c.b16 %v4110, %v4109
        %v4191 = vpack.c.b16 %v4112, %v4111
        %v4192 = vpack.c.b16 %v4114, %v4113
        %v4193 = vpack.c.b16 %v4116, %v4115
        %v4194 = vpack.c.b16 %v4118, %v4117
        %v4195 = vpack.c.b16 %v4120, %v4119
        %v4196 = vpack.c.b16 %v4122, %v4121
        %v4197 = vpack.c.b16 %v4124, %v4123
        %v4198 = vpack.c.b16 %v4126, %v4125
        %v4199 = vpack.c.b16 %v4128, %v4127
        %v4200 = vpack.c.b16 %v4130, %v4129
        %v4201 = vpack.c.b16 %v4132, %v4131
        %v4202 = vpack.c.b16 %v4134, %v4133
        %v4203 = vpack.c.b16 %v4136, %v4135
        %v4204 = vpack.c.b16 %v4138, %v4137
        %v4205 = vpack.c.b16 %v4140, %v4139
        %v4206 = vpack.c.b16 %v4142, %v4141
        %v4207 = vpack.c.b16 %v4144, %v4143
        %v4208 = vpack.c.b16 %v4146, %v4145
        %v4209 = vpack.c.b16 %v4148, %v4147
        %v4210 = vpack.c.b16 %v4150, %v4149
        %v4211 = vpack.c.b16 %v4152, %v4151
        %v4212 = vpack.c.b16 %v4154, %v4153
        %v4213 = vpack.c.b16 %v4156, %v4155
        %v4214 = vpack.c.b16 %v4158, %v4157
        %v4215 = vpack.c.b16 %v4160, %v4159
        %v4216 = vpack.c.b16 %v4162, %v4161
        %v4217 = vpack.c.b16 %v4164, %v4163
        %v4218 = vpack.c.b16 %v4166, %v4165
        %v4219 = vpack.c.b16 %v4168, %v4167
        %v4220 = vpack.c.b16 %v4170, %v4169
        %v4221 = vpack.c.b16 %v4172, %v4171
        %v4222 = vpack.c.b16 %v4174, %v4173
        %v4223 = vpack.c.b16 %v4176, %v4175
        %v4224 = vpack.c.b16 %v4178, %v4177
        %v4225 = vpack.c.b16 %v4180, %v4179
        %v4226 = vpack.c.b16 %v4182, %v4181
        %v4227 = vpack.c.b16 %v4184, %v4183
        %v4228 = vpack.c.b16 %v4186, %v4185
        %vm4271 = vcmask 261120
        %v4273 = vsel %vm4271, %v3921, 0
        %v4276 = vsel %vm4271, %v3927, 0
        %4278 = vmatprep.subr.bf16.mxu0 0
        %4279 = vmatpush1.bf16.msra.mxu0 %v4194
        %4280 = vmatprep.subr.bf16.mxu0 0
        %4281 = vmatpush1.bf16.msra.mxu0 %v4193
        %4282 = vmatprep.subr.bf16.mxu0 0
        %4283 = vmatpush1.bf16.msra.mxu0 %v4192
        %4284 = vmatprep.subr.bf16.mxu0 0
        %4285 = vmatpush1.bf16.msra.mxu0 %v4191
        %4286 = vmatprep.subr.bf16.mxu0 0
        %4287 = vmatpush1.bf16.msra.mxu0 %v4190
        %4288 = vmatprep.subr.bf16.mxu0 0
        %4289 = vmatpush1.bf16.msra.mxu0 %v4189
        %4290 = vmatprep.subr.bf16.mxu0 0
        %4291 = vmatpush1.bf16.msra.mxu0 %v4188
        %4292 = vmatprep.subr.bf16.mxu0 0
        %4293 = vmatpush1.bf16.msra.mxu0 %v4187
        %4294 = vmatprep.subr.bf16.mxu0 0
        %4295 = vmatpush2.bf16.msra.mxu0 %v4202
        %4296 = vmatprep.subr.bf16.mxu0 0
        %4297 = vmatpush2.bf16.msra.mxu0 %v4201
        %4298 = vmatprep.subr.bf16.mxu0 0
        %4299 = vmatpush2.bf16.msra.mxu0 %v4200
        %4300 = vmatprep.subr.bf16.mxu0 0
        %4301 = vmatpush2.bf16.msra.mxu0 %v4199
        %4302 = vmatprep.subr.bf16.mxu0 0
        %4303 = vmatpush2.bf16.msra.mxu0 %v4198
        %4304 = vmatprep.subr.bf16.mxu0 0
        %4305 = vmatpush2.bf16.msra.mxu0 %v4197
        %4306 = vmatprep.subr.bf16.mxu0 0
        %4307 = vmatpush2.bf16.msra.mxu0 %v4196
        %4308 = vmatprep.subr.bf16.mxu0 0
        %4309 = vmatpush2.bf16.msra.mxu0 %v4195
        %4310 = vmatprep.mubr.bf16.mxu0 %v3917
        %4311 = vmatmul.mubr.bf16.gmra.mxu0 %v3916
        %v4312 = vpop.f32.mrf.mxu0
        %v4313 = vadd.f32 %v4017, %v4312
        %v4314 = vpop.f32.mrf.mxu0
        %v4315 = vpop.f32.mrf.mxu0
        %v4316 = vadd.f32 %v4017, %v4315
        %v4317 = vpop.f32.mrf.mxu0
        %4318 = vmatprep.mubr.bf16.mxu0 %v3923
        %4319 = vmatmul.mubr.bf16.gmra.mxu0 %v3922
        %v4320 = vpop.f32.mrf.mxu0
        %v4321 = vadd.f32 %v4017, %v4320
        %v4322 = vpop.f32.mrf.mxu0
        %v4323 = vpop.f32.mrf.mxu0
        %v4324 = vpop.f32.mrf.mxu0
        %4325 = vdwg.mxu0
        %4326 = vmatprep.subr.bf16.mxu0 0
        %4327 = vmatpush1.bf16.msra.mxu0 %v4210
        %4328 = vmatprep.subr.bf16.mxu0 0
        %4329 = vmatpush1.bf16.msra.mxu0 %v4209
        %4330 = vmatprep.subr.bf16.mxu0 0
        %4331 = vmatpush1.bf16.msra.mxu0 %v4208
        %4332 = vmatprep.subr.bf16.mxu0 0
        %4333 = vmatpush1.bf16.msra.mxu0 %v4207
        %4334 = vmatprep.subr.bf16.mxu0 0
        %4335 = vmatpush1.bf16.msra.mxu0 %v4206
        %4336 = vmatprep.subr.bf16.mxu0 0
        %4337 = vmatpush1.bf16.msra.mxu0 %v4205
        %4338 = vmatprep.subr.bf16.mxu0 0
        %4339 = vmatpush1.bf16.msra.mxu0 %v4204
        %4340 = vmatprep.subr.bf16.mxu0 0
        %4341 = vmatpush1.bf16.msra.mxu0 %v4203
        %4342 = vmatprep.subr.bf16.mxu0 0
        %4343 = vmatpush2.bf16.msra.mxu0 %v4218
        %4344 = vmatprep.subr.bf16.mxu0 0
        %4345 = vmatpush2.bf16.msra.mxu0 %v4217
        %4346 = vmatprep.subr.bf16.mxu0 0
        %4347 = vmatpush2.bf16.msra.mxu0 %v4216
        %4348 = vmatprep.subr.bf16.mxu0 0
        %4349 = vmatpush2.bf16.msra.mxu0 %v4215
        %4350 = vmatprep.subr.bf16.mxu0 0
        %4351 = vmatpush2.bf16.msra.mxu0 %v4214
        %4352 = vmatprep.subr.bf16.mxu0 0
        %4353 = vmatpush2.bf16.msra.mxu0 %v4213
        %4354 = vmatprep.subr.bf16.mxu0 0
        %4355 = vmatpush2.bf16.msra.mxu0 %v4212
        %4356 = vmatprep.subr.bf16.mxu0 0
        %4357 = vmatpush2.bf16.msra.mxu0 %v4211
        %4358 = vmatprep.mubr.bf16.mxu0 %v3919
        %4359 = vmatmul.mubr.bf16.gmra.mxu0 %v3918
        %v4360 = vpop.f32.mrf.mxu0
        %v4361 = vadd.f32 %v4313, %v4360
        %v4362 = vpop.f32.mrf.mxu0
        %v4363 = vpop.f32.mrf.mxu0
        %v4364 = vadd.f32 %v4316, %v4363
        %v4365 = vpop.f32.mrf.mxu0
        %4366 = vmatprep.mubr.bf16.mxu0 %v3925
        %4367 = vmatmul.mubr.bf16.gmra.mxu0 %v3924
        %v4368 = vpop.f32.mrf.mxu0
        %v4369 = vadd.f32 %v4321, %v4368
        %v4370 = vpop.f32.mrf.mxu0
        %v4371 = vpop.f32.mrf.mxu0
        %v4372 = vpop.f32.mrf.mxu0
        %4373 = vdwg.mxu0
        %4374 = vmatprep.subr.bf16.mxu0 0
        %4375 = vmatpush1.bf16.msra.mxu0 %v4226
        %4376 = vmatprep.subr.bf16.mxu0 0
        %4377 = vmatpush1.bf16.msra.mxu0 %v4225
        %4378 = vmatprep.subr.bf16.mxu0 0
        %4379 = vmatpush1.bf16.msra.mxu0 %v4224
        %4380 = vmatprep.subr.bf16.mxu0 0
        %4381 = vmatpush1.bf16.msra.mxu0 %v4223
        %4382 = vmatprep.subr.bf16.mxu0 0
        %4383 = vmatpush1.bf16.msra.mxu0 %v4222
        %4384 = vmatprep.subr.bf16.mxu0 0
        %4385 = vmatpush1.bf16.msra.mxu0 %v4221
        %4386 = vmatprep.subr.bf16.mxu0 0
        %4387 = vmatpush1.bf16.msra.mxu0 %v4220
        %4388 = vmatprep.subr.bf16.mxu0 0
        %4389 = vmatpush1.bf16.msra.mxu0 %v4219
        %4390 = vmatprep.subr.bf16.mxu0 0
        %4391 = vmatpush2.bf16.msra.mxu0 0
        %4392 = vmatprep.subr.bf16.mxu0 0
        %4393 = vmatpush2.bf16.msra.mxu0 0
        %4394 = vmatprep.subr.bf16.mxu0 0
        %4395 = vmatpush2.bf16.msra.mxu0 0
        %4396 = vmatprep.subr.bf16.mxu0 0
        %4397 = vmatpush2.bf16.msra.mxu0 0
        %4398 = vmatprep.subr.bf16.mxu0 0
        %4399 = vmatpush2.bf16.msra.mxu0 0
        %4400 = vmatprep.subr.bf16.mxu0 0
        %4401 = vmatpush2.bf16.msra.mxu0 0
        %4402 = vmatprep.subr.bf16.mxu0 0
        %4403 = vmatpush2.bf16.msra.mxu0 %v4228
        %4404 = vmatprep.subr.bf16.mxu0 0
        %4405 = vmatpush2.bf16.msra.mxu0 %v4227
        %4406 = vmatprep.mubr.bf16.mxu0 %v4273
        %4407 = vmatmul.mubr.bf16.gmra.mxu0 %v3920
        %v4408 = vpop.f32.mrf.mxu0
        %v4409 = vadd.f32 %v4361, %v4408
        %v4410 = vpop.f32.mrf.mxu0
        %v4411 = vpop.f32.mrf.mxu0
        %v4412 = vadd.f32 %v4364, %v4411
        %v4413 = vpop.f32.mrf.mxu0
        %4414 = vmatprep.mubr.bf16.mxu0 %v4276
        %4415 = vmatmul.mubr.bf16.gmra.mxu0 %v3926
        %v4416 = vpop.f32.mrf.mxu0
        %v4417 = vadd.f32 %v4369, %v4416
        %v4418 = vpop.f32.mrf.mxu0
        %v4419 = vpop.f32.mrf.mxu0
        %v4420 = vpop.f32.mrf.mxu0
        %4421 = vdwg.mxu0
        %v4422 = vtanh.pop %v4409
        %v4423 = vtanh.pop %v4412
        %v4424 = vtanh.pop %v4417
        %v4428 = vcombine.high %v4422, %v4422
        %v4430 = vunpack.c.l.s4 1966171168
        %v4431 = vunpack.c.0.s8 %v4430
        %v4432 = vlaneseq
        %v4433 = vshrl.u32 %v4432, 7
        %v4434 = vsub.s32 %v4431, %v4433
        %v4435 = vrot.slane %v4422, %v4434
        %v4437 = vunpack.c.l.s4 1966171168
        %v4438 = vunpack.c.0.s8 %v4437
        %v4439 = vlaneseq
        %v4440 = vshrl.u32 %v4439, 7
        %v4441 = vsub.s32 %v4438, %v4440
        %v4442 = vrot.slane %v4428, %v4441
        %v4443 = vcombine.high %v4435, %v4435
        %v4444 = vcombine.high %v4442, %v4442
        %v4446 = vunpack.c.l.s4 1966171168
        %v4447 = vunpack.c.0.s8 %v4446
        %v4448 = vlaneseq
        %v4449 = vshrl.u32 %v4448, 7
        %v4450 = vsub.s32 %v4447, %v4449
        %v4451 = vrot.slane %v4435, %v4450
        %v4453 = vunpack.c.l.s4 1966171168
        %v4454 = vunpack.c.0.s8 %v4453
        %v4455 = vlaneseq
        %v4456 = vshrl.u32 %v4455, 7
        %v4457 = vsub.s32 %v4454, %v4456
        %v4458 = vrot.slane %v4442, %v4457
        %v4460 = vunpack.c.l.s4 1966171168
        %v4461 = vunpack.c.0.s8 %v4460
        %v4462 = vlaneseq
        %v4463 = vshrl.u32 %v4462, 7
        %v4464 = vsub.s32 %v4461, %v4463
        %v4465 = vrot.slane %v4443, %v4464
        %v4467 = vunpack.c.l.s4 1966171168
        %v4468 = vunpack.c.0.s8 %v4467
        %v4469 = vlaneseq
        %v4470 = vshrl.u32 %v4469, 7
        %v4471 = vsub.s32 %v4468, %v4470
        %v4472 = vrot.slane %v4444, %v4471
        %v4473 = vcombine.high %v4451, %v4451
        %v4474 = vcombine.high %v4458, %v4458
        %v4475 = vcombine.high %v4465, %v4465
        %v4476 = vcombine.high %v4472, %v4472
        %v4477 = vcombine.high %v4423, %v4423
        %v4479 = vunpack.c.l.s4 1966171168
        %v4480 = vunpack.c.0.s8 %v4479
        %v4481 = vlaneseq
        %v4482 = vshrl.u32 %v4481, 7
        %v4483 = vsub.s32 %v4480, %v4482
        %v4484 = vrot.slane %v4423, %v4483
        %v4486 = vunpack.c.l.s4 1966171168
        %v4487 = vunpack.c.0.s8 %v4486
        %v4488 = vlaneseq
        %v4489 = vshrl.u32 %v4488, 7
        %v4490 = vsub.s32 %v4487, %v4489
        %v4491 = vrot.slane %v4477, %v4490
        %v4492 = vcombine.high %v4484, %v4484
        %v4493 = vcombine.high %v4491, %v4491
        %v4495 = vunpack.c.l.s4 1966171168
        %v4496 = vunpack.c.0.s8 %v4495
        %v4497 = vlaneseq
        %v4498 = vshrl.u32 %v4497, 7
        %v4499 = vsub.s32 %v4496, %v4498
        %v4500 = vrot.slane %v4484, %v4499
        %v4502 = vunpack.c.l.s4 1966171168
        %v4503 = vunpack.c.0.s8 %v4502
        %v4504 = vlaneseq
        %v4505 = vshrl.u32 %v4504, 7
        %v4506 = vsub.s32 %v4503, %v4505
        %v4507 = vrot.slane %v4491, %v4506
        %v4509 = vunpack.c.l.s4 1966171168
        %v4510 = vunpack.c.0.s8 %v4509
        %v4511 = vlaneseq
        %v4512 = vshrl.u32 %v4511, 7
        %v4513 = vsub.s32 %v4510, %v4512
        %v4514 = vrot.slane %v4492, %v4513
        %v4516 = vunpack.c.l.s4 1966171168
        %v4517 = vunpack.c.0.s8 %v4516
        %v4518 = vlaneseq
        %v4519 = vshrl.u32 %v4518, 7
        %v4520 = vsub.s32 %v4517, %v4519
        %v4521 = vrot.slane %v4493, %v4520
        %v4522 = vcombine.high %v4500, %v4500
        %v4523 = vcombine.high %v4507, %v4507
        %v4524 = vcombine.high %v4514, %v4514
        %v4525 = vcombine.high %v4521, %v4521
        %v4526 = vcombine.high %v4424, %v4424
        %v4528 = vunpack.c.l.s4 1966171168
        %v4529 = vunpack.c.0.s8 %v4528
        %v4530 = vlaneseq
        %v4531 = vshrl.u32 %v4530, 7
        %v4532 = vsub.s32 %v4529, %v4531
        %v4533 = vrot.slane %v4424, %v4532
        %v4535 = vunpack.c.l.s4 1966171168
        %v4536 = vunpack.c.0.s8 %v4535
        %v4537 = vlaneseq
        %v4538 = vshrl.u32 %v4537, 7
        %v4539 = vsub.s32 %v4536, %v4538
        %v4540 = vrot.slane %v4526, %v4539
        %v4541 = vcombine.high %v4533, %v4533
        %v4543 = vunpack.c.l.s4 1966171168
        %v4544 = vunpack.c.0.s8 %v4543
        %v4545 = vlaneseq
        %v4546 = vshrl.u32 %v4545, 7
        %v4547 = vsub.s32 %v4544, %v4546
        %v4548 = vrot.slane %v4533, %v4547
        %v4550 = vunpack.c.l.s4 1966171168
        %v4551 = vunpack.c.0.s8 %v4550
        %v4552 = vlaneseq
        %v4553 = vshrl.u32 %v4552, 7
        %v4554 = vsub.s32 %v4551, %v4553
        %v4555 = vrot.slane %v4540, %v4554
        %v4557 = vunpack.c.l.s4 1966171168
        %v4558 = vunpack.c.0.s8 %v4557
        %v4559 = vlaneseq
        %v4560 = vshrl.u32 %v4559, 7
        %v4561 = vsub.s32 %v4558, %v4560
        %v4562 = vrot.slane %v4541, %v4561
        %v4563 = vcombine.high %v4548, %v4548
        %v4564 = vcombine.high %v4562, %v4562
        %v4565 = vcombine.low %v4451, %v4465
        %v4566 = vcombine.low %v4473, %v4475
        %v4567 = vcombine.low %v4458, %v4472
        %v4569 = vunpack.c.l.s4 1966171168
        %v4570 = vunpack.c.0.s8 %v4569
        %v4571 = vlaneseq
        %v4572 = vshrl.u32 %v4571, 7
        %v4573 = vsub.s32 %v4570, %v4572
        %v4574 = vrot.slane %v4565, %v4573
        %v4576 = vunpack.c.l.s4 1966171168
        %v4577 = vunpack.c.0.s8 %v4576
        %v4578 = vlaneseq
        %v4579 = vshrl.u32 %v4578, 7
        %v4580 = vsub.s32 %v4577, %v4579
        %v4581 = vrot.slane %v4566, %v4580
        %v4583 = vunpack.c.l.s4 1966171168
        %v4584 = vunpack.c.0.s8 %v4583
        %v4585 = vlaneseq
        %v4586 = vshrl.u32 %v4585, 7
        %v4587 = vsub.s32 %v4584, %v4586
        %v4588 = vrot.slane %v4567, %v4587
        %v4590 = vunpack.c.l.s4 1966171168
        %v4591 = vunpack.c.0.s8 %v4590
        %v4592 = vlaneseq
        %v4593 = vshrl.u32 %v4592, 7
        %v4594 = vsub.s32 %v4591, %v4593
        %v4595 = vrot.slane %v4474, %v4594
        %v4596 = vcombine.low %v4574, %v4581
        %v4597 = vcombine.low %v4588, %v4595
        %v4599 = vunpack.c.l.s4 1966171168
        %v4600 = vunpack.c.0.s8 %v4599
        %v4601 = vlaneseq
        %v4602 = vshrl.u32 %v4601, 7
        %v4603 = vsub.s32 %v4600, %v4602
        %v4604 = vrot.slane %v4596, %v4603
        %v4606 = vunpack.c.l.s4 1966171168
        %v4607 = vunpack.c.0.s8 %v4606
        %v4608 = vlaneseq
        %v4609 = vshrl.u32 %v4608, 7
        %v4610 = vsub.s32 %v4607, %v4609
        %v4611 = vrot.slane %v4597, %v4610
        %v4612 = vcombine.low %v4604, %v4611
        %v4613 = vcombine.low %v4476, %v4500
        %v4614 = vcombine.low %v4514, %v4522
        %v4615 = vcombine.low %v4524, %v4507
        %v4617 = vunpack.c.l.s4 1966171168
        %v4618 = vunpack.c.0.s8 %v4617
        %v4619 = vlaneseq
        %v4620 = vshrl.u32 %v4619, 7
        %v4621 = vsub.s32 %v4618, %v4620
        %v4622 = vrot.slane %v4613, %v4621
        %v4624 = vunpack.c.l.s4 1966171168
        %v4625 = vunpack.c.0.s8 %v4624
        %v4626 = vlaneseq
        %v4627 = vshrl.u32 %v4626, 7
        %v4628 = vsub.s32 %v4625, %v4627
        %v4629 = vrot.slane %v4614, %v4628
        %v4631 = vunpack.c.l.s4 1966171168
        %v4632 = vunpack.c.0.s8 %v4631
        %v4633 = vlaneseq
        %v4634 = vshrl.u32 %v4633, 7
        %v4635 = vsub.s32 %v4632, %v4634
        %v4636 = vrot.slane %v4615, %v4635
        %v4638 = vunpack.c.l.s4 1966171168
        %v4639 = vunpack.c.0.s8 %v4638
        %v4640 = vlaneseq
        %v4641 = vshrl.u32 %v4640, 7
        %v4642 = vsub.s32 %v4639, %v4641
        %v4643 = vrot.slane %v4521, %v4642
        %v4644 = vcombine.low %v4622, %v4629
        %v4645 = vcombine.low %v4636, %v4643
        %v4647 = vunpack.c.l.s4 1966171168
        %v4648 = vunpack.c.0.s8 %v4647
        %v4649 = vlaneseq
        %v4650 = vshrl.u32 %v4649, 7
        %v4651 = vsub.s32 %v4648, %v4650
        %v4652 = vrot.slane %v4644, %v4651
        %v4654 = vunpack.c.l.s4 1966171168
        %v4655 = vunpack.c.0.s8 %v4654
        %v4656 = vlaneseq
        %v4657 = vshrl.u32 %v4656, 7
        %v4658 = vsub.s32 %v4655, %v4657
        %v4659 = vrot.slane %v4645, %v4658
        %v4660 = vcombine.low %v4652, %v4659
        %v4661 = vcombine.low %v4523, %v4525
        %v4662 = vcombine.low %v4548, %v4562
        %v4663 = vcombine.low %v4563, %v4564
        %v4665 = vunpack.c.l.s4 1966171168
        %v4666 = vunpack.c.0.s8 %v4665
        %v4667 = vlaneseq
        %v4668 = vshrl.u32 %v4667, 7
        %v4669 = vsub.s32 %v4666, %v4668
        %v4670 = vrot.slane %v4661, %v4669
        %v4672 = vunpack.c.l.s4 1966171168
        %v4673 = vunpack.c.0.s8 %v4672
        %v4674 = vlaneseq
        %v4675 = vshrl.u32 %v4674, 7
        %v4676 = vsub.s32 %v4673, %v4675
        %v4677 = vrot.slane %v4662, %v4676
        %v4679 = vunpack.c.l.s4 1966171168
        %v4680 = vunpack.c.0.s8 %v4679
        %v4681 = vlaneseq
        %v4682 = vshrl.u32 %v4681, 7
        %v4683 = vsub.s32 %v4680, %v4682
        %v4684 = vrot.slane %v4663, %v4683
        %v4686 = vunpack.c.l.s4 1966171168
        %v4687 = vunpack.c.0.s8 %v4686
        %v4688 = vlaneseq
        %v4689 = vshrl.u32 %v4688, 7
        %v4690 = vsub.s32 %v4687, %v4689
        %v4691 = vrot.slane %v4555, %v4690
        %v4692 = vcombine.low %v4670, %v4677
        %v4693 = vcombine.low %v4684, %v4691
        %v4695 = vunpack.c.l.s4 1966171168
        %v4696 = vunpack.c.0.s8 %v4695
        %v4697 = vlaneseq
        %v4698 = vshrl.u32 %v4697, 7
        %v4699 = vsub.s32 %v4696, %v4698
        %v4700 = vrot.slane %v4692, %v4699
        %v4702 = vunpack.c.l.s4 1966171168
        %v4703 = vunpack.c.0.s8 %v4702
        %v4704 = vlaneseq
        %v4705 = vshrl.u32 %v4704, 7
        %v4706 = vsub.s32 %v4703, %v4705
        %v4707 = vrot.slane %v4693, %v4706
        %v4708 = vcombine.low %v4700, %v4707
        %4712 = vst [vmem:[%s297] sm:$0x7f] %v4612
        %4713 = vst [vmem:[%s297 + $0x8] sm:$0x7f] %v4660
        %4714 = vst [vmem:[%s297 + $0x10] sm:$0x7f] %v4708
        %s4715 = smul.u32 3, %s19
        %p4716 = scmp.lt.s32.totalorder %s4715, 5
        %s4717 = scalar_select %p4716, %s4715, 5
        %s4718 = smul.addr %s4717, 8
        %s4719 = scalar_lea.vmem %s6, %s4718
        // Predicated region
        $region57: #{forward.1} parent=43 // pred_check
          %p4720 = pneg %p168
        $region58: #{forward.1} parent=43 // pred_check_branch
          %4722 = sbr.rel (%p4720) target = $region60
        $region59: #{forward.1} parent=43 // pred_region
          %s4723 = smul.u32 3, %s19
        $region60: #{forward.1} parent=43 // pred_fallthru
          _
      $region44: #{forward.1} parent=5 // pred_fallthru
        _
      %p4724 = scmp.le.s32.totalorder 2, %s14
      // Predicated region
      $region61: #{forward.1} parent=5 // pred_check
        %p4725 = pneg %p4724
      $region62: #{forward.1} parent=5 // pred_check_branch
        %4727 = sbr.rel (%p4725) target = $region64
      $region63: #{forward.1} parent=5 // pred_region
        %s4728 = ssub.s32 %s14, 2
        // Predicated region
        $region65: #{forward.1} parent=63 // pred_check
          %p4729 = pneg %p174
        $region66: #{forward.1} parent=63 // pred_check_branch
          %4731 = sbr.rel (%p4729) target = $region68
        $region67: #{forward.1} parent=63 // pred_region
          %s4732 = smul.u32 3, %s20
          %p4733 = scmp.lt.s32.totalorder %s4732, 5
          %s4734 = scalar_select %p4733, %s4732, 5
          %s4735 = smul.addr %s4734, 8
          %s4736 = scalar_lea.vmem %s6, %s4735
        $region68: #{forward.1} parent=63 // pred_fallthru
          _
      $region64: #{forward.1} parent=5 // pred_fallthru
        _
    $region6: #{forward.1} parent=1 // loop_footer
      %s18 = sadd.s32 1, %s14
    $region7: #{forward.1} parent=1 // loop_footer_branch
      %13 = sbr.rel target = $region3
    $region8: #{forward.1} parent=1 // loop_exit
      _
    %4737 = vsyncpa [#allocation3], 1
    %s4738 = scalar_lea.sflag [#allocation3], 1
    %4739 = vsyncpa %s4738, 1
    %4740 = vsyncpa [#allocation5], 1

</llo_original>
